<compile_context>
chip_gen: v7x
topology: tpu7x:2x2x1
jax: 0.10.0
libtpu: 0.0.40
codegen_flags: <defaults>
</compile_context>

<pallas_src>
import functools

import jax
import jax.numpy as jnp
import numpy as np
from jax.experimental import pallas as pl
from jax.experimental.pallas import tpu as pltpu


# ----------------------------------------------------------------------------
# Fused Pallas kernel: encoder (2 convs) + OD branch (2 convs) + pool/FC/sigmoid
# ----------------------------------------------------------------------------
def fused_odr_kernel(x_ref, mup_ref, mdn_ref,
                     w1_ref, b1_ref, w2_ref, b2_ref,
                     w3_ref, b3_ref, w4_ref, b4_ref,
                     wpool_ref, bfc_ref, pool_ref, o_ref):
    """One step = TB stacked images.

    x_ref    : (TB*H, (W+2)*Cin) f32 input slab (zero W-pad columns)
    mup_ref  : (TB*H, 1) f32  1 except at per-image top rows     (row%H == 0)
    mdn_ref  : (TB*H, 1) f32  1 except at per-image bottom rows  (row%H == H-1)
    wK_ref   : (3*(W+2)*CinK, (W+2)*CoutK) bf16 banded conv weight, kh-stacked
    bK_ref   : (1, (W+2)*CoutK) f32 bias (zero at W-pad columns)
    wpool_ref: ((W+2)*Cord, nclass) bf16, global-avg-pool folded into the FC
    bfc_ref  : (1, nclass) f32
    pool_ref : (TB, TB*H) f32 per-image row-sum matrix
    o_ref    : (TB, nclass)
    """
    v = x_ref[...]                                   # (M, (W+2)*Cin) f32
    m = v.shape[0]
    mask_up = mup_ref[...]                           # (M, 1)
    mask_dn = mdn_ref[...]

    def conv3x3(v_in, w_ref, b_ref):
        # Row shifts on the XLU; per-image zero "same" padding via the masks.
        # W-side zero padding is baked into the banded weights/bias (pad
        # columns stay exactly zero layer to layer).
        up = pltpu.roll(v_in, 1, 0) * mask_up        # row i <- row i-1
        dn = pltpu.roll(v_in, m - 1, 0) * mask_dn    # row i <- row i+1
        cat = jnp.concatenate([up, v_in, dn], axis=-1).astype(jnp.bfloat16)
        acc = jnp.dot(cat, w_ref[...], preferred_element_type=jnp.float32)
        return jnp.maximum(acc + b_ref[...], 0.0)    # (M, (W+2)*Cout) f32

    # Encoder
    y = conv3x3(v, w1_ref, b1_ref)
    y = conv3x3(y, w2_ref, b2_ref)
    # Ordinal (OD) branch
    y = conv3x3(y, w3_ref, b3_ref)
    y = conv3x3(y, w4_ref, b4_ref)

    # Global-avg-pool + Linear: W/C pooling folded into wpool, per-image row
    # sum done with a tiny (TB, M) matmul.  Exact sigmoid (tiny op).
    z = jnp.dot(y.astype(jnp.bfloat16), wpool_ref[...],
                preferred_element_type=jnp.float32)              # (M, nclass)
    logits = jnp.dot(pool_ref[...], z,
                     preferred_element_type=jnp.float32) + bfc_ref[...]
    o_ref[...] = (1.0 / (1.0 + jnp.exp(-logits))).astype(o_ref.dtype)


# ----------------------------------------------------------------------------
# pallas_call wrapper
# ----------------------------------------------------------------------------
def _const_index_map(ndim):
    return lambda b: (0,) * ndim


def odr_forward_pallas(prepared, x_nchw, *, batch_tile=8):
    B, Cin, H, W = x_nchw.shape
    Wp = W + 2
    TB = batch_tile
    M = TB * H
    nclass = prepared["fc_b"].shape[-1]

    # Sanity: prepared constants must match these dims / tile.
    assert prepared["w1"].shape[0] == 3 * Wp * Cin
    assert prepared["pool"].shape == (TB, M)

    # NCHW -> NHWC -> (B, H, W*Cin) -> zero W-pad columns -> stacked row slab.
    B_pad = ((B + TB - 1) // TB) * TB
    x = jnp.transpose(x_nchw, (0, 2, 3, 1)).astype(jnp.float32)
    x = x.reshape(B, H, W * Cin)
    x = jnp.pad(x, ((0, B_pad - B), (0, 0), (Cin, Cin)))   # (B_pad, H, Wp*Cin)
    x = x.reshape(B_pad * H, Wp * Cin)                     # (B_pad*H, Wp*Cin)

    consts = (prepared["mask_up"], prepared["mask_dn"],
              prepared["w1"], prepared["b1"], prepared["w2"], prepared["b2"],
              prepared["w3"], prepared["b3"], prepared["w4"], prepared["b4"],
              prepared["w_pool"], prepared["fc_b"], prepared["pool"])

    in_specs = [pl.BlockSpec((M, Wp * Cin), lambda b: (b, 0))]
    # Constant blocks: same block index every step -> DMA'd once, resident.
    in_specs += [pl.BlockSpec(c.shape, _const_index_map(c.ndim)) for c in consts]

    out = pl.pallas_call(
        fused_odr_kernel,
        out_shape=jax.ShapeDtypeStruct((B_pad, nclass), jnp.float32),
        grid=(B_pad // TB,),
        in_specs=in_specs,
        out_specs=pl.BlockSpec((TB, nclass), lambda b: (b, 0)),
        compiler_params=pltpu.CompilerParams(
            dimension_semantics=("parallel",)),
    )(x, *consts)
    return out[:B]


# ----------------------------------------------------------------------------
# Host-side (one-time) weight preparation: fold the 3x3 conv into a single
# kh-stacked banded matrix over the flattened (W+2)*C lane axis, fold the
# global-avg-pool into the FC weight, build boundary masks & row-sum matrix.
# ----------------------------------------------------------------------------
def prepare_kernel_params(params, H, W, batch_tile):
    Wp = W + 2
    TB = batch_tile
    M = TB * H

    def banded_conv_stacked(w, b):
        w = np.asarray(w, np.float32)            # (3, 3, Cin, Cout) HWIO
        b = np.asarray(b, np.float32)            # (Cout,)
        Cin, Cout = w.shape[2], w.shape[3]
        wk = np.zeros((3, Wp * Cin, Wp * Cout), np.float32)
        brow = np.zeros((1, Wp * Cout), np.float32)
        for j in range(W):                       # output spatial column
            w_out = j + 1                        # padded output column
            brow[0, w_out * Cout:(w_out + 1) * Cout] = b
            for kh in range(3):
                for kw in range(3):
                    w_in = w_out - 1 + kw        # padded input column
                    wk[kh,
                       w_in * Cin:(w_in + 1) * Cin,
                       w_out * Cout:(w_out + 1) * Cout] = w[kh, kw]
        # Stack kh along the contraction axis -> one wide-K matmul per layer.
        wk_stacked = wk.reshape(3 * Wp * Cin, Wp * Cout)
        return jnp.asarray(wk_stacked, jnp.bfloat16), jnp.asarray(brow)

    prepared = {}
    prepared["w1"], prepared["b1"] = banded_conv_stacked(params["enc1_w"], params["enc1_b"])
    prepared["w2"], prepared["b2"] = banded_conv_stacked(params["enc2_w"], params["enc2_b"])
    prepared["w3"], prepared["b3"] = banded_conv_stacked(params["ord1_w"], params["ord1_b"])
    prepared["w4"], prepared["b4"] = banded_conv_stacked(params["ord2_w"], params["ord2_b"])

    fcw = np.asarray(params["fc_w"], np.float32)          # (Cord, nclass)
    cord, nclass = fcw.shape
    wpool = np.zeros((Wp * cord, nclass), np.float32)
    for j in range(W):
        wpool[(j + 1) * cord:(j + 2) * cord, :] = fcw / float(H * W)
    prepared["w_pool"] = jnp.asarray(wpool, jnp.bfloat16)
    prepared["fc_b"] = jnp.asarray(
        np.asarray(params["fc_b"], np.float32).reshape(1, nclass))

    # Per-image boundary masks for the rolled rows (zero the wrapped rows).
    rows = np.arange(M)
    prepared["mask_up"] = jnp.asarray(
        ((rows % H) != 0).astype(np.float32).reshape(M, 1))
    prepared["mask_dn"] = jnp.asarray(
        ((rows % H) != (H - 1)).astype(np.float32).reshape(M, 1))
    # Per-image row-sum matrix (finishes the global-avg-pool).
    prepared["pool"] = jnp.asarray(
        np.kron(np.eye(TB, dtype=np.float32), np.ones((1, H), np.float32)))

    # v7x VMEM guard: banded weights grow ~quadratically in W*C.
    wbytes = sum(int(np.prod(prepared[k].shape)) * prepared[k].dtype.itemsize
                 for k in ("w1", "w2", "w3", "w4", "w_pool"))
    if wbytes > 24 * 1024 * 1024:
        # TODO(synk): fall back to a W-column-tiled banded matmul (extra
        # 'arbitrary' grid axis) or im2col (K=9*Cin) when the banded weights
        # approach the scoped-VMEM budget (v7x: 64 MiB physical).
        raise ValueError(f"banded weights too large for VMEM: {wbytes} bytes")
    return prepared


# ----------------------------------------------------------------------------
# Parameter initialization (mirrors nn.Conv2d / nn.Linear shapes & init intent)
# ----------------------------------------------------------------------------
def xavier_conv(key, cin, cout):
    fan_in, fan_out = cin * 9, cout * 9
    limit = (6.0 / (fan_in + fan_out)) ** 0.5
    w = jax.random.uniform(key, (3, 3, cin, cout), jnp.float32, -limit, limit)
    b = jnp.full((cout,), 0.1, jnp.float32)
    return w, b


def normal_linear(key, cin, cout):
    w = 0.01 * jax.random.normal(key, (cin, cout), jnp.float32)
    b = jnp.zeros((cout,), jnp.float32)
    return w, b


def init_params(key, enc_in, enc_mid, enc_out, ord_mid, ord_out, nclass):
    ks = jax.random.split(key, 5)
    p = {}
    p["enc1_w"], p["enc1_b"] = xavier_conv(ks[0], enc_in, enc_mid)
    p["enc2_w"], p["enc2_b"] = xavier_conv(ks[1], enc_mid, enc_out)
    p["ord1_w"], p["ord1_b"] = xavier_conv(ks[2], enc_out, ord_mid)
    p["ord2_w"], p["ord2_b"] = xavier_conv(ks[3], ord_mid, ord_out)
    p["fc_w"], p["fc_b"] = normal_linear(ks[4], ord_out, nclass)
    return p


# ----------------------------------------------------------------------------
# Pure-JAX reference (same forward semantics) for correctness checking
# ----------------------------------------------------------------------------
def odr_forward_reference(params, x_nchw):
    x = jnp.transpose(x_nchw, (0, 2, 3, 1)).astype(jnp.float32)

    def conv(h, w, b):
        y = jax.lax.conv_general_dilated(
            h, w, (1, 1), "SAME",
            dimension_numbers=("NHWC", "HWIO", "NHWC"))
        return jnp.maximum(y + b, 0.0)

    h = conv(x, params["enc1_w"], params["enc1_b"])
    h = conv(h, params["enc2_w"], params["enc2_b"])
    h = conv(h, params["ord1_w"], params["ord1_b"])
    h = conv(h, params["ord2_w"], params["ord2_b"])
    pooled = jnp.mean(h, axis=(1, 2))
    logits = pooled @ params["fc_w"] + params["fc_b"]
    return jax.nn.sigmoid(logits)


# ----------------------------------------------------------------------------
# Demo
# ----------------------------------------------------------------------------
if __name__ == "__main__":
    key = jax.random.PRNGKey(0)
    k_x, k_p = jax.random.split(key)

    # combinatorial_args (small, synthetic):
    enc_in, enc_mid, enc_out = 4, 8, 16
    ord_mid, ord_out = 8, 8
    nclass = 4                      # matches threshold = [0.1, 3.0, 10.0, 20.0]
    B, H, W = 16, 16, 16
    TB = 8                          # images per grid step -> M = TB*H = 128

    params = init_params(k_p, enc_in, enc_mid, enc_out, ord_mid, ord_out, nclass)
    prepared = prepare_kernel_params(params, H, W, batch_tile=TB)  # one-time

    x = jax.random.normal(k_x, (B, enc_in, H, W), jnp.float32)     # NCHW like torch

    fwd = jax.jit(functools.partial(odr_forward_pallas, batch_tile=TB))
    y_hat = fwd(prepared, x)
    jax.block_until_ready(y_hat)

    y_ref = odr_forward_reference(params, x)

    assert y_hat.shape == (B, nclass)
    assert bool(jnp.all((y_hat >= 0.0) & (y_hat <= 1.0)))
    # Tolerance covers the bf16 matmul operands (tiny FC weights + sigmoid
    # squashing keep the output error orders of magnitude below this).
    assert bool(jnp.allclose(y_hat, y_ref, atol=1e-2, rtol=0.0)), (y_hat, y_ref)
    print("KERNEL_OK")
</pallas_src>

<mosaic_0001>
module attributes {stable_mosaic.version = 11 : i64} {
  func.func @fused_odr_kernel(%arg0: i32, %arg1: memref<128x72xf32, #tpu.memory_space<vmem>>, %arg2: memref<128x1xf32, #tpu.memory_space<vmem>>, %arg3: memref<128x1xf32, #tpu.memory_space<vmem>>, %arg4: memref<216x144xbf16, #tpu.memory_space<vmem>>, %arg5: memref<1x144xf32, #tpu.memory_space<vmem>>, %arg6: memref<432x288xbf16, #tpu.memory_space<vmem>>, %arg7: memref<1x288xf32, #tpu.memory_space<vmem>>, %arg8: memref<864x144xbf16, #tpu.memory_space<vmem>>, %arg9: memref<1x144xf32, #tpu.memory_space<vmem>>, %arg10: memref<432x144xbf16, #tpu.memory_space<vmem>>, %arg11: memref<1x144xf32, #tpu.memory_space<vmem>>, %arg12: memref<144x4xbf16, #tpu.memory_space<vmem>>, %arg13: memref<1x4xf32, #tpu.memory_space<vmem>>, %arg14: memref<8x128xf32, #tpu.memory_space<vmem>>, %arg15: memref<8x4xf32, #tpu.memory_space<vmem>>) attributes {dimension_semantics = [#tpu.dimension_semantics<parallel>], iteration_bounds = array<i64: 2>, scalar_prefetch = 0 : i64, scratch_operands = 0 : i64, tpu.core_type = #tpu.core_type<tc>, window_params = [{transform_indices = @transform_0, window_bounds = array<i64: 128, 72>}, {pipeline_mode = #tpu.pipeline_mode<synchronous>, transform_indices = @transform_1, window_bounds = array<i64: 128, 1>}, {pipeline_mode = #tpu.pipeline_mode<synchronous>, transform_indices = @transform_2, window_bounds = array<i64: 128, 1>}, {pipeline_mode = #tpu.pipeline_mode<synchronous>, transform_indices = @transform_3, window_bounds = array<i64: 216, 144>}, {pipeline_mode = #tpu.pipeline_mode<synchronous>, transform_indices = @transform_4, window_bounds = array<i64: 1, 144>}, {pipeline_mode = #tpu.pipeline_mode<synchronous>, transform_indices = @transform_5, window_bounds = array<i64: 432, 288>}, {pipeline_mode = #tpu.pipeline_mode<synchronous>, transform_indices = @transform_6, window_bounds = array<i64: 1, 288>}, {pipeline_mode = #tpu.pipeline_mode<synchronous>, transform_indices = @transform_7, window_bounds = array<i64: 864, 144>}, {pipeline_mode = #tpu.pipeline_mode<synchronous>, transform_indices = @transform_8, window_bounds = array<i64: 1, 144>}, {pipeline_mode = #tpu.pipeline_mode<synchronous>, transform_indices = @transform_9, window_bounds = array<i64: 432, 144>}, {pipeline_mode = #tpu.pipeline_mode<synchronous>, transform_indices = @transform_10, window_bounds = array<i64: 1, 144>}, {pipeline_mode = #tpu.pipeline_mode<synchronous>, transform_indices = @transform_11, window_bounds = array<i64: 144, 4>}, {pipeline_mode = #tpu.pipeline_mode<synchronous>, transform_indices = @transform_12, window_bounds = array<i64: 1, 4>}, {pipeline_mode = #tpu.pipeline_mode<synchronous>, transform_indices = @transform_13, window_bounds = array<i64: 8, 128>}, {transform_indices = @transform_14, window_bounds = array<i64: 8, 4>}]} {
    %c0 = arith.constant 0 : index
    %c0_0 = arith.constant 0 : index
    %0 = vector.load %arg1[%c0, %c0_0] : memref<128x72xf32, #tpu.memory_space<vmem>>, vector<128x72xf32>
    %c0_1 = arith.constant 0 : index
    %c0_2 = arith.constant 0 : index
    %1 = vector.load %arg2[%c0_1, %c0_2] : memref<128x1xf32, #tpu.memory_space<vmem>>, vector<128x1xf32>
    %c0_3 = arith.constant 0 : index
    %c0_4 = arith.constant 0 : index
    %2 = vector.load %arg3[%c0_3, %c0_4] : memref<128x1xf32, #tpu.memory_space<vmem>>, vector<128x1xf32>
    %c1_i32 = arith.constant 1 : i32
    %3 = tpu.dynamic_rotate %0 by %c1_i32 dim 0 : vector<128x72xf32>, i32 -> vector<128x72xf32>
    %4 = vector.broadcast %1 : vector<128x1xf32> to vector<128x72xf32>
    %5 = arith.mulf %3, %4 : vector<128x72xf32>
    %c127_i32 = arith.constant 127 : i32
    %6 = tpu.dynamic_rotate %0 by %c127_i32 dim 0 : vector<128x72xf32>, i32 -> vector<128x72xf32>
    %7 = vector.broadcast %2 : vector<128x1xf32> to vector<128x72xf32>
    %8 = arith.mulf %6, %7 : vector<128x72xf32>
    %9 = tpu.concatenate %5, %0, %8 in 1 : vector<128x72xf32>, vector<128x72xf32>, vector<128x72xf32> -> vector<128x216xf32>
    %10 = arith.truncf %9 : vector<128x216xf32> to vector<128x216xbf16>
    %c0_5 = arith.constant 0 : index
    %c0_6 = arith.constant 0 : index
    %11 = vector.load %arg4[%c0_5, %c0_6] : memref<216x144xbf16, #tpu.memory_space<vmem>>, vector<216x144xbf16>
    %cst = arith.constant dense<0.000000e+00> : vector<128x144xf32>
    %12 = tpu.matmul %10, %11, %cst {dimension_numbers = #tpu.dot_dimension_numbers<[1], [0], [0], [1], [0, 0, 1, 1], [], []>} : vector<128x216xbf16>, vector<216x144xbf16>, vector<128x144xf32> -> vector<128x144xf32>
    %c0_7 = arith.constant 0 : index
    %c0_8 = arith.constant 0 : index
    %13 = vector.load %arg5[%c0_7, %c0_8] : memref<1x144xf32, #tpu.memory_space<vmem>>, vector<1x144xf32>
    %14 = vector.broadcast %13 : vector<1x144xf32> to vector<128x144xf32>
    %15 = arith.addf %12, %14 : vector<128x144xf32>
    %cst_9 = arith.constant 0.000000e+00 : f32
    %16 = vector.broadcast %cst_9 : f32 to vector<128x144xf32>
    %17 = arith.maximumf %15, %16 : vector<128x144xf32>
    %c1_i32_10 = arith.constant 1 : i32
    %18 = tpu.dynamic_rotate %17 by %c1_i32_10 dim 0 : vector<128x144xf32>, i32 -> vector<128x144xf32>
    %19 = vector.broadcast %1 : vector<128x1xf32> to vector<128x144xf32>
    %20 = arith.mulf %18, %19 : vector<128x144xf32>
    %c127_i32_11 = arith.constant 127 : i32
    %21 = tpu.dynamic_rotate %17 by %c127_i32_11 dim 0 : vector<128x144xf32>, i32 -> vector<128x144xf32>
    %22 = vector.broadcast %2 : vector<128x1xf32> to vector<128x144xf32>
    %23 = arith.mulf %21, %22 : vector<128x144xf32>
    %24 = tpu.concatenate %20, %17, %23 in 1 : vector<128x144xf32>, vector<128x144xf32>, vector<128x144xf32> -> vector<128x432xf32>
    %25 = arith.truncf %24 : vector<128x432xf32> to vector<128x432xbf16>
    %c0_12 = arith.constant 0 : index
    %c0_13 = arith.constant 0 : index
    %26 = vector.load %arg6[%c0_12, %c0_13] : memref<432x288xbf16, #tpu.memory_space<vmem>>, vector<432x288xbf16>
    %cst_14 = arith.constant dense<0.000000e+00> : vector<128x288xf32>
    %27 = tpu.matmul %25, %26, %cst_14 {dimension_numbers = #tpu.dot_dimension_numbers<[1], [0], [0], [1], [0, 0, 1, 1], [], []>} : vector<128x432xbf16>, vector<432x288xbf16>, vector<128x288xf32> -> vector<128x288xf32>
    %c0_15 = arith.constant 0 : index
    %c0_16 = arith.constant 0 : index
    %28 = vector.load %arg7[%c0_15, %c0_16] : memref<1x288xf32, #tpu.memory_space<vmem>>, vector<1x288xf32>
    %29 = vector.broadcast %28 : vector<1x288xf32> to vector<128x288xf32>
    %30 = arith.addf %27, %29 : vector<128x288xf32>
    %cst_17 = arith.constant 0.000000e+00 : f32
    %31 = vector.broadcast %cst_17 : f32 to vector<128x288xf32>
    %32 = arith.maximumf %30, %31 : vector<128x288xf32>
    %c1_i32_18 = arith.constant 1 : i32
    %33 = tpu.dynamic_rotate %32 by %c1_i32_18 dim 0 : vector<128x288xf32>, i32 -> vector<128x288xf32>
    %34 = vector.broadcast %1 : vector<128x1xf32> to vector<128x288xf32>
    %35 = arith.mulf %33, %34 : vector<128x288xf32>
    %c127_i32_19 = arith.constant 127 : i32
    %36 = tpu.dynamic_rotate %32 by %c127_i32_19 dim 0 : vector<128x288xf32>, i32 -> vector<128x288xf32>
    %37 = vector.broadcast %2 : vector<128x1xf32> to vector<128x288xf32>
    %38 = arith.mulf %36, %37 : vector<128x288xf32>
    %39 = tpu.concatenate %35, %32, %38 in 1 : vector<128x288xf32>, vector<128x288xf32>, vector<128x288xf32> -> vector<128x864xf32>
    %40 = arith.truncf %39 : vector<128x864xf32> to vector<128x864xbf16>
    %c0_20 = arith.constant 0 : index
    %c0_21 = arith.constant 0 : index
    %41 = vector.load %arg8[%c0_20, %c0_21] : memref<864x144xbf16, #tpu.memory_space<vmem>>, vector<864x144xbf16>
    %cst_22 = arith.constant dense<0.000000e+00> : vector<128x144xf32>
    %42 = tpu.matmul %40, %41, %cst_22 {dimension_numbers = #tpu.dot_dimension_numbers<[1], [0], [0], [1], [0, 0, 1, 1], [], []>} : vector<128x864xbf16>, vector<864x144xbf16>, vector<128x144xf32> -> vector<128x144xf32>
    %c0_23 = arith.constant 0 : index
    %c0_24 = arith.constant 0 : index
    %43 = vector.load %arg9[%c0_23, %c0_24] : memref<1x144xf32, #tpu.memory_space<vmem>>, vector<1x144xf32>
    %44 = vector.broadcast %43 : vector<1x144xf32> to vector<128x144xf32>
    %45 = arith.addf %42, %44 : vector<128x144xf32>
    %cst_25 = arith.constant 0.000000e+00 : f32
    %46 = vector.broadcast %cst_25 : f32 to vector<128x144xf32>
    %47 = arith.maximumf %45, %46 : vector<128x144xf32>
    %c1_i32_26 = arith.constant 1 : i32
    %48 = tpu.dynamic_rotate %47 by %c1_i32_26 dim 0 : vector<128x144xf32>, i32 -> vector<128x144xf32>
    %49 = vector.broadcast %1 : vector<128x1xf32> to vector<128x144xf32>
    %50 = arith.mulf %48, %49 : vector<128x144xf32>
    %c127_i32_27 = arith.constant 127 : i32
    %51 = tpu.dynamic_rotate %47 by %c127_i32_27 dim 0 : vector<128x144xf32>, i32 -> vector<128x144xf32>
    %52 = vector.broadcast %2 : vector<128x1xf32> to vector<128x144xf32>
    %53 = arith.mulf %51, %52 : vector<128x144xf32>
    %54 = tpu.concatenate %50, %47, %53 in 1 : vector<128x144xf32>, vector<128x144xf32>, vector<128x144xf32> -> vector<128x432xf32>
    %55 = arith.truncf %54 : vector<128x432xf32> to vector<128x432xbf16>
    %c0_28 = arith.constant 0 : index
    %c0_29 = arith.constant 0 : index
    %56 = vector.load %arg10[%c0_28, %c0_29] : memref<432x144xbf16, #tpu.memory_space<vmem>>, vector<432x144xbf16>
    %cst_30 = arith.constant dense<0.000000e+00> : vector<128x144xf32>
    %57 = tpu.matmul %55, %56, %cst_30 {dimension_numbers = #tpu.dot_dimension_numbers<[1], [0], [0], [1], [0, 0, 1, 1], [], []>} : vector<128x432xbf16>, vector<432x144xbf16>, vector<128x144xf32> -> vector<128x144xf32>
    %c0_31 = arith.constant 0 : index
    %c0_32 = arith.constant 0 : index
    %58 = vector.load %arg11[%c0_31, %c0_32] : memref<1x144xf32, #tpu.memory_space<vmem>>, vector<1x144xf32>
    %59 = vector.broadcast %58 : vector<1x144xf32> to vector<128x144xf32>
    %60 = arith.addf %57, %59 : vector<128x144xf32>
    %cst_33 = arith.constant 0.000000e+00 : f32
    %61 = vector.broadcast %cst_33 : f32 to vector<128x144xf32>
    %62 = arith.maximumf %60, %61 : vector<128x144xf32>
    %63 = arith.truncf %62 : vector<128x144xf32> to vector<128x144xbf16>
    %c0_34 = arith.constant 0 : index
    %c0_35 = arith.constant 0 : index
    %64 = vector.load %arg12[%c0_34, %c0_35] : memref<144x4xbf16, #tpu.memory_space<vmem>>, vector<144x4xbf16>
    %cst_36 = arith.constant dense<0.000000e+00> : vector<128x4xf32>
    %65 = tpu.matmul %63, %64, %cst_36 {dimension_numbers = #tpu.dot_dimension_numbers<[1], [0], [0], [1], [0, 0, 1, 1], [], []>} : vector<128x144xbf16>, vector<144x4xbf16>, vector<128x4xf32> -> vector<128x4xf32>
    %c0_37 = arith.constant 0 : index
    %c0_38 = arith.constant 0 : index
    %66 = vector.load %arg14[%c0_37, %c0_38] : memref<8x128xf32, #tpu.memory_space<vmem>>, vector<8x128xf32>
    %cst_39 = arith.constant dense<0.000000e+00> : vector<8x4xf32>
    %67 = tpu.matmul %66, %65, %cst_39 {dimension_numbers = #tpu.dot_dimension_numbers<[1], [0], [0], [1], [0, 0, 1, 1], [], []>} : vector<8x128xf32>, vector<128x4xf32>, vector<8x4xf32> -> vector<8x4xf32>
    %c0_40 = arith.constant 0 : index
    %c0_41 = arith.constant 0 : index
    %68 = vector.load %arg13[%c0_40, %c0_41] : memref<1x4xf32, #tpu.memory_space<vmem>>, vector<1x4xf32>
    %69 = vector.broadcast %68 : vector<1x4xf32> to vector<8x4xf32>
    %70 = arith.addf %67, %69 : vector<8x4xf32>
    %cst_42 = arith.constant 0.000000e+00 : f32
    %71 = vector.broadcast %cst_42 : f32 to vector<8x4xf32>
    %72 = arith.subf %71, %70 : vector<8x4xf32>
    %73 = math.exp %72 : vector<8x4xf32>
    %cst_43 = arith.constant 1.000000e+00 : f32
    %74 = vector.broadcast %cst_43 : f32 to vector<8x4xf32>
    %75 = arith.addf %74, %73 : vector<8x4xf32>
    %cst_44 = arith.constant 1.000000e+00 : f32
    %76 = vector.broadcast %cst_44 : f32 to vector<8x4xf32>
    %77 = arith.divf %76, %75 : vector<8x4xf32>
    %c0_45 = arith.constant 0 : index
    %c0_46 = arith.constant 0 : index
    %78 = vector.load %arg15[%c0_45, %c0_46] : memref<8x4xf32, #tpu.memory_space<vmem>>, vector<8x4xf32>
    tpu.vector_store %arg15[%c0_45, %c0_46], %77 {strides = array<i32>} : memref<8x4xf32, #tpu.memory_space<vmem>>, vector<8x4xf32>,
    return
  }
  func.func @transform_0(%arg0: i32) -> (i32, i32) {
    %c0_i32 = arith.constant 0 : i32
    %c0_i32_0 = arith.constant 0 : i32
    return %arg0, %c0_i32 : i32, i32
  }
  func.func @transform_1(%arg0: i32) -> (i32, i32) {
    %c0_i32 = arith.constant 0 : i32
    %c0_i32_0 = arith.constant 0 : i32
    %c0_i32_1 = arith.constant 0 : i32
    return %c0_i32, %c0_i32_0 : i32, i32
  }
  func.func @transform_2(%arg0: i32) -> (i32, i32) {
    %c0_i32 = arith.constant 0 : i32
    %c0_i32_0 = arith.constant 0 : i32
    %c0_i32_1 = arith.constant 0 : i32
    return %c0_i32, %c0_i32_0 : i32, i32
  }
  func.func @transform_3(%arg0: i32) -> (i32, i32) {
    %c0_i32 = arith.constant 0 : i32
    %c0_i32_0 = arith.constant 0 : i32
    %c0_i32_1 = arith.constant 0 : i32
    return %c0_i32, %c0_i32_0 : i32, i32
  }
  func.func @transform_4(%arg0: i32) -> (i32, i32) {
    %c0_i32 = arith.constant 0 : i32
    %c0_i32_0 = arith.constant 0 : i32
    %c0_i32_1 = arith.constant 0 : i32
    return %c0_i32, %c0_i32_0 : i32, i32
  }
  func.func @transform_5(%arg0: i32) -> (i32, i32) {
    %c0_i32 = arith.constant 0 : i32
    %c0_i32_0 = arith.constant 0 : i32
    %c0_i32_1 = arith.constant 0 : i32
    return %c0_i32, %c0_i32_0 : i32, i32
  }
  func.func @transform_6(%arg0: i32) -> (i32, i32) {
    %c0_i32 = arith.constant 0 : i32
    %c0_i32_0 = arith.constant 0 : i32
    %c0_i32_1 = arith.constant 0 : i32
    return %c0_i32, %c0_i32_0 : i32, i32
  }
  func.func @transform_7(%arg0: i32) -> (i32, i32) {
    %c0_i32 = arith.constant 0 : i32
    %c0_i32_0 = arith.constant 0 : i32
    %c0_i32_1 = arith.constant 0 : i32
    return %c0_i32, %c0_i32_0 : i32, i32
  }
  func.func @transform_8(%arg0: i32) -> (i32, i32) {
    %c0_i32 = arith.constant 0 : i32
    %c0_i32_0 = arith.constant 0 : i32
    %c0_i32_1 = arith.constant 0 : i32
    return %c0_i32, %c0_i32_0 : i32, i32
  }
  func.func @transform_9(%arg0: i32) -> (i32, i32) {
    %c0_i32 = arith.constant 0 : i32
    %c0_i32_0 = arith.constant 0 : i32
    %c0_i32_1 = arith.constant 0 : i32
    return %c0_i32, %c0_i32_0 : i32, i32
  }
  func.func @transform_10(%arg0: i32) -> (i32, i32) {
    %c0_i32 = arith.constant 0 : i32
    %c0_i32_0 = arith.constant 0 : i32
    %c0_i32_1 = arith.constant 0 : i32
    return %c0_i32, %c0_i32_0 : i32, i32
  }
  func.func @transform_11(%arg0: i32) -> (i32, i32) {
    %c0_i32 = arith.constant 0 : i32
    %c0_i32_0 = arith.constant 0 : i32
    %c0_i32_1 = arith.constant 0 : i32
    return %c0_i32, %c0_i32_0 : i32, i32
  }
  func.func @transform_12(%arg0: i32) -> (i32, i32) {
    %c0_i32 = arith.constant 0 : i32
    %c0_i32_0 = arith.constant 0 : i32
    %c0_i32_1 = arith.constant 0 : i32
    return %c0_i32, %c0_i32_0 : i32, i32
  }
  func.func @transform_13(%arg0: i32) -> (i32, i32) {
    %c0_i32 = arith.constant 0 : i32
    %c0_i32_0 = arith.constant 0 : i32
    %c0_i32_1 = arith.constant 0 : i32
    return %c0_i32, %c0_i32_0 : i32, i32
  }
  func.func @transform_14(%arg0: i32) -> (i32, i32) {
    %c0_i32 = arith.constant 0 : i32
    %c0_i32_0 = arith.constant 0 : i32
    return %arg0, %c0_i32 : i32, i32
  }
}

</mosaic_0001>

<llo_original>
// kernel: odr_forward_pallas.1
$region0: #{odr_forward_pallas.1}
  #allocation0 [shape = 'u32[]', space=smem, size = 0x4, offset = 0x4, fixed_abs, tag = 'smem constant byte address 0x4 - core index']
  #allocation1 [shape = 'u32[144,128]{1,0:T(1,128)}', space=vmem, size = 0x12000, scoped, tag = 'internal scratch']
  %s0 = inlined_call_operand.vmem [shape: f32[256,72], index: 0, kind: input, shape index: {}]
  %s1 = inlined_call_operand.vmem [shape: f32[128,1], index: 1, kind: input, shape index: {}]
  %s2 = inlined_call_operand.vmem [shape: f32[128,1], index: 2, kind: input, shape index: {}]
  %s3 = inlined_call_operand.vmem [shape: bf16[216,144], index: 3, kind: input, shape index: {}]
  %s4 = inlined_call_operand.vmem [shape: f32[1,144], index: 4, kind: input, shape index: {}]
  %s5 = inlined_call_operand.vmem [shape: bf16[432,288], index: 5, kind: input, shape index: {}]
  %s6 = inlined_call_operand.vmem [shape: f32[1,288], index: 6, kind: input, shape index: {}]
  %s7 = inlined_call_operand.vmem [shape: bf16[864,144], index: 7, kind: input, shape index: {}]
  %s8 = inlined_call_operand.vmem [shape: f32[1,144], index: 8, kind: input, shape index: {}]
  %s9 = inlined_call_operand.vmem [shape: bf16[432,144], index: 9, kind: input, shape index: {}]
  %s10 = inlined_call_operand.vmem [shape: f32[1,144], index: 10, kind: input, shape index: {}]
  %s11 = inlined_call_operand.vmem [shape: bf16[144,4], index: 11, kind: input, shape index: {}]
  %s12 = inlined_call_operand.vmem [shape: f32[1,4], index: 12, kind: input, shape index: {}]
  %s13 = inlined_call_operand.vmem [shape: f32[8,128], index: 13, kind: input, shape index: {}]
  %s14 = inlined_call_operand.vmem [shape: f32[16,4], index: 14, kind: output, shape index: {}]
  %s15 = sld [smem:[#allocation0]]
  $region89: #{odr_forward_pallas.1} parent=0
    _
  %s17 = ssub.s32 1, %s15
  %s18 = scalar_select 0, %s17, %s15
  loop: start=0, step=1, limit=4
  $region2: #{odr_forward_pallas.1} parent=0 // loop_pre_header
    _
  $region3: #{odr_forward_pallas.1} parent=0 // loop_header
    %s20 = sphi 0, %s24
    %p21 = scmp.ge.s32.totalorder %s20, 4
    %s30 = sphi 0, %s32
    %s33 = sphi 0, %s30
    %s34 = sphi 0, %s33
    %s50 = sphi 0, %s34
    %s54 = sphi 0, %s54
    %s56 = sphi 0, %s54
    %s57 = sphi 0, %s56
    %s71 = sphi 0, %s57
    %s75 = sphi 0, %s75
    %s77 = sphi 0, %s75
    %s78 = sphi 0, %s77
    %s92 = sphi 0, %s78
    %s96 = sphi 0, %s96
    %s98 = sphi 0, %s96
    %s99 = sphi 0, %s98
    %s113 = sphi 0, %s99
    %s117 = sphi 0, %s117
    %s119 = sphi 0, %s117
    %s120 = sphi 0, %s119
    %s134 = sphi 0, %s120
    %s138 = sphi 0, %s138
    %s140 = sphi 0, %s138
    %s141 = sphi 0, %s140
    %s155 = sphi 0, %s141
    %s159 = sphi 0, %s159
    %s161 = sphi 0, %s159
    %s162 = sphi 0, %s161
    %s176 = sphi 0, %s162
    %s180 = sphi 0, %s180
    %s182 = sphi 0, %s180
    %s183 = sphi 0, %s182
    %s197 = sphi 0, %s183
    %s201 = sphi 0, %s201
    %s203 = sphi 0, %s201
    %s204 = sphi 0, %s203
    %s218 = sphi 0, %s204
    %s222 = sphi 0, %s222
    %s224 = sphi 0, %s222
    %s225 = sphi 0, %s224
    %s239 = sphi 0, %s225
    %s243 = sphi 0, %s243
    %s245 = sphi 0, %s243
    %s246 = sphi 0, %s245
    %s260 = sphi 0, %s246
    %s264 = sphi 0, %s264
    %s266 = sphi 0, %s264
    %s267 = sphi 0, %s266
    %s281 = sphi 0, %s267
    %s285 = sphi 0, %s285
    %s287 = sphi 0, %s285
    %s288 = sphi 0, %s287
    %s302 = sphi 0, %s288
    %s306 = sphi 0, %s306
    %s308 = sphi 0, %s306
    %s309 = sphi 0, %s308
    %s323 = sphi 0, %s309
    %s329 = sphi 0, %s331
    %s332 = sphi 0, %s329
    %s333 = sphi 0, %s332
    %s349 = sphi 0, %s333
  $region4: #{odr_forward_pallas.1} parent=0 // loop_header_branch
    %23 = sbr.rel (%p21) target = $region8
  $region5: #{odr_forward_pallas.1} parent=0 // loop_body
    %s25 = ssub.s32 %s20, 1
    %s26 = ssub.s32 %s20, 2
    %s27 = sadd.s32 %s20, 1
    %s28 = ssub.s32 %s20, %s27
    %p29 = scmp.eq.s32.totalorder %s28, 0
    %s31 = sadd.s32 %s30, 1
    %s32 = scalar_select %p29, %s30, %s31
    %p35 = pneg %p29
    %p36 = scmp.eq.s32.totalorder %s20, 1
    %p37 = por %p35, %p36
    %p38 = scmp.ne.s32.totalorder %s30, %s33
    %p39 = scmp.eq.s32.totalorder %s20, 0
    %p40 = por %p38, %p39
    %p41 = scmp.ne.s32.totalorder %s30, %s33
    %p42 = scmp.eq.s32.totalorder %s25, 1
    %p43 = por %p41, %p42
    %p44 = scmp.ne.s32.totalorder %s33, %s34
    %p45 = scmp.eq.s32.totalorder %s25, 0
    %p46 = por %p44, %p45
    %p47 = scmp.ne.s32.totalorder %s33, %s34
    %p48 = scmp.eq.s32.totalorder %s26, 1
    %p49 = por %p47, %p48
    %p51 = scmp.ne.s32.totalorder %s34, %s50
    %p52 = scmp.eq.s32.totalorder %s26, 0
    %p53 = por %p51, %p52
    %s55 = sadd.s32 %s54, 1
    %p58 = scmp.eq.s32.totalorder %s20, 1
    %p59 = scmp.ne.s32.totalorder %s54, %s56
    %p60 = scmp.eq.s32.totalorder %s20, 0
    %p61 = por %p59, %p60
    %p62 = scmp.ne.s32.totalorder %s54, %s56
    %p63 = scmp.eq.s32.totalorder %s25, 1
    %p64 = por %p62, %p63
    %p65 = scmp.ne.s32.totalorder %s56, %s57
    %p66 = scmp.eq.s32.totalorder %s25, 0
    %p67 = por %p65, %p66
    %p68 = scmp.ne.s32.totalorder %s56, %s57
    %p69 = scmp.eq.s32.totalorder %s26, 1
    %p70 = por %p68, %p69
    %p72 = scmp.ne.s32.totalorder %s57, %s71
    %p73 = scmp.eq.s32.totalorder %s26, 0
    %p74 = por %p72, %p73
    %s76 = sadd.s32 %s75, 1
    %p79 = scmp.eq.s32.totalorder %s20, 1
    %p80 = scmp.ne.s32.totalorder %s75, %s77
    %p81 = scmp.eq.s32.totalorder %s20, 0
    %p82 = por %p80, %p81
    %p83 = scmp.ne.s32.totalorder %s75, %s77
    %p84 = scmp.eq.s32.totalorder %s25, 1
    %p85 = por %p83, %p84
    %p86 = scmp.ne.s32.totalorder %s77, %s78
    %p87 = scmp.eq.s32.totalorder %s25, 0
    %p88 = por %p86, %p87
    %p89 = scmp.ne.s32.totalorder %s77, %s78
    %p90 = scmp.eq.s32.totalorder %s26, 1
    %p91 = por %p89, %p90
    %p93 = scmp.ne.s32.totalorder %s78, %s92
    %p94 = scmp.eq.s32.totalorder %s26, 0
    %p95 = por %p93, %p94
    %s97 = sadd.s32 %s96, 1
    %p100 = scmp.eq.s32.totalorder %s20, 1
    %p101 = scmp.ne.s32.totalorder %s96, %s98
    %p102 = scmp.eq.s32.totalorder %s20, 0
    %p103 = por %p101, %p102
    %p104 = scmp.ne.s32.totalorder %s96, %s98
    %p105 = scmp.eq.s32.totalorder %s25, 1
    %p106 = por %p104, %p105
    %p107 = scmp.ne.s32.totalorder %s98, %s99
    %p108 = scmp.eq.s32.totalorder %s25, 0
    %p109 = por %p107, %p108
    %p110 = scmp.ne.s32.totalorder %s98, %s99
    %p111 = scmp.eq.s32.totalorder %s26, 1
    %p112 = por %p110, %p111
    %p114 = scmp.ne.s32.totalorder %s99, %s113
    %p115 = scmp.eq.s32.totalorder %s26, 0
    %p116 = por %p114, %p115
    %s118 = sadd.s32 %s117, 1
    %p121 = scmp.eq.s32.totalorder %s20, 1
    %p122 = scmp.ne.s32.totalorder %s117, %s119
    %p123 = scmp.eq.s32.totalorder %s20, 0
    %p124 = por %p122, %p123
    %p125 = scmp.ne.s32.totalorder %s117, %s119
    %p126 = scmp.eq.s32.totalorder %s25, 1
    %p127 = por %p125, %p126
    %p128 = scmp.ne.s32.totalorder %s119, %s120
    %p129 = scmp.eq.s32.totalorder %s25, 0
    %p130 = por %p128, %p129
    %p131 = scmp.ne.s32.totalorder %s119, %s120
    %p132 = scmp.eq.s32.totalorder %s26, 1
    %p133 = por %p131, %p132
    %p135 = scmp.ne.s32.totalorder %s120, %s134
    %p136 = scmp.eq.s32.totalorder %s26, 0
    %p137 = por %p135, %p136
    %s139 = sadd.s32 %s138, 1
    %p142 = scmp.eq.s32.totalorder %s20, 1
    %p143 = scmp.ne.s32.totalorder %s138, %s140
    %p144 = scmp.eq.s32.totalorder %s20, 0
    %p145 = por %p143, %p144
    %p146 = scmp.ne.s32.totalorder %s138, %s140
    %p147 = scmp.eq.s32.totalorder %s25, 1
    %p148 = por %p146, %p147
    %p149 = scmp.ne.s32.totalorder %s140, %s141
    %p150 = scmp.eq.s32.totalorder %s25, 0
    %p151 = por %p149, %p150
    %p152 = scmp.ne.s32.totalorder %s140, %s141
    %p153 = scmp.eq.s32.totalorder %s26, 1
    %p154 = por %p152, %p153
    %p156 = scmp.ne.s32.totalorder %s141, %s155
    %p157 = scmp.eq.s32.totalorder %s26, 0
    %p158 = por %p156, %p157
    %s160 = sadd.s32 %s159, 1
    %p163 = scmp.eq.s32.totalorder %s20, 1
    %p164 = scmp.ne.s32.totalorder %s159, %s161
    %p165 = scmp.eq.s32.totalorder %s20, 0
    %p166 = por %p164, %p165
    %p167 = scmp.ne.s32.totalorder %s159, %s161
    %p168 = scmp.eq.s32.totalorder %s25, 1
    %p169 = por %p167, %p168
    %p170 = scmp.ne.s32.totalorder %s161, %s162
    %p171 = scmp.eq.s32.totalorder %s25, 0
    %p172 = por %p170, %p171
    %p173 = scmp.ne.s32.totalorder %s161, %s162
    %p174 = scmp.eq.s32.totalorder %s26, 1
    %p175 = por %p173, %p174
    %p177 = scmp.ne.s32.totalorder %s162, %s176
    %p178 = scmp.eq.s32.totalorder %s26, 0
    %p179 = por %p177, %p178
    %s181 = sadd.s32 %s180, 1
    %p184 = scmp.eq.s32.totalorder %s20, 1
    %p185 = scmp.ne.s32.totalorder %s180, %s182
    %p186 = scmp.eq.s32.totalorder %s20, 0
    %p187 = por %p185, %p186
    %p188 = scmp.ne.s32.totalorder %s180, %s182
    %p189 = scmp.eq.s32.totalorder %s25, 1
    %p190 = por %p188, %p189
    %p191 = scmp.ne.s32.totalorder %s182, %s183
    %p192 = scmp.eq.s32.totalorder %s25, 0
    %p193 = por %p191, %p192
    %p194 = scmp.ne.s32.totalorder %s182, %s183
    %p195 = scmp.eq.s32.totalorder %s26, 1
    %p196 = por %p194, %p195
    %p198 = scmp.ne.s32.totalorder %s183, %s197
    %p199 = scmp.eq.s32.totalorder %s26, 0
    %p200 = por %p198, %p199
    %s202 = sadd.s32 %s201, 1
    %p205 = scmp.eq.s32.totalorder %s20, 1
    %p206 = scmp.ne.s32.totalorder %s201, %s203
    %p207 = scmp.eq.s32.totalorder %s20, 0
    %p208 = por %p206, %p207
    %p209 = scmp.ne.s32.totalorder %s201, %s203
    %p210 = scmp.eq.s32.totalorder %s25, 1
    %p211 = por %p209, %p210
    %p212 = scmp.ne.s32.totalorder %s203, %s204
    %p213 = scmp.eq.s32.totalorder %s25, 0
    %p214 = por %p212, %p213
    %p215 = scmp.ne.s32.totalorder %s203, %s204
    %p216 = scmp.eq.s32.totalorder %s26, 1
    %p217 = por %p215, %p216
    %p219 = scmp.ne.s32.totalorder %s204, %s218
    %p220 = scmp.eq.s32.totalorder %s26, 0
    %p221 = por %p219, %p220
    %s223 = sadd.s32 %s222, 1
    %p226 = scmp.eq.s32.totalorder %s20, 1
    %p227 = scmp.ne.s32.totalorder %s222, %s224
    %p228 = scmp.eq.s32.totalorder %s20, 0
    %p229 = por %p227, %p228
    %p230 = scmp.ne.s32.totalorder %s222, %s224
    %p231 = scmp.eq.s32.totalorder %s25, 1
    %p232 = por %p230, %p231
    %p233 = scmp.ne.s32.totalorder %s224, %s225
    %p234 = scmp.eq.s32.totalorder %s25, 0
    %p235 = por %p233, %p234
    %p236 = scmp.ne.s32.totalorder %s224, %s225
    %p237 = scmp.eq.s32.totalorder %s26, 1
    %p238 = por %p236, %p237
    %p240 = scmp.ne.s32.totalorder %s225, %s239
    %p241 = scmp.eq.s32.totalorder %s26, 0
    %p242 = por %p240, %p241
    %s244 = sadd.s32 %s243, 1
    %p247 = scmp.eq.s32.totalorder %s20, 1
    %p248 = scmp.ne.s32.totalorder %s243, %s245
    %p249 = scmp.eq.s32.totalorder %s20, 0
    %p250 = por %p248, %p249
    %p251 = scmp.ne.s32.totalorder %s243, %s245
    %p252 = scmp.eq.s32.totalorder %s25, 1
    %p253 = por %p251, %p252
    %p254 = scmp.ne.s32.totalorder %s245, %s246
    %p255 = scmp.eq.s32.totalorder %s25, 0
    %p256 = por %p254, %p255
    %p257 = scmp.ne.s32.totalorder %s245, %s246
    %p258 = scmp.eq.s32.totalorder %s26, 1
    %p259 = por %p257, %p258
    %p261 = scmp.ne.s32.totalorder %s246, %s260
    %p262 = scmp.eq.s32.totalorder %s26, 0
    %p263 = por %p261, %p262
    %s265 = sadd.s32 %s264, 1
    %p268 = scmp.eq.s32.totalorder %s20, 1
    %p269 = scmp.ne.s32.totalorder %s264, %s266
    %p270 = scmp.eq.s32.totalorder %s20, 0
    %p271 = por %p269, %p270
    %p272 = scmp.ne.s32.totalorder %s264, %s266
    %p273 = scmp.eq.s32.totalorder %s25, 1
    %p274 = por %p272, %p273
    %p275 = scmp.ne.s32.totalorder %s266, %s267
    %p276 = scmp.eq.s32.totalorder %s25, 0
    %p277 = por %p275, %p276
    %p278 = scmp.ne.s32.totalorder %s266, %s267
    %p279 = scmp.eq.s32.totalorder %s26, 1
    %p280 = por %p278, %p279
    %p282 = scmp.ne.s32.totalorder %s267, %s281
    %p283 = scmp.eq.s32.totalorder %s26, 0
    %p284 = por %p282, %p283
    %s286 = sadd.s32 %s285, 1
    %p289 = scmp.eq.s32.totalorder %s20, 1
    %p290 = scmp.ne.s32.totalorder %s285, %s287
    %p291 = scmp.eq.s32.totalorder %s20, 0
    %p292 = por %p290, %p291
    %p293 = scmp.ne.s32.totalorder %s285, %s287
    %p294 = scmp.eq.s32.totalorder %s25, 1
    %p295 = por %p293, %p294
    %p296 = scmp.ne.s32.totalorder %s287, %s288
    %p297 = scmp.eq.s32.totalorder %s25, 0
    %p298 = por %p296, %p297
    %p299 = scmp.ne.s32.totalorder %s287, %s288
    %p300 = scmp.eq.s32.totalorder %s26, 1
    %p301 = por %p299, %p300
    %p303 = scmp.ne.s32.totalorder %s288, %s302
    %p304 = scmp.eq.s32.totalorder %s26, 0
    %p305 = por %p303, %p304
    %s307 = sadd.s32 %s306, 1
    %p310 = scmp.eq.s32.totalorder %s20, 1
    %p311 = scmp.ne.s32.totalorder %s306, %s308
    %p312 = scmp.eq.s32.totalorder %s20, 0
    %p313 = por %p311, %p312
    %p314 = scmp.ne.s32.totalorder %s306, %s308
    %p315 = scmp.eq.s32.totalorder %s25, 1
    %p316 = por %p314, %p315
    %p317 = scmp.ne.s32.totalorder %s308, %s309
    %p318 = scmp.eq.s32.totalorder %s25, 0
    %p319 = por %p317, %p318
    %p320 = scmp.ne.s32.totalorder %s308, %s309
    %p321 = scmp.eq.s32.totalorder %s26, 1
    %p322 = por %p320, %p321
    %p324 = scmp.ne.s32.totalorder %s309, %s323
    %p325 = scmp.eq.s32.totalorder %s26, 0
    %p326 = por %p324, %p325
    %s327 = ssub.s32 %s20, %s27
    %p328 = scmp.eq.s32.totalorder %s327, 0
    %s330 = sadd.s32 %s329, 1
    %s331 = scalar_select %p328, %s329, %s330
    %p334 = pneg %p328
    %p335 = scmp.eq.s32.totalorder %s20, 1
    %p336 = por %p334, %p335
    %p337 = scmp.ne.s32.totalorder %s329, %s332
    %p338 = scmp.eq.s32.totalorder %s20, 0
    %p339 = por %p337, %p338
    %p340 = scmp.ne.s32.totalorder %s329, %s332
    %p341 = scmp.eq.s32.totalorder %s25, 1
    %p342 = por %p340, %p341
    %p343 = scmp.ne.s32.totalorder %s332, %s333
    %p344 = scmp.eq.s32.totalorder %s25, 0
    %p345 = por %p343, %p344
    %p346 = scmp.ne.s32.totalorder %s332, %s333
    %p347 = scmp.eq.s32.totalorder %s26, 1
    %p348 = por %p346, %p347
    %p350 = scmp.ne.s32.totalorder %s333, %s349
    %p351 = scmp.eq.s32.totalorder %s26, 0
    %p352 = por %p350, %p351
    %p353 = scmp.le.s32.totalorder 1, %s20
    %p354 = scmp.lt.s32.totalorder %s20, 3
    %p355 = pnand %p353, %p354
    %p356 = pneg %p355
    // Predicated region
    $region9: #{odr_forward_pallas.1} parent=5 // pred_check
      _
    $region10: #{odr_forward_pallas.1} parent=5 // pred_check_branch
      %358 = sbr.rel (%p355) target = $region12
    $region11: #{odr_forward_pallas.1} parent=5 // pred_region
      %s359 = ssub.s32 %s20, 1
      // Predicated region
      $region13: #{odr_forward_pallas.1} parent=11 // pred_check
        %p360 = pneg %p67
      $region14: #{odr_forward_pallas.1} parent=11 // pred_check_branch
        %362 = sbr.rel (%p360) target = $region16
      $region15: #{odr_forward_pallas.1} parent=11 // pred_region
        _
      $region16: #{odr_forward_pallas.1} parent=11 // pred_fallthru
        _
      // Predicated region
      $region17: #{odr_forward_pallas.1} parent=11 // pred_check
        %p363 = pneg %p88
      $region18: #{odr_forward_pallas.1} parent=11 // pred_check_branch
        %365 = sbr.rel (%p363) target = $region20
      $region19: #{odr_forward_pallas.1} parent=11 // pred_region
        _
      $region20: #{odr_forward_pallas.1} parent=11 // pred_fallthru
        _
      // Predicated region
      $region21: #{odr_forward_pallas.1} parent=11 // pred_check
        %p366 = pneg %p109
      $region22: #{odr_forward_pallas.1} parent=11 // pred_check_branch
        %368 = sbr.rel (%p366) target = $region24
      $region23: #{odr_forward_pallas.1} parent=11 // pred_region
        _
      $region24: #{odr_forward_pallas.1} parent=11 // pred_fallthru
        _
      // Predicated region
      $region25: #{odr_forward_pallas.1} parent=11 // pred_check
        %p369 = pneg %p130
      $region26: #{odr_forward_pallas.1} parent=11 // pred_check_branch
        %371 = sbr.rel (%p369) target = $region28
      $region27: #{odr_forward_pallas.1} parent=11 // pred_region
        _
      $region28: #{odr_forward_pallas.1} parent=11 // pred_fallthru
        _
      // Predicated region
      $region29: #{odr_forward_pallas.1} parent=11 // pred_check
        %p372 = pneg %p151
      $region30: #{odr_forward_pallas.1} parent=11 // pred_check_branch
        %374 = sbr.rel (%p372) target = $region32
      $region31: #{odr_forward_pallas.1} parent=11 // pred_region
        _
      $region32: #{odr_forward_pallas.1} parent=11 // pred_fallthru
        _
      // Predicated region
      $region33: #{odr_forward_pallas.1} parent=11 // pred_check
        %p375 = pneg %p172
      $region34: #{odr_forward_pallas.1} parent=11 // pred_check_branch
        %377 = sbr.rel (%p375) target = $region36
      $region35: #{odr_forward_pallas.1} parent=11 // pred_region
        _
      $region36: #{odr_forward_pallas.1} parent=11 // pred_fallthru
        _
      // Predicated region
      $region37: #{odr_forward_pallas.1} parent=11 // pred_check
        %p378 = pneg %p193
      $region38: #{odr_forward_pallas.1} parent=11 // pred_check_branch
        %380 = sbr.rel (%p378) target = $region40
      $region39: #{odr_forward_pallas.1} parent=11 // pred_region
        _
      $region40: #{odr_forward_pallas.1} parent=11 // pred_fallthru
        _
      // Predicated region
      $region41: #{odr_forward_pallas.1} parent=11 // pred_check
        %p381 = pneg %p214
      $region42: #{odr_forward_pallas.1} parent=11 // pred_check_branch
        %383 = sbr.rel (%p381) target = $region44
      $region43: #{odr_forward_pallas.1} parent=11 // pred_region
        _
      $region44: #{odr_forward_pallas.1} parent=11 // pred_fallthru
        _
      // Predicated region
      $region45: #{odr_forward_pallas.1} parent=11 // pred_check
        %p384 = pneg %p235
      $region46: #{odr_forward_pallas.1} parent=11 // pred_check_branch
        %386 = sbr.rel (%p384) target = $region48
      $region47: #{odr_forward_pallas.1} parent=11 // pred_region
        _
      $region48: #{odr_forward_pallas.1} parent=11 // pred_fallthru
        _
      // Predicated region
      $region49: #{odr_forward_pallas.1} parent=11 // pred_check
        %p387 = pneg %p256
      $region50: #{odr_forward_pallas.1} parent=11 // pred_check_branch
        %389 = sbr.rel (%p387) target = $region52
      $region51: #{odr_forward_pallas.1} parent=11 // pred_region
        _
      $region52: #{odr_forward_pallas.1} parent=11 // pred_fallthru
        _
      // Predicated region
      $region53: #{odr_forward_pallas.1} parent=11 // pred_check
        %p390 = pneg %p277
      $region54: #{odr_forward_pallas.1} parent=11 // pred_check_branch
        %392 = sbr.rel (%p390) target = $region56
      $region55: #{odr_forward_pallas.1} parent=11 // pred_region
        _
      $region56: #{odr_forward_pallas.1} parent=11 // pred_fallthru
        _
      // Predicated region
      $region57: #{odr_forward_pallas.1} parent=11 // pred_check
        %p393 = pneg %p298
      $region58: #{odr_forward_pallas.1} parent=11 // pred_check_branch
        %395 = sbr.rel (%p393) target = $region60
      $region59: #{odr_forward_pallas.1} parent=11 // pred_region
        _
      $region60: #{odr_forward_pallas.1} parent=11 // pred_fallthru
        _
      // Predicated region
      $region61: #{odr_forward_pallas.1} parent=11 // pred_check
        %p396 = pneg %p319
      $region62: #{odr_forward_pallas.1} parent=11 // pred_check_branch
        %398 = sbr.rel (%p396) target = $region64
      $region63: #{odr_forward_pallas.1} parent=11 // pred_region
        _
      $region64: #{odr_forward_pallas.1} parent=11 // pred_fallthru
        _
    $region12: #{odr_forward_pallas.1} parent=5 // pred_fallthru
      _
    %p399 = scmp.lt.s32.totalorder %s20, 2
    // Predicated region
    $region65: #{odr_forward_pallas.1} parent=5 // pred_check
      %p400 = pneg %p399
    $region66: #{odr_forward_pallas.1} parent=5 // pred_check_branch
      %402 = sbr.rel (%p400) target = $region68
    $region67: #{odr_forward_pallas.1} parent=5 // pred_region
      // Predicated region
      $region69: #{odr_forward_pallas.1} parent=67 // pred_check
        %p403 = pneg %p40
      $region70: #{odr_forward_pallas.1} parent=67 // pred_check_branch
        %405 = sbr.rel (%p403) target = $region72
      $region71: #{odr_forward_pallas.1} parent=67 // pred_region
        %s406 = smul.u32 16, %s20
        %p407 = scmp.lt.s32.totalorder %s406, 31
        %s408 = scalar_select %p407, %s406, 31
        %s409 = smul.addr %s408, 8
        %s410 = scalar_lea.vmem %s0, %s409
        %s411 = smul.u32 16, %s20
      $region72: #{odr_forward_pallas.1} parent=67 // pred_fallthru
        _
    $region68: #{odr_forward_pallas.1} parent=5 // pred_fallthru
      _
    %p412 = scmp.le.s32.totalorder 1, %s20
    %p413 = scmp.lt.s32.totalorder %s20, 3
    %p414 = pnand %p412, %p413
    %p415 = pneg %p414
    // Predicated region
    $region73: #{odr_forward_pallas.1} parent=5 // pred_check
      _
    $region74: #{odr_forward_pallas.1} parent=5 // pred_check_branch
      %417 = sbr.rel (%p414) target = $region76
    $region75: #{odr_forward_pallas.1} parent=5 // pred_region
      %s418 = ssub.s32 %s20, 1
      %s419 = smul.u32 16, %s25
      %p420 = scmp.lt.s32.totalorder %s419, 31
      %s421 = scalar_select %p420, %s419, 31
      %s422 = smul.addr %s421, 8
      %s423 = scalar_lea.vmem %s0, %s422
      %p424 = pneg %p46
      %p425 = pneg %p43
      %p426 = pneg %p67
      %p427 = pneg %p64
      %p428 = pneg %p88
      %p429 = pneg %p85
      %p430 = pneg %p109
      %p431 = pneg %p106
      %p432 = pneg %p130
      %p433 = pneg %p127
      %p434 = pneg %p151
      %p435 = pneg %p148
      %p436 = pneg %p172
      %p437 = pneg %p169
      %p438 = pneg %p193
      %p439 = pneg %p190
      %p440 = pneg %p214
      %p441 = pneg %p211
      %p442 = pneg %p235
      %p443 = pneg %p232
      %p444 = pneg %p256
      %p445 = pneg %p253
      %p446 = pneg %p277
      %p447 = pneg %p274
      %p448 = pneg %p298
      %p449 = pneg %p295
      %p450 = pneg %p319
      %p451 = pneg %p316
      %p452 = pneg %p345
      %p453 = pneg %p342
      %p454 = scmp.lt.s32.totalorder %s25, 1
      %s455 = scalar_select %p454, %s25, 1
      %s456 = smul.addr %s455, 8
      %s457 = scalar_lea.vmem %s14, %s456
      %s458 = smul.u32 16, %s25
      %p459 = scmp.lt.s32.totalorder %s458, 31
      %s460 = scalar_select %p459, %s458, 31
      %s461 = smul.addr %s460, 8
      %s462 = scalar_lea.vmem %s0, %s461
      %s463 = smul.u32 16, %s25
      %p464 = scmp.lt.s32.totalorder %s25, 1
      %s465 = scalar_select %p464, %s25, 1
      %s466 = smul.addr %s465, 8
      %s467 = scalar_lea.vmem %s14, %s466
      %v469 = vld [vmem:[%s462] sm:$0xff]
      %v470 = vld [vmem:[%s462 + $0x8] sm:$0xff]
      %v471 = vld [vmem:[%s462 + $0x10] sm:$0xff]
      %v472 = vld [vmem:[%s462 + $0x18] sm:$0xff]
      %v473 = vld [vmem:[%s462 + $0x20] sm:$0xff]
      %v474 = vld [vmem:[%s462 + $0x28] sm:$0xff]
      %v475 = vld [vmem:[%s462 + $0x30] sm:$0xff]
      %v476 = vld [vmem:[%s462 + $0x38] sm:$0xff]
      %v477 = vld [vmem:[%s462 + $0x40] sm:$0xff]
      %v478 = vld [vmem:[%s462 + $0x48] sm:$0xff]
      %v479 = vld [vmem:[%s462 + $0x50] sm:$0xff]
      %v480 = vld [vmem:[%s462 + $0x58] sm:$0xff]
      %v481 = vld [vmem:[%s462 + $0x60] sm:$0xff]
      %v482 = vld [vmem:[%s462 + $0x68] sm:$0xff]
      %v483 = vld [vmem:[%s462 + $0x70] sm:$0xff]
      %v484 = vld [vmem:[%s462 + $0x78] sm:$0xff]
      %v485 = vld [vmem:[%s1] sm:$0xff]
      %v486 = vld [vmem:[%s1 + $0x8] sm:$0xff]
      %v487 = vld [vmem:[%s1 + $0x10] sm:$0xff]
      %v488 = vld [vmem:[%s1 + $0x18] sm:$0xff]
      %v489 = vld [vmem:[%s1 + $0x20] sm:$0xff]
      %v490 = vld [vmem:[%s1 + $0x28] sm:$0xff]
      %v491 = vld [vmem:[%s1 + $0x30] sm:$0xff]
      %v492 = vld [vmem:[%s1 + $0x38] sm:$0xff]
      %v493 = vld [vmem:[%s1 + $0x40] sm:$0xff]
      %v494 = vld [vmem:[%s1 + $0x48] sm:$0xff]
      %v495 = vld [vmem:[%s1 + $0x50] sm:$0xff]
      %v496 = vld [vmem:[%s1 + $0x58] sm:$0xff]
      %v497 = vld [vmem:[%s1 + $0x60] sm:$0xff]
      %v498 = vld [vmem:[%s1 + $0x68] sm:$0xff]
      %v499 = vld [vmem:[%s1 + $0x70] sm:$0xff]
      %v500 = vld [vmem:[%s1 + $0x78] sm:$0xff]
      %v501 = vld [vmem:[%s2] sm:$0xff]
      %v502 = vld [vmem:[%s2 + $0x8] sm:$0xff]
      %v503 = vld [vmem:[%s2 + $0x10] sm:$0xff]
      %v504 = vld [vmem:[%s2 + $0x18] sm:$0xff]
      %v505 = vld [vmem:[%s2 + $0x20] sm:$0xff]
      %v506 = vld [vmem:[%s2 + $0x28] sm:$0xff]
      %v507 = vld [vmem:[%s2 + $0x30] sm:$0xff]
      %v508 = vld [vmem:[%s2 + $0x38] sm:$0xff]
      %v509 = vld [vmem:[%s2 + $0x40] sm:$0xff]
      %v510 = vld [vmem:[%s2 + $0x48] sm:$0xff]
      %v511 = vld [vmem:[%s2 + $0x50] sm:$0xff]
      %v512 = vld [vmem:[%s2 + $0x58] sm:$0xff]
      %v513 = vld [vmem:[%s2 + $0x60] sm:$0xff]
      %v514 = vld [vmem:[%s2 + $0x68] sm:$0xff]
      %v515 = vld [vmem:[%s2 + $0x70] sm:$0xff]
      %v516 = vld [vmem:[%s2 + $0x78] sm:$0xff]
      %v517 = vrot.slane %v469, 7
      %v518 = vrot.slane %v470, 7
      %v519 = vrot.slane %v471, 7
      %v520 = vrot.slane %v472, 7
      %v521 = vrot.slane %v473, 7
      %v522 = vrot.slane %v474, 7
      %v523 = vrot.slane %v475, 7
      %v524 = vrot.slane %v476, 7
      %v525 = vrot.slane %v477, 7
      %v526 = vrot.slane %v478, 7
      %v527 = vrot.slane %v479, 7
      %v528 = vrot.slane %v480, 7
      %v529 = vrot.slane %v481, 7
      %v530 = vrot.slane %v482, 7
      %v531 = vrot.slane %v483, 7
      %v532 = vrot.slane %v484, 7
      %v533 = vlaneseq
      %v534 = vshrl.u32 %v533, 7
      %vm535 = vcmp.lt.s32.totalorder %v534, 1
      %v536 = vsel %vm535, %v531, %v532
      %v537 = vsel %vm535, %v530, %v531
      %v538 = vsel %vm535, %v529, %v530
      %v539 = vsel %vm535, %v528, %v529
      %v540 = vsel %vm535, %v527, %v528
      %v541 = vsel %vm535, %v526, %v527
      %v542 = vsel %vm535, %v525, %v526
      %v543 = vsel %vm535, %v524, %v525
      %v544 = vsel %vm535, %v523, %v524
      %v545 = vsel %vm535, %v522, %v523
      %v546 = vsel %vm535, %v521, %v522
      %v547 = vsel %vm535, %v520, %v521
      %v548 = vsel %vm535, %v519, %v520
      %v549 = vsel %vm535, %v518, %v519
      %v550 = vsel %vm535, %v517, %v518
      %v551 = vsel %vm535, %v532, %v517
      %553 = vset.pattern.permute.xlu0 0
      %554 = vperm.xlu0 %553, %v485
      %v555 = vpop.permute.xlu0 %554
      %558 = vset.pattern.permute.xlu0 0
      %559 = vperm.xlu0 %558, %v486
      %v560 = vpop.permute.xlu0 %559
      %563 = vset.pattern.permute.xlu0 0
      %564 = vperm.xlu0 %563, %v487
      %v565 = vpop.permute.xlu0 %564
      %568 = vset.pattern.permute.xlu0 0
      %569 = vperm.xlu0 %568, %v488
      %v570 = vpop.permute.xlu0 %569
      %573 = vset.pattern.permute.xlu0 0
      %574 = vperm.xlu0 %573, %v489
      %v575 = vpop.permute.xlu0 %574
      %578 = vset.pattern.permute.xlu0 0
      %579 = vperm.xlu0 %578, %v490
      %v580 = vpop.permute.xlu0 %579
      %583 = vset.pattern.permute.xlu0 0
      %584 = vperm.xlu0 %583, %v491
      %v585 = vpop.permute.xlu0 %584
      %588 = vset.pattern.permute.xlu0 0
      %589 = vperm.xlu0 %588, %v492
      %v590 = vpop.permute.xlu0 %589
      %593 = vset.pattern.permute.xlu0 0
      %594 = vperm.xlu0 %593, %v493
      %v595 = vpop.permute.xlu0 %594
      %598 = vset.pattern.permute.xlu0 0
      %599 = vperm.xlu0 %598, %v494
      %v600 = vpop.permute.xlu0 %599
      %603 = vset.pattern.permute.xlu0 0
      %604 = vperm.xlu0 %603, %v495
      %v605 = vpop.permute.xlu0 %604
      %608 = vset.pattern.permute.xlu0 0
      %609 = vperm.xlu0 %608, %v496
      %v610 = vpop.permute.xlu0 %609
      %613 = vset.pattern.permute.xlu0 0
      %614 = vperm.xlu0 %613, %v497
      %v615 = vpop.permute.xlu0 %614
      %618 = vset.pattern.permute.xlu0 0
      %619 = vperm.xlu0 %618, %v498
      %v620 = vpop.permute.xlu0 %619
      %623 = vset.pattern.permute.xlu0 0
      %624 = vperm.xlu0 %623, %v499
      %v625 = vpop.permute.xlu0 %624
      %628 = vset.pattern.permute.xlu0 0
      %629 = vperm.xlu0 %628, %v500
      %v630 = vpop.permute.xlu0 %629
      %v632 = vmul.f32 %v551, %v555
      %v633 = vmul.f32 %v550, %v560
      %v634 = vmul.f32 %v549, %v565
      %v635 = vmul.f32 %v548, %v570
      %v636 = vmul.f32 %v547, %v575
      %v637 = vmul.f32 %v546, %v580
      %v638 = vmul.f32 %v545, %v585
      %v639 = vmul.f32 %v544, %v590
      %v640 = vmul.f32 %v543, %v595
      %v641 = vmul.f32 %v542, %v600
      %v642 = vmul.f32 %v541, %v605
      %v643 = vmul.f32 %v540, %v610
      %v644 = vmul.f32 %v539, %v615
      %v645 = vmul.f32 %v538, %v620
      %v646 = vmul.f32 %v537, %v625
      %v647 = vmul.f32 %v536, %v630
      %v648 = vrot.slane %v469, 1
      %v649 = vrot.slane %v470, 1
      %v650 = vrot.slane %v471, 1
      %v651 = vrot.slane %v472, 1
      %v652 = vrot.slane %v473, 1
      %v653 = vrot.slane %v474, 1
      %v654 = vrot.slane %v475, 1
      %v655 = vrot.slane %v476, 1
      %v656 = vrot.slane %v477, 1
      %v657 = vrot.slane %v478, 1
      %v658 = vrot.slane %v479, 1
      %v659 = vrot.slane %v480, 1
      %v660 = vrot.slane %v481, 1
      %v661 = vrot.slane %v482, 1
      %v662 = vrot.slane %v483, 1
      %v663 = vrot.slane %v484, 1
      %vm664 = vcmp.lt.s32.totalorder %v534, 7
      %v665 = vsel %vm664, %v662, %v663
      %v666 = vsel %vm664, %v661, %v662
      %v667 = vsel %vm664, %v660, %v661
      %v668 = vsel %vm664, %v659, %v660
      %v669 = vsel %vm664, %v658, %v659
      %v670 = vsel %vm664, %v657, %v658
      %v671 = vsel %vm664, %v656, %v657
      %v672 = vsel %vm664, %v655, %v656
      %v673 = vsel %vm664, %v654, %v655
      %v674 = vsel %vm664, %v653, %v654
      %v675 = vsel %vm664, %v652, %v653
      %v676 = vsel %vm664, %v651, %v652
      %v677 = vsel %vm664, %v650, %v651
      %v678 = vsel %vm664, %v649, %v650
      %v679 = vsel %vm664, %v648, %v649
      %v680 = vsel %vm664, %v663, %v648
      %682 = vset.pattern.permute.xlu0 0
      %683 = vperm.xlu0 %682, %v501
      %v684 = vpop.permute.xlu0 %683
      %687 = vset.pattern.permute.xlu0 0
      %688 = vperm.xlu0 %687, %v502
      %v689 = vpop.permute.xlu0 %688
      %692 = vset.pattern.permute.xlu0 0
      %693 = vperm.xlu0 %692, %v503
      %v694 = vpop.permute.xlu0 %693
      %697 = vset.pattern.permute.xlu0 0
      %698 = vperm.xlu0 %697, %v504
      %v699 = vpop.permute.xlu0 %698
      %702 = vset.pattern.permute.xlu0 0
      %703 = vperm.xlu0 %702, %v505
      %v704 = vpop.permute.xlu0 %703
      %707 = vset.pattern.permute.xlu0 0
      %708 = vperm.xlu0 %707, %v506
      %v709 = vpop.permute.xlu0 %708
      %712 = vset.pattern.permute.xlu0 0
      %713 = vperm.xlu0 %712, %v507
      %v714 = vpop.permute.xlu0 %713
      %717 = vset.pattern.permute.xlu0 0
      %718 = vperm.xlu0 %717, %v508
      %v719 = vpop.permute.xlu0 %718
      %722 = vset.pattern.permute.xlu0 0
      %723 = vperm.xlu0 %722, %v509
      %v724 = vpop.permute.xlu0 %723
      %727 = vset.pattern.permute.xlu0 0
      %728 = vperm.xlu0 %727, %v510
      %v729 = vpop.permute.xlu0 %728
      %732 = vset.pattern.permute.xlu0 0
      %733 = vperm.xlu0 %732, %v511
      %v734 = vpop.permute.xlu0 %733
      %737 = vset.pattern.permute.xlu0 0
      %738 = vperm.xlu0 %737, %v512
      %v739 = vpop.permute.xlu0 %738
      %742 = vset.pattern.permute.xlu0 0
      %743 = vperm.xlu0 %742, %v513
      %v744 = vpop.permute.xlu0 %743
      %747 = vset.pattern.permute.xlu0 0
      %748 = vperm.xlu0 %747, %v514
      %v749 = vpop.permute.xlu0 %748
      %752 = vset.pattern.permute.xlu0 0
      %753 = vperm.xlu0 %752, %v515
      %v754 = vpop.permute.xlu0 %753
      %757 = vset.pattern.permute.xlu0 0
      %758 = vperm.xlu0 %757, %v516
      %v759 = vpop.permute.xlu0 %758
      %v761 = vmul.f32 %v679, %v684
      %v762 = vmul.f32 %v678, %v689
      %v763 = vmul.f32 %v677, %v694
      %v764 = vmul.f32 %v676, %v699
      %v765 = vmul.f32 %v675, %v704
      %v766 = vmul.f32 %v674, %v709
      %v767 = vmul.f32 %v673, %v714
      %v768 = vmul.f32 %v672, %v719
      %v769 = vmul.f32 %v671, %v724
      %v770 = vmul.f32 %v670, %v729
      %v771 = vmul.f32 %v669, %v734
      %v772 = vmul.f32 %v668, %v739
      %v773 = vmul.f32 %v667, %v744
      %v774 = vmul.f32 %v666, %v749
      %v775 = vmul.f32 %v665, %v754
      %v776 = vmul.f32 %v680, %v759
      %793 = vrot.lane.b32.xlu0 %v469, 72
      %v794 = vpop.permute.xlu0 %793
      %795 = vrot.lane.b32.xlu0 %v470, 72
      %v796 = vpop.permute.xlu0 %795
      %797 = vrot.lane.b32.xlu0 %v471, 72
      %v798 = vpop.permute.xlu0 %797
      %799 = vrot.lane.b32.xlu0 %v472, 72
      %v800 = vpop.permute.xlu0 %799
      %801 = vrot.lane.b32.xlu0 %v473, 72
      %v802 = vpop.permute.xlu0 %801
      %803 = vrot.lane.b32.xlu0 %v474, 72
      %v804 = vpop.permute.xlu0 %803
      %805 = vrot.lane.b32.xlu0 %v475, 72
      %v806 = vpop.permute.xlu0 %805
      %807 = vrot.lane.b32.xlu0 %v476, 72
      %v808 = vpop.permute.xlu0 %807
      %809 = vrot.lane.b32.xlu0 %v477, 72
      %v810 = vpop.permute.xlu0 %809
      %811 = vrot.lane.b32.xlu0 %v478, 72
      %v812 = vpop.permute.xlu0 %811
      %813 = vrot.lane.b32.xlu0 %v479, 72
      %v814 = vpop.permute.xlu0 %813
      %815 = vrot.lane.b32.xlu0 %v480, 72
      %v816 = vpop.permute.xlu0 %815
      %817 = vrot.lane.b32.xlu0 %v481, 72
      %v818 = vpop.permute.xlu0 %817
      %819 = vrot.lane.b32.xlu0 %v482, 72
      %v820 = vpop.permute.xlu0 %819
      %821 = vrot.lane.b32.xlu0 %v483, 72
      %v822 = vpop.permute.xlu0 %821
      %823 = vrot.lane.b32.xlu0 %v484, 72
      %v824 = vpop.permute.xlu0 %823
      %857 = vrot.lane.b32.xlu0 %v761, 16
      %v858 = vpop.permute.xlu0 %857
      %859 = vrot.lane.b32.xlu0 %v762, 16
      %v860 = vpop.permute.xlu0 %859
      %861 = vrot.lane.b32.xlu0 %v763, 16
      %v862 = vpop.permute.xlu0 %861
      %863 = vrot.lane.b32.xlu0 %v764, 16
      %v864 = vpop.permute.xlu0 %863
      %865 = vrot.lane.b32.xlu0 %v765, 16
      %v866 = vpop.permute.xlu0 %865
      %867 = vrot.lane.b32.xlu0 %v766, 16
      %v868 = vpop.permute.xlu0 %867
      %869 = vrot.lane.b32.xlu0 %v767, 16
      %v870 = vpop.permute.xlu0 %869
      %871 = vrot.lane.b32.xlu0 %v768, 16
      %v872 = vpop.permute.xlu0 %871
      %873 = vrot.lane.b32.xlu0 %v769, 16
      %v874 = vpop.permute.xlu0 %873
      %875 = vrot.lane.b32.xlu0 %v770, 16
      %v876 = vpop.permute.xlu0 %875
      %877 = vrot.lane.b32.xlu0 %v771, 16
      %v878 = vpop.permute.xlu0 %877
      %879 = vrot.lane.b32.xlu0 %v772, 16
      %v880 = vpop.permute.xlu0 %879
      %881 = vrot.lane.b32.xlu0 %v773, 16
      %v882 = vpop.permute.xlu0 %881
      %883 = vrot.lane.b32.xlu0 %v774, 16
      %v884 = vpop.permute.xlu0 %883
      %885 = vrot.lane.b32.xlu0 %v775, 16
      %v886 = vpop.permute.xlu0 %885
      %887 = vrot.lane.b32.xlu0 %v776, 16
      %v888 = vpop.permute.xlu0 %887
      %vm905 = vcmask 588800
      %v906 = vsel %vm905, %v632, %v794
      %v907 = vsel %vm905, %v633, %v796
      %v908 = vsel %vm905, %v634, %v798
      %v909 = vsel %vm905, %v635, %v800
      %v910 = vsel %vm905, %v636, %v802
      %v911 = vsel %vm905, %v637, %v804
      %v912 = vsel %vm905, %v638, %v806
      %v913 = vsel %vm905, %v639, %v808
      %v914 = vsel %vm905, %v640, %v810
      %v915 = vsel %vm905, %v641, %v812
      %v916 = vsel %vm905, %v642, %v814
      %v917 = vsel %vm905, %v643, %v816
      %v918 = vsel %vm905, %v644, %v818
      %v919 = vsel %vm905, %v645, %v820
      %v920 = vsel %vm905, %v646, %v822
      %v921 = vsel %vm905, %v647, %v824
      %vm922 = vcmask 130048
      %v923 = vsel %vm922, %v794, %v858
      %v924 = vsel %vm922, %v796, %v860
      %v925 = vsel %vm922, %v798, %v862
      %v926 = vsel %vm922, %v800, %v864
      %v927 = vsel %vm922, %v802, %v866
      %v928 = vsel %vm922, %v804, %v868
      %v929 = vsel %vm922, %v806, %v870
      %v930 = vsel %vm922, %v808, %v872
      %v931 = vsel %vm922, %v810, %v874
      %v932 = vsel %vm922, %v812, %v876
      %v933 = vsel %vm922, %v814, %v878
      %v934 = vsel %vm922, %v816, %v880
      %v935 = vsel %vm922, %v818, %v882
      %v936 = vsel %vm922, %v820, %v884
      %v937 = vsel %vm922, %v822, %v886
      %v938 = vsel %vm922, %v824, %v888
      %v939 = vpack.c.bf16 %v907, %v906
      %v940 = vpack.c.bf16 %v924, %v923
      %v941 = vpack.c.bf16 %v909, %v908
      %v942 = vpack.c.bf16 %v926, %v925
      %v943 = vpack.c.bf16 %v911, %v910
      %v944 = vpack.c.bf16 %v928, %v927
      %v945 = vpack.c.bf16 %v913, %v912
      %v946 = vpack.c.bf16 %v930, %v929
      %v947 = vpack.c.bf16 %v915, %v914
      %v948 = vpack.c.bf16 %v932, %v931
      %v949 = vpack.c.bf16 %v917, %v916
      %v950 = vpack.c.bf16 %v934, %v933
      %v951 = vpack.c.bf16 %v919, %v918
      %v952 = vpack.c.bf16 %v936, %v935
      %v953 = vpack.c.bf16 %v921, %v920
      %v954 = vpack.c.bf16 %v938, %v937
      %v955 = vld [vmem:[%s3] sm:$0xff]
      %v956 = vld [vmem:[%s3 + $0x8] sm:$0xff]
      %v957 = vld [vmem:[%s3 + $0x10] sm:$0xff]
      %v958 = vld [vmem:[%s3 + $0x18] sm:$0xff]
      %v959 = vld [vmem:[%s3 + $0x20] sm:$0xff]
      %v960 = vld [vmem:[%s3 + $0x28] sm:$0xff]
      %v961 = vld [vmem:[%s3 + $0x30] sm:$0xff]
      %v962 = vld [vmem:[%s3 + $0x38] sm:$0xff]
      %v963 = vld [vmem:[%s3 + $0x40] sm:$0xff]
      %v964 = vld [vmem:[%s3 + $0x48] sm:$0xff]
      %v965 = vld [vmem:[%s3 + $0x50] sm:$0xff]
      %v966 = vld [vmem:[%s3 + $0x58] sm:$0xff]
      %v967 = vld [vmem:[%s3 + $0x60] sm:$0xff]
      %v968 = vld [vmem:[%s3 + $0x68] sm:$0xff]
      %v969 = vld [vmem:[%s3 + $0x70] sm:$0xff]
      %v970 = vld [vmem:[%s3 + $0x78] sm:$0xff]
      %v971 = vld [vmem:[%s3 + $0x80] sm:$0xff]
      %v972 = vld [vmem:[%s3 + $0x88] sm:$0xff]
      %v973 = vld [vmem:[%s3 + $0x90] sm:$0xff]
      %v974 = vld [vmem:[%s3 + $0x98] sm:$0xff]
      %v975 = vld [vmem:[%s3 + $0xa0] sm:$0xff]
      %v976 = vld [vmem:[%s3 + $0xa8] sm:$0xff]
      %v977 = vld [vmem:[%s3 + $0xb0] sm:$0xff]
      %v978 = vld [vmem:[%s3 + $0xb8] sm:$0xff]
      %v979 = vld [vmem:[%s3 + $0xc0] sm:$0xff]
      %v980 = vld [vmem:[%s3 + $0xc8] sm:$0xff]
      %v981 = vld [vmem:[%s3 + $0xd0] sm:$0xff]
      %v982 = vld [vmem:[%s4] sm:$0x3]
      %v984 = vlaneseq
      %v985 = vshrl.u32 %v984, 7
      %v986 = vsub.s32 0, %v985
      %v987 = vrot.slane %v982, %v986
      %v988 = vlaneseq
      %v989 = vshrl.u32 %v988, 7
      %v990 = vsub.s32 1, %v989
      %v991 = vrot.slane %v982, %v990
      %v1021 = vunpack.c.l.b16 %v955
      %v1022 = vunpack.c.h.b16 %v955
      %v1023 = vunpack.c.l.b16 %v956
      %v1024 = vunpack.c.h.b16 %v956
      %v1025 = vunpack.c.l.b16 %v957
      %v1026 = vunpack.c.h.b16 %v957
      %v1027 = vunpack.c.l.b16 %v958
      %v1028 = vunpack.c.h.b16 %v958
      %v1029 = vunpack.c.l.b16 %v959
      %v1030 = vunpack.c.h.b16 %v959
      %v1031 = vunpack.c.l.b16 %v960
      %v1032 = vunpack.c.h.b16 %v960
      %v1033 = vunpack.c.l.b16 %v961
      %v1034 = vunpack.c.h.b16 %v961
      %v1035 = vunpack.c.l.b16 %v962
      %v1036 = vunpack.c.h.b16 %v962
      %v1037 = vunpack.c.l.b16 %v963
      %v1038 = vunpack.c.h.b16 %v963
      %v1039 = vunpack.c.l.b16 %v964
      %v1040 = vunpack.c.h.b16 %v964
      %v1041 = vunpack.c.l.b16 %v965
      %v1042 = vunpack.c.h.b16 %v965
      %v1043 = vunpack.c.l.b16 %v966
      %v1044 = vunpack.c.h.b16 %v966
      %v1045 = vunpack.c.l.b16 %v967
      %v1046 = vunpack.c.h.b16 %v967
      %v1047 = vunpack.c.l.b16 %v968
      %v1048 = vunpack.c.h.b16 %v968
      %v1049 = vunpack.c.l.b16 %v969
      %v1050 = vunpack.c.h.b16 %v969
      %v1051 = vunpack.c.l.b16 %v970
      %v1052 = vunpack.c.h.b16 %v970
      %v1053 = vunpack.c.l.b16 %v971
      %v1054 = vunpack.c.h.b16 %v971
      %v1055 = vunpack.c.l.b16 %v972
      %v1056 = vunpack.c.h.b16 %v972
      %v1057 = vunpack.c.l.b16 %v973
      %v1058 = vunpack.c.h.b16 %v973
      %v1059 = vunpack.c.l.b16 %v974
      %v1060 = vunpack.c.h.b16 %v974
      %v1061 = vunpack.c.l.b16 %v975
      %v1062 = vunpack.c.h.b16 %v975
      %v1063 = vunpack.c.l.b16 %v976
      %v1064 = vunpack.c.h.b16 %v976
      %v1065 = vunpack.c.l.b16 %v977
      %v1066 = vunpack.c.h.b16 %v977
      %v1067 = vunpack.c.l.b16 %v978
      %v1068 = vunpack.c.h.b16 %v978
      %v1069 = vunpack.c.l.b16 %v979
      %v1070 = vunpack.c.h.b16 %v979
      %v1071 = vunpack.c.l.b16 %v980
      %v1072 = vunpack.c.h.b16 %v980
      %v1073 = vunpack.c.l.b16 %v981
      %v1074 = vunpack.c.h.b16 %v981
      %v1075 = vpack.c.b16 %v1023, %v1021
      %v1076 = vpack.c.b16 %v1024, %v1022
      %v1077 = vpack.c.b16 %v1027, %v1025
      %v1078 = vpack.c.b16 %v1028, %v1026
      %v1079 = vpack.c.b16 %v1031, %v1029
      %v1080 = vpack.c.b16 %v1032, %v1030
      %v1081 = vpack.c.b16 %v1035, %v1033
      %v1082 = vpack.c.b16 %v1036, %v1034
      %v1083 = vpack.c.b16 %v1039, %v1037
      %v1084 = vpack.c.b16 %v1040, %v1038
      %v1085 = vpack.c.b16 %v1043, %v1041
      %v1086 = vpack.c.b16 %v1044, %v1042
      %v1087 = vpack.c.b16 %v1047, %v1045
      %v1088 = vpack.c.b16 %v1048, %v1046
      %v1089 = vpack.c.b16 %v1051, %v1049
      %v1090 = vpack.c.b16 %v1052, %v1050
      %v1091 = vpack.c.b16 %v1055, %v1053
      %v1092 = vpack.c.b16 %v1056, %v1054
      %v1093 = vpack.c.b16 %v1059, %v1057
      %v1094 = vpack.c.b16 %v1060, %v1058
      %v1095 = vpack.c.b16 %v1063, %v1061
      %v1096 = vpack.c.b16 %v1064, %v1062
      %v1097 = vpack.c.b16 %v1067, %v1065
      %v1098 = vpack.c.b16 %v1068, %v1066
      %v1099 = vpack.c.b16 %v1071, %v1069
      %v1100 = vpack.c.b16 %v1072, %v1070
      %v1101 = vpack.c.b16 %v1073, %v1073
      %v1102 = vpack.c.b16 %v1074, %v1074
      %vm1129 = vcmask 719872
      %v1131 = vsel %vm1129, %v940, 0
      %v1134 = vsel %vm1129, %v942, 0
      %v1137 = vsel %vm1129, %v944, 0
      %v1140 = vsel %vm1129, %v946, 0
      %v1143 = vsel %vm1129, %v948, 0
      %v1146 = vsel %vm1129, %v950, 0
      %v1149 = vsel %vm1129, %v952, 0
      %v1152 = vsel %vm1129, %v954, 0
      %vm1154 = vcmask 1043456
      %v1156 = vsel %vm1154, %v1101, 0
      %v1159 = vsel %vm1154, %v1102, 0
      %1161 = vmatprep.subr.bf16.mxu0 %v1076
      %1162 = vmatpush1.bf16.msra.mxu0 %v1075
      %1163 = vmatprep.subr.bf16.mxu0 %v1078
      %1164 = vmatpush1.bf16.msra.mxu0 %v1077
      %1165 = vmatprep.subr.bf16.mxu0 %v1080
      %1166 = vmatpush1.bf16.msra.mxu0 %v1079
      %1167 = vmatprep.subr.bf16.mxu0 %v1082
      %1168 = vmatpush1.bf16.msra.mxu0 %v1081
      %1169 = vmatprep.subr.bf16.mxu0 %v1084
      %1170 = vmatpush1.bf16.msra.mxu0 %v1083
      %1171 = vmatprep.subr.bf16.mxu0 %v1086
      %1172 = vmatpush1.bf16.msra.mxu0 %v1085
      %1173 = vmatprep.subr.bf16.mxu0 %v1088
      %1174 = vmatpush1.bf16.msra.mxu0 %v1087
      %1175 = vmatprep.subr.bf16.mxu0 %v1090
      %1176 = vmatpush1.bf16.msra.mxu0 %v1089
      %1177 = vmatprep.subr.bf16.mxu0 %v1092
      %1178 = vmatpush1.bf16.msra.mxu0 %v1091
      %1179 = vmatprep.subr.bf16.mxu0 %v1094
      %1180 = vmatpush1.bf16.msra.mxu0 %v1093
      %1181 = vmatprep.subr.bf16.mxu0 %v1096
      %1182 = vmatpush1.bf16.msra.mxu0 %v1095
      %1183 = vmatprep.subr.bf16.mxu0 %v1098
      %1184 = vmatpush1.bf16.msra.mxu0 %v1097
      %1185 = vmatprep.subr.bf16.mxu0 %v1100
      %1186 = vmatpush1.bf16.msra.mxu0 %v1099
      %1187 = vmatprep.subr.bf16.mxu0 %v1159
      %1188 = vmatpush1.bf16.msra.mxu0 %v1156
      %1189 = vmatprep.subr.bf16.mxu0 0
      %1190 = vmatpush1.bf16.msra.mxu0 0
      %1191 = vmatprep.subr.bf16.mxu0 0
      %1192 = vmatpush1.bf16.msra.mxu0 0
      %1193 = vmatprep.mubr.bf16.mxu0 %v1131
      %1194 = vmatmul.mubr.bf16.gmra.mrb[0].mxu0 %v939
      %v1195 = vpop.f32.mrb[0].mxu0
      %v1196 = vadd.f32 %v987, %v1195
      %v1197 = vpop.f32.mrb[0].mxu0
      %v1198 = vadd.f32 %v991, %v1197
      %v1199 = vpop.f32.mrb[0].mxu0
      %v1200 = vadd.f32 %v987, %v1199
      %v1201 = vpop.f32.mrb[0].mxu0
      %v1202 = vadd.f32 %v991, %v1201
      %1203 = vmatprep.mubr.bf16.mxu0 %v1134
      %1204 = vmatmul.mubr.bf16.gmra.mrb[0].mxu0 %v941
      %v1205 = vpop.f32.mrb[0].mxu0
      %v1206 = vadd.f32 %v987, %v1205
      %v1207 = vpop.f32.mrb[0].mxu0
      %v1208 = vadd.f32 %v991, %v1207
      %v1209 = vpop.f32.mrb[0].mxu0
      %v1210 = vadd.f32 %v987, %v1209
      %v1211 = vpop.f32.mrb[0].mxu0
      %v1212 = vadd.f32 %v991, %v1211
      %1213 = vmatprep.mubr.bf16.mxu0 %v1137
      %1214 = vmatmul.mubr.bf16.gmra.mrb[0].mxu0 %v943
      %v1215 = vpop.f32.mrb[0].mxu0
      %v1216 = vadd.f32 %v987, %v1215
      %v1217 = vpop.f32.mrb[0].mxu0
      %v1218 = vadd.f32 %v991, %v1217
      %v1219 = vpop.f32.mrb[0].mxu0
      %v1220 = vadd.f32 %v987, %v1219
      %v1221 = vpop.f32.mrb[0].mxu0
      %v1222 = vadd.f32 %v991, %v1221
      %1223 = vmatprep.mubr.bf16.mxu0 %v1140
      %1224 = vmatmul.mubr.bf16.gmra.mrb[0].mxu0 %v945
      %v1225 = vpop.f32.mrb[0].mxu0
      %v1226 = vadd.f32 %v987, %v1225
      %v1227 = vpop.f32.mrb[0].mxu0
      %v1228 = vadd.f32 %v991, %v1227
      %v1229 = vpop.f32.mrb[0].mxu0
      %v1230 = vadd.f32 %v987, %v1229
      %v1231 = vpop.f32.mrb[0].mxu0
      %v1232 = vadd.f32 %v991, %v1231
      %1233 = vmatprep.mubr.bf16.mxu0 %v1143
      %1234 = vmatmul.mubr.bf16.gmra.mrb[0].mxu0 %v947
      %v1235 = vpop.f32.mrb[0].mxu0
      %v1236 = vadd.f32 %v987, %v1235
      %v1237 = vpop.f32.mrb[0].mxu0
      %v1238 = vadd.f32 %v991, %v1237
      %v1239 = vpop.f32.mrb[0].mxu0
      %v1240 = vadd.f32 %v987, %v1239
      %v1241 = vpop.f32.mrb[0].mxu0
      %v1242 = vadd.f32 %v991, %v1241
      %1243 = vmatprep.mubr.bf16.mxu0 %v1146
      %1244 = vmatmul.mubr.bf16.gmra.mrb[0].mxu0 %v949
      %v1245 = vpop.f32.mrb[0].mxu0
      %v1246 = vadd.f32 %v987, %v1245
      %v1247 = vpop.f32.mrb[0].mxu0
      %v1248 = vadd.f32 %v991, %v1247
      %v1249 = vpop.f32.mrb[0].mxu0
      %v1250 = vadd.f32 %v987, %v1249
      %v1251 = vpop.f32.mrb[0].mxu0
      %v1252 = vadd.f32 %v991, %v1251
      %1253 = vmatprep.mubr.bf16.mxu0 %v1149
      %1254 = vmatmul.mubr.bf16.gmra.mrb[0].mxu0 %v951
      %v1255 = vpop.f32.mrb[0].mxu0
      %v1256 = vadd.f32 %v987, %v1255
      %v1257 = vpop.f32.mrb[0].mxu0
      %v1258 = vadd.f32 %v991, %v1257
      %v1259 = vpop.f32.mrb[0].mxu0
      %v1260 = vadd.f32 %v987, %v1259
      %v1261 = vpop.f32.mrb[0].mxu0
      %v1262 = vadd.f32 %v991, %v1261
      %1263 = vmatprep.mubr.bf16.mxu0 %v1152
      %1264 = vmatmul.mubr.bf16.gmra.mrb[0].mxu0 %v953
      %v1265 = vpop.f32.mrb[0].mxu0
      %v1266 = vadd.f32 %v987, %v1265
      %v1267 = vpop.f32.mrb[0].mxu0
      %v1268 = vadd.f32 %v991, %v1267
      %v1269 = vpop.f32.mrb[0].mxu0
      %v1270 = vadd.f32 %v987, %v1269
      %v1271 = vpop.f32.mrb[0].mxu0
      %v1272 = vadd.f32 %v991, %v1271
      %1273 = vdwg.mxu0
      %v1274 = vmax.f32 %v1196, 0.0
      %v1275 = vmax.f32 %v1198, 0.0
      %v1276 = vmax.f32 %v1200, 0.0
      %v1277 = vmax.f32 %v1202, 0.0
      %v1278 = vmax.f32 %v1206, 0.0
      %v1279 = vmax.f32 %v1208, 0.0
      %v1280 = vmax.f32 %v1210, 0.0
      %v1281 = vmax.f32 %v1212, 0.0
      %v1282 = vmax.f32 %v1216, 0.0
      %v1283 = vmax.f32 %v1218, 0.0
      %v1284 = vmax.f32 %v1220, 0.0
      %v1285 = vmax.f32 %v1222, 0.0
      %v1286 = vmax.f32 %v1226, 0.0
      %v1287 = vmax.f32 %v1228, 0.0
      %v1288 = vmax.f32 %v1230, 0.0
      %v1289 = vmax.f32 %v1232, 0.0
      %v1290 = vmax.f32 %v1236, 0.0
      %v1291 = vmax.f32 %v1238, 0.0
      %v1292 = vmax.f32 %v1240, 0.0
      %v1293 = vmax.f32 %v1242, 0.0
      %v1294 = vmax.f32 %v1246, 0.0
      %v1295 = vmax.f32 %v1248, 0.0
      %v1296 = vmax.f32 %v1250, 0.0
      %v1297 = vmax.f32 %v1252, 0.0
      %v1298 = vmax.f32 %v1256, 0.0
      %v1299 = vmax.f32 %v1258, 0.0
      %v1300 = vmax.f32 %v1260, 0.0
      %v1301 = vmax.f32 %v1262, 0.0
      %v1302 = vmax.f32 %v1266, 0.0
      %v1303 = vmax.f32 %v1268, 0.0
      %v1304 = vmax.f32 %v1270, 0.0
      %v1305 = vmax.f32 %v1272, 0.0
      %v1306 = vrot.slane %v1274, 7
      %v1307 = vrot.slane %v1275, 7
      %v1308 = vrot.slane %v1276, 7
      %v1309 = vrot.slane %v1277, 7
      %v1310 = vrot.slane %v1278, 7
      %v1311 = vrot.slane %v1279, 7
      %v1312 = vrot.slane %v1280, 7
      %v1313 = vrot.slane %v1281, 7
      %v1314 = vrot.slane %v1282, 7
      %v1315 = vrot.slane %v1283, 7
      %v1316 = vrot.slane %v1284, 7
      %v1317 = vrot.slane %v1285, 7
      %v1318 = vrot.slane %v1286, 7
      %v1319 = vrot.slane %v1287, 7
      %v1320 = vrot.slane %v1288, 7
      %v1321 = vrot.slane %v1289, 7
      %v1322 = vrot.slane %v1290, 7
      %v1323 = vrot.slane %v1291, 7
      %v1324 = vrot.slane %v1292, 7
      %v1325 = vrot.slane %v1293, 7
      %v1326 = vrot.slane %v1294, 7
      %v1327 = vrot.slane %v1295, 7
      %v1328 = vrot.slane %v1296, 7
      %v1329 = vrot.slane %v1297, 7
      %v1330 = vrot.slane %v1298, 7
      %v1331 = vrot.slane %v1299, 7
      %v1332 = vrot.slane %v1300, 7
      %v1333 = vrot.slane %v1301, 7
      %v1334 = vrot.slane %v1302, 7
      %v1335 = vrot.slane %v1303, 7
      %v1336 = vrot.slane %v1304, 7
      %v1337 = vrot.slane %v1305, 7
      %v1338 = vsel %vm535, %v1334, %v1336
      %v1339 = vsel %vm535, %v1335, %v1337
      %v1340 = vsel %vm535, %v1332, %v1334
      %v1341 = vsel %vm535, %v1333, %v1335
      %v1342 = vsel %vm535, %v1330, %v1332
      %v1343 = vsel %vm535, %v1331, %v1333
      %v1344 = vsel %vm535, %v1328, %v1330
      %v1345 = vsel %vm535, %v1329, %v1331
      %v1346 = vsel %vm535, %v1326, %v1328
      %v1347 = vsel %vm535, %v1327, %v1329
      %v1348 = vsel %vm535, %v1324, %v1326
      %v1349 = vsel %vm535, %v1325, %v1327
      %v1350 = vsel %vm535, %v1322, %v1324
      %v1351 = vsel %vm535, %v1323, %v1325
      %v1352 = vsel %vm535, %v1320, %v1322
      %v1353 = vsel %vm535, %v1321, %v1323
      %v1354 = vsel %vm535, %v1318, %v1320
      %v1355 = vsel %vm535, %v1319, %v1321
      %v1356 = vsel %vm535, %v1316, %v1318
      %v1357 = vsel %vm535, %v1317, %v1319
      %v1358 = vsel %vm535, %v1314, %v1316
      %v1359 = vsel %vm535, %v1315, %v1317
      %v1360 = vsel %vm535, %v1312, %v1314
      %v1361 = vsel %vm535, %v1313, %v1315
      %v1362 = vsel %vm535, %v1310, %v1312
      %v1363 = vsel %vm535, %v1311, %v1313
      %v1364 = vsel %vm535, %v1308, %v1310
      %v1365 = vsel %vm535, %v1309, %v1311
      %v1366 = vsel %vm535, %v1306, %v1308
      %v1367 = vsel %vm535, %v1307, %v1309
      %v1368 = vsel %vm535, %v1336, %v1306
      %v1369 = vsel %vm535, %v1337, %v1307
      %v1370 = vmul.f32 %v1368, %v555
      %v1371 = vmul.f32 %v1369, %v555
      %v1372 = vmul.f32 %v1366, %v560
      %v1373 = vmul.f32 %v1367, %v560
      %v1374 = vmul.f32 %v1364, %v565
      %v1375 = vmul.f32 %v1365, %v565
      %v1376 = vmul.f32 %v1362, %v570
      %v1377 = vmul.f32 %v1363, %v570
      %v1378 = vmul.f32 %v1360, %v575
      %v1379 = vmul.f32 %v1361, %v575
      %v1380 = vmul.f32 %v1358, %v580
      %v1381 = vmul.f32 %v1359, %v580
      %v1382 = vmul.f32 %v1356, %v585
      %v1383 = vmul.f32 %v1357, %v585
      %v1384 = vmul.f32 %v1354, %v590
      %v1385 = vmul.f32 %v1355, %v590
      %v1386 = vmul.f32 %v1352, %v595
      %v1387 = vmul.f32 %v1353, %v595
      %v1388 = vmul.f32 %v1350, %v600
      %v1389 = vmul.f32 %v1351, %v600
      %v1390 = vmul.f32 %v1348, %v605
      %v1391 = vmul.f32 %v1349, %v605
      %v1392 = vmul.f32 %v1346, %v610
      %v1393 = vmul.f32 %v1347, %v610
      %v1394 = vmul.f32 %v1344, %v615
      %v1395 = vmul.f32 %v1345, %v615
      %v1396 = vmul.f32 %v1342, %v620
      %v1397 = vmul.f32 %v1343, %v620
      %v1398 = vmul.f32 %v1340, %v625
      %v1399 = vmul.f32 %v1341, %v625
      %v1400 = vmul.f32 %v1338, %v630
      %v1401 = vmul.f32 %v1339, %v630
      %v1402 = vrot.slane %v1274, 1
      %v1403 = vrot.slane %v1275, 1
      %v1404 = vrot.slane %v1276, 1
      %v1405 = vrot.slane %v1277, 1
      %v1406 = vrot.slane %v1278, 1
      %v1407 = vrot.slane %v1279, 1
      %v1408 = vrot.slane %v1280, 1
      %v1409 = vrot.slane %v1281, 1
      %v1410 = vrot.slane %v1282, 1
      %v1411 = vrot.slane %v1283, 1
      %v1412 = vrot.slane %v1284, 1
      %v1413 = vrot.slane %v1285, 1
      %v1414 = vrot.slane %v1286, 1
      %v1415 = vrot.slane %v1287, 1
      %v1416 = vrot.slane %v1288, 1
      %v1417 = vrot.slane %v1289, 1
      %v1418 = vrot.slane %v1290, 1
      %v1419 = vrot.slane %v1291, 1
      %v1420 = vrot.slane %v1292, 1
      %v1421 = vrot.slane %v1293, 1
      %v1422 = vrot.slane %v1294, 1
      %v1423 = vrot.slane %v1295, 1
      %v1424 = vrot.slane %v1296, 1
      %v1425 = vrot.slane %v1297, 1
      %v1426 = vrot.slane %v1298, 1
      %v1427 = vrot.slane %v1299, 1
      %v1428 = vrot.slane %v1300, 1
      %v1429 = vrot.slane %v1301, 1
      %v1430 = vrot.slane %v1302, 1
      %v1431 = vrot.slane %v1303, 1
      %v1432 = vrot.slane %v1304, 1
      %v1433 = vrot.slane %v1305, 1
      %v1434 = vsel %vm664, %v1430, %v1432
      %v1435 = vsel %vm664, %v1431, %v1433
      %v1436 = vsel %vm664, %v1428, %v1430
      %v1437 = vsel %vm664, %v1429, %v1431
      %v1438 = vsel %vm664, %v1426, %v1428
      %v1439 = vsel %vm664, %v1427, %v1429
      %v1440 = vsel %vm664, %v1424, %v1426
      %v1441 = vsel %vm664, %v1425, %v1427
      %v1442 = vsel %vm664, %v1422, %v1424
      %v1443 = vsel %vm664, %v1423, %v1425
      %v1444 = vsel %vm664, %v1420, %v1422
      %v1445 = vsel %vm664, %v1421, %v1423
      %v1446 = vsel %vm664, %v1418, %v1420
      %v1447 = vsel %vm664, %v1419, %v1421
      %v1448 = vsel %vm664, %v1416, %v1418
      %v1449 = vsel %vm664, %v1417, %v1419
      %v1450 = vsel %vm664, %v1414, %v1416
      %v1451 = vsel %vm664, %v1415, %v1417
      %v1452 = vsel %vm664, %v1412, %v1414
      %v1453 = vsel %vm664, %v1413, %v1415
      %v1454 = vsel %vm664, %v1410, %v1412
      %v1455 = vsel %vm664, %v1411, %v1413
      %v1456 = vsel %vm664, %v1408, %v1410
      %v1457 = vsel %vm664, %v1409, %v1411
      %v1458 = vsel %vm664, %v1406, %v1408
      %v1459 = vsel %vm664, %v1407, %v1409
      %v1460 = vsel %vm664, %v1404, %v1406
      %v1461 = vsel %vm664, %v1405, %v1407
      %v1462 = vsel %vm664, %v1402, %v1404
      %v1463 = vsel %vm664, %v1403, %v1405
      %v1464 = vsel %vm664, %v1432, %v1402
      %v1465 = vsel %vm664, %v1433, %v1403
      %v1466 = vmul.f32 %v1462, %v684
      %v1467 = vmul.f32 %v1463, %v684
      %v1468 = vmul.f32 %v1460, %v689
      %v1469 = vmul.f32 %v1461, %v689
      %v1470 = vmul.f32 %v1458, %v694
      %v1471 = vmul.f32 %v1459, %v694
      %v1472 = vmul.f32 %v1456, %v699
      %v1473 = vmul.f32 %v1457, %v699
      %v1474 = vmul.f32 %v1454, %v704
      %v1475 = vmul.f32 %v1455, %v704
      %v1476 = vmul.f32 %v1452, %v709
      %v1477 = vmul.f32 %v1453, %v709
      %v1478 = vmul.f32 %v1450, %v714
      %v1479 = vmul.f32 %v1451, %v714
      %v1480 = vmul.f32 %v1448, %v719
      %v1481 = vmul.f32 %v1449, %v719
      %v1482 = vmul.f32 %v1446, %v724
      %v1483 = vmul.f32 %v1447, %v724
      %v1484 = vmul.f32 %v1444, %v729
      %v1485 = vmul.f32 %v1445, %v729
      %v1486 = vmul.f32 %v1442, %v734
      %v1487 = vmul.f32 %v1443, %v734
      %v1488 = vmul.f32 %v1440, %v739
      %v1489 = vmul.f32 %v1441, %v739
      %v1490 = vmul.f32 %v1438, %v744
      %v1491 = vmul.f32 %v1439, %v744
      %v1492 = vmul.f32 %v1436, %v749
      %v1493 = vmul.f32 %v1437, %v749
      %v1494 = vmul.f32 %v1434, %v754
      %v1495 = vmul.f32 %v1435, %v754
      %v1496 = vmul.f32 %v1464, %v759
      %v1497 = vmul.f32 %v1465, %v759
      %1530 = vrot.lane.b32.xlu0 %v1274, 16
      %v1531 = vpop.permute.xlu0 %1530
      %1532 = vrot.lane.b32.xlu0 %v1275, 16
      %v1533 = vpop.permute.xlu0 %1532
      %1534 = vrot.lane.b32.xlu0 %v1276, 16
      %v1535 = vpop.permute.xlu0 %1534
      %1536 = vrot.lane.b32.xlu0 %v1277, 16
      %v1537 = vpop.permute.xlu0 %1536
      %1538 = vrot.lane.b32.xlu0 %v1278, 16
      %v1539 = vpop.permute.xlu0 %1538
      %1540 = vrot.lane.b32.xlu0 %v1279, 16
      %v1541 = vpop.permute.xlu0 %1540
      %1542 = vrot.lane.b32.xlu0 %v1280, 16
      %v1543 = vpop.permute.xlu0 %1542
      %1544 = vrot.lane.b32.xlu0 %v1281, 16
      %v1545 = vpop.permute.xlu0 %1544
      %1546 = vrot.lane.b32.xlu0 %v1282, 16
      %v1547 = vpop.permute.xlu0 %1546
      %1548 = vrot.lane.b32.xlu0 %v1283, 16
      %v1549 = vpop.permute.xlu0 %1548
      %1550 = vrot.lane.b32.xlu0 %v1284, 16
      %v1551 = vpop.permute.xlu0 %1550
      %1552 = vrot.lane.b32.xlu0 %v1285, 16
      %v1553 = vpop.permute.xlu0 %1552
      %1554 = vrot.lane.b32.xlu0 %v1286, 16
      %v1555 = vpop.permute.xlu0 %1554
      %1556 = vrot.lane.b32.xlu0 %v1287, 16
      %v1557 = vpop.permute.xlu0 %1556
      %1558 = vrot.lane.b32.xlu0 %v1288, 16
      %v1559 = vpop.permute.xlu0 %1558
      %1560 = vrot.lane.b32.xlu0 %v1289, 16
      %v1561 = vpop.permute.xlu0 %1560
      %1562 = vrot.lane.b32.xlu0 %v1290, 16
      %v1563 = vpop.permute.xlu0 %1562
      %1564 = vrot.lane.b32.xlu0 %v1291, 16
      %v1565 = vpop.permute.xlu0 %1564
      %1566 = vrot.lane.b32.xlu0 %v1292, 16
      %v1567 = vpop.permute.xlu0 %1566
      %1568 = vrot.lane.b32.xlu0 %v1293, 16
      %v1569 = vpop.permute.xlu0 %1568
      %1570 = vrot.lane.b32.xlu0 %v1294, 16
      %v1571 = vpop.permute.xlu0 %1570
      %1572 = vrot.lane.b32.xlu0 %v1295, 16
      %v1573 = vpop.permute.xlu0 %1572
      %1574 = vrot.lane.b32.xlu0 %v1296, 16
      %v1575 = vpop.permute.xlu0 %1574
      %1576 = vrot.lane.b32.xlu0 %v1297, 16
      %v1577 = vpop.permute.xlu0 %1576
      %1578 = vrot.lane.b32.xlu0 %v1298, 16
      %v1579 = vpop.permute.xlu0 %1578
      %1580 = vrot.lane.b32.xlu0 %v1299, 16
      %v1581 = vpop.permute.xlu0 %1580
      %1582 = vrot.lane.b32.xlu0 %v1300, 16
      %v1583 = vpop.permute.xlu0 %1582
      %1584 = vrot.lane.b32.xlu0 %v1301, 16
      %v1585 = vpop.permute.xlu0 %1584
      %1586 = vrot.lane.b32.xlu0 %v1302, 16
      %v1587 = vpop.permute.xlu0 %1586
      %1588 = vrot.lane.b32.xlu0 %v1303, 16
      %v1589 = vpop.permute.xlu0 %1588
      %1590 = vrot.lane.b32.xlu0 %v1304, 16
      %v1591 = vpop.permute.xlu0 %1590
      %1592 = vrot.lane.b32.xlu0 %v1305, 16
      %v1593 = vpop.permute.xlu0 %1592
      %v1594 = vsel %vm922, %v1531, %v1533
      %v1595 = vsel %vm922, %v1535, %v1537
      %v1596 = vsel %vm922, %v1539, %v1541
      %v1597 = vsel %vm922, %v1543, %v1545
      %v1598 = vsel %vm922, %v1547, %v1549
      %v1599 = vsel %vm922, %v1551, %v1553
      %v1600 = vsel %vm922, %v1555, %v1557
      %v1601 = vsel %vm922, %v1559, %v1561
      %v1602 = vsel %vm922, %v1563, %v1565
      %v1603 = vsel %vm922, %v1567, %v1569
      %v1604 = vsel %vm922, %v1571, %v1573
      %v1605 = vsel %vm922, %v1575, %v1577
      %v1606 = vsel %vm922, %v1579, %v1581
      %v1607 = vsel %vm922, %v1583, %v1585
      %v1608 = vsel %vm922, %v1587, %v1589
      %v1609 = vsel %vm922, %v1591, %v1593
      %1674 = vrot.lane.b32.xlu0 %v1466, 32
      %v1675 = vpop.permute.xlu0 %1674
      %1676 = vrot.lane.b32.xlu0 %v1467, 32
      %v1677 = vpop.permute.xlu0 %1676
      %1678 = vrot.lane.b32.xlu0 %v1468, 32
      %v1679 = vpop.permute.xlu0 %1678
      %1680 = vrot.lane.b32.xlu0 %v1469, 32
      %v1681 = vpop.permute.xlu0 %1680
      %1682 = vrot.lane.b32.xlu0 %v1470, 32
      %v1683 = vpop.permute.xlu0 %1682
      %1684 = vrot.lane.b32.xlu0 %v1471, 32
      %v1685 = vpop.permute.xlu0 %1684
      %1686 = vrot.lane.b32.xlu0 %v1472, 32
      %v1687 = vpop.permute.xlu0 %1686
      %1688 = vrot.lane.b32.xlu0 %v1473, 32
      %v1689 = vpop.permute.xlu0 %1688
      %1690 = vrot.lane.b32.xlu0 %v1474, 32
      %v1691 = vpop.permute.xlu0 %1690
      %1692 = vrot.lane.b32.xlu0 %v1475, 32
      %v1693 = vpop.permute.xlu0 %1692
      %1694 = vrot.lane.b32.xlu0 %v1476, 32
      %v1695 = vpop.permute.xlu0 %1694
      %1696 = vrot.lane.b32.xlu0 %v1477, 32
      %v1697 = vpop.permute.xlu0 %1696
      %1698 = vrot.lane.b32.xlu0 %v1478, 32
      %v1699 = vpop.permute.xlu0 %1698
      %1700 = vrot.lane.b32.xlu0 %v1479, 32
      %v1701 = vpop.permute.xlu0 %1700
      %1702 = vrot.lane.b32.xlu0 %v1480, 32
      %v1703 = vpop.permute.xlu0 %1702
      %1704 = vrot.lane.b32.xlu0 %v1481, 32
      %v1705 = vpop.permute.xlu0 %1704
      %1706 = vrot.lane.b32.xlu0 %v1482, 32
      %v1707 = vpop.permute.xlu0 %1706
      %1708 = vrot.lane.b32.xlu0 %v1483, 32
      %v1709 = vpop.permute.xlu0 %1708
      %1710 = vrot.lane.b32.xlu0 %v1484, 32
      %v1711 = vpop.permute.xlu0 %1710
      %1712 = vrot.lane.b32.xlu0 %v1485, 32
      %v1713 = vpop.permute.xlu0 %1712
      %1714 = vrot.lane.b32.xlu0 %v1486, 32
      %v1715 = vpop.permute.xlu0 %1714
      %1716 = vrot.lane.b32.xlu0 %v1487, 32
      %v1717 = vpop.permute.xlu0 %1716
      %1718 = vrot.lane.b32.xlu0 %v1488, 32
      %v1719 = vpop.permute.xlu0 %1718
      %1720 = vrot.lane.b32.xlu0 %v1489, 32
      %v1721 = vpop.permute.xlu0 %1720
      %1722 = vrot.lane.b32.xlu0 %v1490, 32
      %v1723 = vpop.permute.xlu0 %1722
      %1724 = vrot.lane.b32.xlu0 %v1491, 32
      %v1725 = vpop.permute.xlu0 %1724
      %1726 = vrot.lane.b32.xlu0 %v1492, 32
      %v1727 = vpop.permute.xlu0 %1726
      %1728 = vrot.lane.b32.xlu0 %v1493, 32
      %v1729 = vpop.permute.xlu0 %1728
      %1730 = vrot.lane.b32.xlu0 %v1494, 32
      %v1731 = vpop.permute.xlu0 %1730
      %1732 = vrot.lane.b32.xlu0 %v1495, 32
      %v1733 = vpop.permute.xlu0 %1732
      %1734 = vrot.lane.b32.xlu0 %v1496, 32
      %v1735 = vpop.permute.xlu0 %1734
      %1736 = vrot.lane.b32.xlu0 %v1497, 32
      %v1737 = vpop.permute.xlu0 %1736
      %vm1738 = vcmask 261120
      %v1739 = vsel %vm1738, %v1675, %v1677
      %v1740 = vsel %vm1738, %v1679, %v1681
      %v1741 = vsel %vm1738, %v1683, %v1685
      %v1742 = vsel %vm1738, %v1687, %v1689
      %v1743 = vsel %vm1738, %v1691, %v1693
      %v1744 = vsel %vm1738, %v1695, %v1697
      %v1745 = vsel %vm1738, %v1699, %v1701
      %v1746 = vsel %vm1738, %v1703, %v1705
      %v1747 = vsel %vm1738, %v1707, %v1709
      %v1748 = vsel %vm1738, %v1711, %v1713
      %v1749 = vsel %vm1738, %v1715, %v1717
      %v1750 = vsel %vm1738, %v1719, %v1721
      %v1751 = vsel %vm1738, %v1723, %v1725
      %v1752 = vsel %vm1738, %v1727, %v1729
      %v1753 = vsel %vm1738, %v1731, %v1733
      %v1754 = vsel %vm1738, %v1735, %v1737
      %v1787 = vsel %vm922, %v1371, %v1531
      %v1788 = vsel %vm922, %v1373, %v1535
      %v1789 = vsel %vm922, %v1375, %v1539
      %v1790 = vsel %vm922, %v1377, %v1543
      %v1791 = vsel %vm922, %v1379, %v1547
      %v1792 = vsel %vm922, %v1381, %v1551
      %v1793 = vsel %vm922, %v1383, %v1555
      %v1794 = vsel %vm922, %v1385, %v1559
      %v1795 = vsel %vm922, %v1387, %v1563
      %v1796 = vsel %vm922, %v1389, %v1567
      %v1797 = vsel %vm922, %v1391, %v1571
      %v1798 = vsel %vm922, %v1393, %v1575
      %v1799 = vsel %vm922, %v1395, %v1579
      %v1800 = vsel %vm922, %v1397, %v1583
      %v1801 = vsel %vm922, %v1399, %v1587
      %v1802 = vsel %vm922, %v1401, %v1591
      %v1803 = vsel %vm1738, %v1594, %v1675
      %v1804 = vsel %vm1738, %v1595, %v1679
      %v1805 = vsel %vm1738, %v1596, %v1683
      %v1806 = vsel %vm1738, %v1597, %v1687
      %v1807 = vsel %vm1738, %v1598, %v1691
      %v1808 = vsel %vm1738, %v1599, %v1695
      %v1809 = vsel %vm1738, %v1600, %v1699
      %v1810 = vsel %vm1738, %v1601, %v1703
      %v1811 = vsel %vm1738, %v1602, %v1707
      %v1812 = vsel %vm1738, %v1603, %v1711
      %v1813 = vsel %vm1738, %v1604, %v1715
      %v1814 = vsel %vm1738, %v1605, %v1719
      %v1815 = vsel %vm1738, %v1606, %v1723
      %v1816 = vsel %vm1738, %v1607, %v1727
      %v1817 = vsel %vm1738, %v1608, %v1731
      %v1818 = vsel %vm1738, %v1609, %v1735
      %v1819 = vpack.c.bf16 %v1372, %v1370
      %v1820 = vpack.c.bf16 %v1788, %v1787
      %v1821 = vpack.c.bf16 %v1804, %v1803
      %v1822 = vpack.c.bf16 %v1740, %v1739
      %v1823 = vpack.c.bf16 %v1376, %v1374
      %v1824 = vpack.c.bf16 %v1790, %v1789
      %v1825 = vpack.c.bf16 %v1806, %v1805
      %v1826 = vpack.c.bf16 %v1742, %v1741
      %v1827 = vpack.c.bf16 %v1380, %v1378
      %v1828 = vpack.c.bf16 %v1792, %v1791
      %v1829 = vpack.c.bf16 %v1808, %v1807
      %v1830 = vpack.c.bf16 %v1744, %v1743
      %v1831 = vpack.c.bf16 %v1384, %v1382
      %v1832 = vpack.c.bf16 %v1794, %v1793
      %v1833 = vpack.c.bf16 %v1810, %v1809
      %v1834 = vpack.c.bf16 %v1746, %v1745
      %v1835 = vpack.c.bf16 %v1388, %v1386
      %v1836 = vpack.c.bf16 %v1796, %v1795
      %v1837 = vpack.c.bf16 %v1812, %v1811
      %v1838 = vpack.c.bf16 %v1748, %v1747
      %v1839 = vpack.c.bf16 %v1392, %v1390
      %v1840 = vpack.c.bf16 %v1798, %v1797
      %v1841 = vpack.c.bf16 %v1814, %v1813
      %v1842 = vpack.c.bf16 %v1750, %v1749
      %v1843 = vpack.c.bf16 %v1396, %v1394
      %v1844 = vpack.c.bf16 %v1800, %v1799
      %v1845 = vpack.c.bf16 %v1816, %v1815
      %v1846 = vpack.c.bf16 %v1752, %v1751
      %v1847 = vpack.c.bf16 %v1400, %v1398
      %v1848 = vpack.c.bf16 %v1802, %v1801
      %v1849 = vpack.c.bf16 %v1818, %v1817
      %v1850 = vpack.c.bf16 %v1754, %v1753
      %v1851 = vld [vmem:[%s5] sm:$0xff]
      %v1852 = vld [vmem:[%s5 + $0x8] sm:$0xf]
      %v1853 = vld [vmem:[%s5 + $0xc] sm:$0xff]
      %v1854 = vld [vmem:[%s5 + $0x14] sm:$0xf]
      %v1855 = vld [vmem:[%s5 + $0x18] sm:$0xff]
      %v1856 = vld [vmem:[%s5 + $0x20] sm:$0xf]
      %v1857 = vld [vmem:[%s5 + $0x24] sm:$0xff]
      %v1858 = vld [vmem:[%s5 + $0x2c] sm:$0xf]
      %v1859 = vld [vmem:[%s5 + $0x30] sm:$0xff]
      %v1860 = vld [vmem:[%s5 + $0x38] sm:$0xf]
      %v1861 = vld [vmem:[%s5 + $0x3c] sm:$0xff]
      %v1862 = vld [vmem:[%s5 + $0x44] sm:$0xf]
      %v1863 = vld [vmem:[%s5 + $0x48] sm:$0xff]
      %v1864 = vld [vmem:[%s5 + $0x50] sm:$0xf]
      %v1865 = vld [vmem:[%s5 + $0x54] sm:$0xff]
      %v1866 = vld [vmem:[%s5 + $0x5c] sm:$0xf]
      %v1867 = vld [vmem:[%s5 + $0x60] sm:$0xff]
      %v1868 = vld [vmem:[%s5 + $0x68] sm:$0xf]
      %v1869 = vld [vmem:[%s5 + $0x6c] sm:$0xff]
      %v1870 = vld [vmem:[%s5 + $0x74] sm:$0xf]
      %v1871 = vld [vmem:[%s5 + $0x78] sm:$0xff]
      %v1872 = vld [vmem:[%s5 + $0x80] sm:$0xf]
      %v1873 = vld [vmem:[%s5 + $0x84] sm:$0xff]
      %v1874 = vld [vmem:[%s5 + $0x8c] sm:$0xf]
      %v1875 = vld [vmem:[%s5 + $0x90] sm:$0xff]
      %v1876 = vld [vmem:[%s5 + $0x98] sm:$0xf]
      %v1877 = vld [vmem:[%s5 + $0x9c] sm:$0xff]
      %v1878 = vld [vmem:[%s5 + $0xa4] sm:$0xf]
      %v1879 = vld [vmem:[%s5 + $0xa8] sm:$0xff]
      %v1880 = vld [vmem:[%s5 + $0xb0] sm:$0xf]
      %v1881 = vld [vmem:[%s5 + $0xb4] sm:$0xff]
      %v1882 = vld [vmem:[%s5 + $0xbc] sm:$0xf]
      %v1883 = vld [vmem:[%s5 + $0xc0] sm:$0xff]
      %v1884 = vld [vmem:[%s5 + $0xc8] sm:$0xf]
      %v1885 = vld [vmem:[%s5 + $0xcc] sm:$0xff]
      %v1886 = vld [vmem:[%s5 + $0xd4] sm:$0xf]
      %v1887 = vld [vmem:[%s5 + $0xd8] sm:$0xff]
      %v1888 = vld [vmem:[%s5 + $0xe0] sm:$0xf]
      %v1889 = vld [vmem:[%s5 + $0xe4] sm:$0xff]
      %v1890 = vld [vmem:[%s5 + $0xec] sm:$0xf]
      %v1891 = vld [vmem:[%s5 + $0xf0] sm:$0xff]
      %v1892 = vld [vmem:[%s5 + $0xf8] sm:$0xf]
      %v1893 = vld [vmem:[%s5 + $0xfc] sm:$0xff]
      %v1894 = vld [vmem:[%s5 + $0x104] sm:$0xf]
      %v1895 = vld [vmem:[%s5 + $0x108] sm:$0xff]
      %v1896 = vld [vmem:[%s5 + $0x110] sm:$0xf]
      %v1897 = vld [vmem:[%s5 + $0x114] sm:$0xff]
      %v1898 = vld [vmem:[%s5 + $0x11c] sm:$0xf]
      %v1899 = vld [vmem:[%s5 + $0x120] sm:$0xff]
      %v1900 = vld [vmem:[%s5 + $0x128] sm:$0xf]
      %v1901 = vld [vmem:[%s5 + $0x12c] sm:$0xff]
      %v1902 = vld [vmem:[%s5 + $0x134] sm:$0xf]
      %v1903 = vld [vmem:[%s5 + $0x138] sm:$0xff]
      %v1904 = vld [vmem:[%s5 + $0x140] sm:$0xf]
      %v1905 = vld [vmem:[%s5 + $0x144] sm:$0xff]
      %v1906 = vld [vmem:[%s5 + $0x14c] sm:$0xf]
      %v1907 = vld [vmem:[%s5 + $0x150] sm:$0xff]
      %v1908 = vld [vmem:[%s5 + $0x158] sm:$0xf]
      %v1909 = vld [vmem:[%s5 + $0x15c] sm:$0xff]
      %v1910 = vld [vmem:[%s5 + $0x164] sm:$0xf]
      %v1911 = vld [vmem:[%s5 + $0x168] sm:$0xff]
      %v1912 = vld [vmem:[%s5 + $0x170] sm:$0xf]
      %v1913 = vld [vmem:[%s5 + $0x174] sm:$0xff]
      %v1914 = vld [vmem:[%s5 + $0x17c] sm:$0xf]
      %v1915 = vld [vmem:[%s5 + $0x180] sm:$0xff]
      %v1916 = vld [vmem:[%s5 + $0x188] sm:$0xf]
      %v1917 = vld [vmem:[%s5 + $0x18c] sm:$0xff]
      %v1918 = vld [vmem:[%s5 + $0x194] sm:$0xf]
      %v1919 = vld [vmem:[%s5 + $0x198] sm:$0xff]
      %v1920 = vld [vmem:[%s5 + $0x1a0] sm:$0xf]
      %v1921 = vld [vmem:[%s5 + $0x1a4] sm:$0xff]
      %v1922 = vld [vmem:[%s5 + $0x1ac] sm:$0xf]
      %v1923 = vld [vmem:[%s5 + $0x1b0] sm:$0xff]
      %v1924 = vld [vmem:[%s5 + $0x1b8] sm:$0xf]
      %v1925 = vld [vmem:[%s5 + $0x1bc] sm:$0xff]
      %v1926 = vld [vmem:[%s5 + $0x1c4] sm:$0xf]
      %v1927 = vld [vmem:[%s5 + $0x1c8] sm:$0xff]
      %v1928 = vld [vmem:[%s5 + $0x1d0] sm:$0xf]
      %v1929 = vld [vmem:[%s5 + $0x1d4] sm:$0xff]
      %v1930 = vld [vmem:[%s5 + $0x1dc] sm:$0xf]
      %v1931 = vld [vmem:[%s5 + $0x1e0] sm:$0xff]
      %v1932 = vld [vmem:[%s5 + $0x1e8] sm:$0xf]
      %v1933 = vld [vmem:[%s5 + $0x1ec] sm:$0xff]
      %v1934 = vld [vmem:[%s5 + $0x1f4] sm:$0xf]
      %v1935 = vld [vmem:[%s5 + $0x1f8] sm:$0xff]
      %v1936 = vld [vmem:[%s5 + $0x200] sm:$0xf]
      %v1937 = vld [vmem:[%s5 + $0x204] sm:$0xff]
      %v1938 = vld [vmem:[%s5 + $0x20c] sm:$0xf]
      %v1939 = vld [vmem:[%s5 + $0x210] sm:$0xff]
      %v1940 = vld [vmem:[%s5 + $0x218] sm:$0xf]
      %v1941 = vld [vmem:[%s5 + $0x21c] sm:$0xff]
      %v1942 = vld [vmem:[%s5 + $0x224] sm:$0xf]
      %v1943 = vld [vmem:[%s5 + $0x228] sm:$0xff]
      %v1944 = vld [vmem:[%s5 + $0x230] sm:$0xf]
      %v1945 = vld [vmem:[%s5 + $0x234] sm:$0xff]
      %v1946 = vld [vmem:[%s5 + $0x23c] sm:$0xf]
      %v1947 = vld [vmem:[%s5 + $0x240] sm:$0xff]
      %v1948 = vld [vmem:[%s5 + $0x248] sm:$0xf]
      %v1949 = vld [vmem:[%s5 + $0x24c] sm:$0xff]
      %v1950 = vld [vmem:[%s5 + $0x254] sm:$0xf]
      %v1951 = vld [vmem:[%s5 + $0x258] sm:$0xff]
      %v1952 = vld [vmem:[%s5 + $0x260] sm:$0xf]
      %v1953 = vld [vmem:[%s5 + $0x264] sm:$0xff]
      %v1954 = vld [vmem:[%s5 + $0x26c] sm:$0xf]
      %v1955 = vld [vmem:[%s5 + $0x270] sm:$0xff]
      %v1956 = vld [vmem:[%s5 + $0x278] sm:$0xf]
      %v1957 = vld [vmem:[%s5 + $0x27c] sm:$0xff]
      %v1958 = vld [vmem:[%s5 + $0x284] sm:$0xf]
      %v1959 = vld [vmem:[%s6] sm:$0x7]
      %v1961 = vlaneseq
      %v1962 = vshrl.u32 %v1961, 7
      %v1963 = vsub.s32 0, %v1962
      %v1964 = vrot.slane %v1959, %v1963
      %v1965 = vlaneseq
      %v1966 = vshrl.u32 %v1965, 7
      %v1967 = vsub.s32 1, %v1966
      %v1968 = vrot.slane %v1959, %v1967
      %v1969 = vlaneseq
      %v1970 = vshrl.u32 %v1969, 7
      %v1971 = vsub.s32 2, %v1970
      %v1972 = vrot.slane %v1959, %v1971
      %v2084 = vunpack.c.l.b16 %v1851
      %v2085 = vunpack.c.h.b16 %v1851
      %v2086 = vunpack.c.l.b16 %v1852
      %v2087 = vunpack.c.l.b16 %v1853
      %v2088 = vunpack.c.h.b16 %v1853
      %v2089 = vunpack.c.l.b16 %v1854
      %v2090 = vunpack.c.l.b16 %v1855
      %v2091 = vunpack.c.h.b16 %v1855
      %v2092 = vunpack.c.l.b16 %v1856
      %v2093 = vunpack.c.l.b16 %v1857
      %v2094 = vunpack.c.h.b16 %v1857
      %v2095 = vunpack.c.l.b16 %v1858
      %v2096 = vunpack.c.l.b16 %v1859
      %v2097 = vunpack.c.h.b16 %v1859
      %v2098 = vunpack.c.l.b16 %v1860
      %v2099 = vunpack.c.l.b16 %v1861
      %v2100 = vunpack.c.h.b16 %v1861
      %v2101 = vunpack.c.l.b16 %v1862
      %v2102 = vunpack.c.l.b16 %v1863
      %v2103 = vunpack.c.h.b16 %v1863
      %v2104 = vunpack.c.l.b16 %v1864
      %v2105 = vunpack.c.l.b16 %v1865
      %v2106 = vunpack.c.h.b16 %v1865
      %v2107 = vunpack.c.l.b16 %v1866
      %v2108 = vunpack.c.l.b16 %v1867
      %v2109 = vunpack.c.h.b16 %v1867
      %v2110 = vunpack.c.l.b16 %v1868
      %v2111 = vunpack.c.l.b16 %v1869
      %v2112 = vunpack.c.h.b16 %v1869
      %v2113 = vunpack.c.l.b16 %v1870
      %v2114 = vunpack.c.l.b16 %v1871
      %v2115 = vunpack.c.h.b16 %v1871
      %v2116 = vunpack.c.l.b16 %v1872
      %v2117 = vunpack.c.l.b16 %v1873
      %v2118 = vunpack.c.h.b16 %v1873
      %v2119 = vunpack.c.l.b16 %v1874
      %v2120 = vunpack.c.l.b16 %v1875
      %v2121 = vunpack.c.h.b16 %v1875
      %v2122 = vunpack.c.l.b16 %v1876
      %v2123 = vunpack.c.l.b16 %v1877
      %v2124 = vunpack.c.h.b16 %v1877
      %v2125 = vunpack.c.l.b16 %v1878
      %v2126 = vunpack.c.l.b16 %v1879
      %v2127 = vunpack.c.h.b16 %v1879
      %v2128 = vunpack.c.l.b16 %v1880
      %v2129 = vunpack.c.l.b16 %v1881
      %v2130 = vunpack.c.h.b16 %v1881
      %v2131 = vunpack.c.l.b16 %v1882
      %v2132 = vunpack.c.l.b16 %v1883
      %v2133 = vunpack.c.h.b16 %v1883
      %v2134 = vunpack.c.l.b16 %v1884
      %v2135 = vunpack.c.l.b16 %v1885
      %v2136 = vunpack.c.h.b16 %v1885
      %v2137 = vunpack.c.l.b16 %v1886
      %v2138 = vunpack.c.l.b16 %v1887
      %v2139 = vunpack.c.h.b16 %v1887
      %v2140 = vunpack.c.l.b16 %v1888
      %v2141 = vunpack.c.l.b16 %v1889
      %v2142 = vunpack.c.h.b16 %v1889
      %v2143 = vunpack.c.l.b16 %v1890
      %v2144 = vunpack.c.l.b16 %v1891
      %v2145 = vunpack.c.h.b16 %v1891
      %v2146 = vunpack.c.l.b16 %v1892
      %v2147 = vunpack.c.l.b16 %v1893
      %v2148 = vunpack.c.h.b16 %v1893
      %v2149 = vunpack.c.l.b16 %v1894
      %v2150 = vunpack.c.l.b16 %v1895
      %v2151 = vunpack.c.h.b16 %v1895
      %v2152 = vunpack.c.l.b16 %v1896
      %v2153 = vunpack.c.l.b16 %v1897
      %v2154 = vunpack.c.h.b16 %v1897
      %v2155 = vunpack.c.l.b16 %v1898
      %v2156 = vunpack.c.l.b16 %v1899
      %v2157 = vunpack.c.h.b16 %v1899
      %v2158 = vunpack.c.l.b16 %v1900
      %v2159 = vunpack.c.l.b16 %v1901
      %v2160 = vunpack.c.h.b16 %v1901
      %v2161 = vunpack.c.l.b16 %v1902
      %v2162 = vunpack.c.l.b16 %v1903
      %v2163 = vunpack.c.h.b16 %v1903
      %v2164 = vunpack.c.l.b16 %v1904
      %v2165 = vunpack.c.l.b16 %v1905
      %v2166 = vunpack.c.h.b16 %v1905
      %v2167 = vunpack.c.l.b16 %v1906
      %v2168 = vunpack.c.l.b16 %v1907
      %v2169 = vunpack.c.h.b16 %v1907
      %v2170 = vunpack.c.l.b16 %v1908
      %v2171 = vunpack.c.l.b16 %v1909
      %v2172 = vunpack.c.h.b16 %v1909
      %v2173 = vunpack.c.l.b16 %v1910
      %v2174 = vunpack.c.l.b16 %v1911
      %v2175 = vunpack.c.h.b16 %v1911
      %v2176 = vunpack.c.l.b16 %v1912
      %v2177 = vunpack.c.l.b16 %v1913
      %v2178 = vunpack.c.h.b16 %v1913
      %v2179 = vunpack.c.l.b16 %v1914
      %v2180 = vunpack.c.l.b16 %v1915
      %v2181 = vunpack.c.h.b16 %v1915
      %v2182 = vunpack.c.l.b16 %v1916
      %v2183 = vunpack.c.l.b16 %v1917
      %v2184 = vunpack.c.h.b16 %v1917
      %v2185 = vunpack.c.l.b16 %v1918
      %v2186 = vunpack.c.l.b16 %v1919
      %v2187 = vunpack.c.h.b16 %v1919
      %v2188 = vunpack.c.l.b16 %v1920
      %v2189 = vunpack.c.l.b16 %v1921
      %v2190 = vunpack.c.h.b16 %v1921
      %v2191 = vunpack.c.l.b16 %v1922
      %v2192 = vunpack.c.l.b16 %v1923
      %v2193 = vunpack.c.h.b16 %v1923
      %v2194 = vunpack.c.l.b16 %v1924
      %v2195 = vunpack.c.l.b16 %v1925
      %v2196 = vunpack.c.h.b16 %v1925
      %v2197 = vunpack.c.l.b16 %v1926
      %v2198 = vunpack.c.l.b16 %v1927
      %v2199 = vunpack.c.h.b16 %v1927
      %v2200 = vunpack.c.l.b16 %v1928
      %v2201 = vunpack.c.l.b16 %v1929
      %v2202 = vunpack.c.h.b16 %v1929
      %v2203 = vunpack.c.l.b16 %v1930
      %v2204 = vunpack.c.l.b16 %v1931
      %v2205 = vunpack.c.h.b16 %v1931
      %v2206 = vunpack.c.l.b16 %v1932
      %v2207 = vunpack.c.l.b16 %v1933
      %v2208 = vunpack.c.h.b16 %v1933
      %v2209 = vunpack.c.l.b16 %v1934
      %v2210 = vunpack.c.l.b16 %v1935
      %v2211 = vunpack.c.h.b16 %v1935
      %v2212 = vunpack.c.l.b16 %v1936
      %v2213 = vunpack.c.l.b16 %v1937
      %v2214 = vunpack.c.h.b16 %v1937
      %v2215 = vunpack.c.l.b16 %v1938
      %v2216 = vunpack.c.l.b16 %v1939
      %v2217 = vunpack.c.h.b16 %v1939
      %v2218 = vunpack.c.l.b16 %v1940
      %v2219 = vunpack.c.l.b16 %v1941
      %v2220 = vunpack.c.h.b16 %v1941
      %v2221 = vunpack.c.l.b16 %v1942
      %v2222 = vunpack.c.l.b16 %v1943
      %v2223 = vunpack.c.h.b16 %v1943
      %v2224 = vunpack.c.l.b16 %v1944
      %v2225 = vunpack.c.l.b16 %v1945
      %v2226 = vunpack.c.h.b16 %v1945
      %v2227 = vunpack.c.l.b16 %v1946
      %v2228 = vunpack.c.l.b16 %v1947
      %v2229 = vunpack.c.h.b16 %v1947
      %v2230 = vunpack.c.l.b16 %v1948
      %v2231 = vunpack.c.l.b16 %v1949
      %v2232 = vunpack.c.h.b16 %v1949
      %v2233 = vunpack.c.l.b16 %v1950
      %v2234 = vunpack.c.l.b16 %v1951
      %v2235 = vunpack.c.h.b16 %v1951
      %v2236 = vunpack.c.l.b16 %v1952
      %v2237 = vunpack.c.l.b16 %v1953
      %v2238 = vunpack.c.h.b16 %v1953
      %v2239 = vunpack.c.l.b16 %v1954
      %v2240 = vunpack.c.l.b16 %v1955
      %v2241 = vunpack.c.h.b16 %v1955
      %v2242 = vunpack.c.l.b16 %v1956
      %v2243 = vunpack.c.l.b16 %v1957
      %v2244 = vunpack.c.h.b16 %v1957
      %v2245 = vunpack.c.l.b16 %v1958
      %v2246 = vpack.c.b16 %v2087, %v2084
      %v2247 = vpack.c.b16 %v2088, %v2085
      %v2248 = vpack.c.b16 %v2089, %v2086
      %v2249 = vpack.c.b16 %v2093, %v2090
      %v2250 = vpack.c.b16 %v2094, %v2091
      %v2251 = vpack.c.b16 %v2095, %v2092
      %v2252 = vpack.c.b16 %v2099, %v2096
      %v2253 = vpack.c.b16 %v2100, %v2097
      %v2254 = vpack.c.b16 %v2101, %v2098
      %v2255 = vpack.c.b16 %v2105, %v2102
      %v2256 = vpack.c.b16 %v2106, %v2103
      %v2257 = vpack.c.b16 %v2107, %v2104
      %v2258 = vpack.c.b16 %v2111, %v2108
      %v2259 = vpack.c.b16 %v2112, %v2109
      %v2260 = vpack.c.b16 %v2113, %v2110
      %v2261 = vpack.c.b16 %v2117, %v2114
      %v2262 = vpack.c.b16 %v2118, %v2115
      %v2263 = vpack.c.b16 %v2119, %v2116
      %v2264 = vpack.c.b16 %v2123, %v2120
      %v2265 = vpack.c.b16 %v2124, %v2121
      %v2266 = vpack.c.b16 %v2125, %v2122
      %v2267 = vpack.c.b16 %v2129, %v2126
      %v2268 = vpack.c.b16 %v2130, %v2127
      %v2269 = vpack.c.b16 %v2131, %v2128
      %v2270 = vpack.c.b16 %v2135, %v2132
      %v2271 = vpack.c.b16 %v2136, %v2133
      %v2272 = vpack.c.b16 %v2137, %v2134
      %v2273 = vpack.c.b16 %v2141, %v2138
      %v2274 = vpack.c.b16 %v2142, %v2139
      %v2275 = vpack.c.b16 %v2143, %v2140
      %v2276 = vpack.c.b16 %v2147, %v2144
      %v2277 = vpack.c.b16 %v2148, %v2145
      %v2278 = vpack.c.b16 %v2149, %v2146
      %v2279 = vpack.c.b16 %v2153, %v2150
      %v2280 = vpack.c.b16 %v2154, %v2151
      %v2281 = vpack.c.b16 %v2155, %v2152
      %v2282 = vpack.c.b16 %v2159, %v2156
      %v2283 = vpack.c.b16 %v2160, %v2157
      %v2284 = vpack.c.b16 %v2161, %v2158
      %v2285 = vpack.c.b16 %v2165, %v2162
      %v2286 = vpack.c.b16 %v2166, %v2163
      %v2287 = vpack.c.b16 %v2167, %v2164
      %v2288 = vpack.c.b16 %v2171, %v2168
      %v2289 = vpack.c.b16 %v2172, %v2169
      %v2290 = vpack.c.b16 %v2173, %v2170
      %v2291 = vpack.c.b16 %v2177, %v2174
      %v2292 = vpack.c.b16 %v2178, %v2175
      %v2293 = vpack.c.b16 %v2179, %v2176
      %v2294 = vpack.c.b16 %v2183, %v2180
      %v2295 = vpack.c.b16 %v2184, %v2181
      %v2296 = vpack.c.b16 %v2185, %v2182
      %v2297 = vpack.c.b16 %v2189, %v2186
      %v2298 = vpack.c.b16 %v2190, %v2187
      %v2299 = vpack.c.b16 %v2191, %v2188
      %v2300 = vpack.c.b16 %v2195, %v2192
      %v2301 = vpack.c.b16 %v2196, %v2193
      %v2302 = vpack.c.b16 %v2197, %v2194
      %v2303 = vpack.c.b16 %v2201, %v2198
      %v2304 = vpack.c.b16 %v2202, %v2199
      %v2305 = vpack.c.b16 %v2203, %v2200
      %v2306 = vpack.c.b16 %v2207, %v2204
      %v2307 = vpack.c.b16 %v2208, %v2205
      %v2308 = vpack.c.b16 %v2209, %v2206
      %v2309 = vpack.c.b16 %v2213, %v2210
      %v2310 = vpack.c.b16 %v2214, %v2211
      %v2311 = vpack.c.b16 %v2215, %v2212
      %v2312 = vpack.c.b16 %v2219, %v2216
      %v2313 = vpack.c.b16 %v2220, %v2217
      %v2314 = vpack.c.b16 %v2221, %v2218
      %v2315 = vpack.c.b16 %v2225, %v2222
      %v2316 = vpack.c.b16 %v2226, %v2223
      %v2317 = vpack.c.b16 %v2227, %v2224
      %v2318 = vpack.c.b16 %v2231, %v2228
      %v2319 = vpack.c.b16 %v2232, %v2229
      %v2320 = vpack.c.b16 %v2233, %v2230
      %v2321 = vpack.c.b16 %v2237, %v2234
      %v2322 = vpack.c.b16 %v2238, %v2235
      %v2323 = vpack.c.b16 %v2239, %v2236
      %v2324 = vpack.c.b16 %v2243, %v2240
      %v2325 = vpack.c.b16 %v2244, %v2241
      %v2326 = vpack.c.b16 %v2245, %v2242
      %vm2408 = vcmask 392192
      %v2410 = vsel %vm2408, %v1822, 0
      %v2413 = vsel %vm2408, %v1826, 0
      %v2416 = vsel %vm2408, %v1830, 0
      %v2419 = vsel %vm2408, %v1834, 0
      %v2422 = vsel %vm2408, %v1838, 0
      %v2425 = vsel %vm2408, %v1842, 0
      %v2428 = vsel %vm2408, %v1846, 0
      %v2431 = vsel %vm2408, %v1850, 0
      %2433 = vmatprep.subr.bf16.mxu0 %v2247
      %2434 = vmatpush1.bf16.msra.mxu0 %v2246
      %2435 = vmatprep.subr.bf16.mxu0 %v2250
      %2436 = vmatpush1.bf16.msra.mxu0 %v2249
      %2437 = vmatprep.subr.bf16.mxu0 %v2253
      %2438 = vmatpush1.bf16.msra.mxu0 %v2252
      %2439 = vmatprep.subr.bf16.mxu0 %v2256
      %2440 = vmatpush1.bf16.msra.mxu0 %v2255
      %2441 = vmatprep.subr.bf16.mxu0 %v2259
      %2442 = vmatpush1.bf16.msra.mxu0 %v2258
      %2443 = vmatprep.subr.bf16.mxu0 %v2262
      %2444 = vmatpush1.bf16.msra.mxu0 %v2261
      %2445 = vmatprep.subr.bf16.mxu0 %v2265
      %2446 = vmatpush1.bf16.msra.mxu0 %v2264
      %2447 = vmatprep.subr.bf16.mxu0 %v2268
      %2448 = vmatpush1.bf16.msra.mxu0 %v2267
      %2449 = vmatprep.subr.bf16.mxu0 %v2271
      %2450 = vmatpush1.bf16.msra.mxu0 %v2270
      %2451 = vmatprep.subr.bf16.mxu0 %v2274
      %2452 = vmatpush1.bf16.msra.mxu0 %v2273
      %2453 = vmatprep.subr.bf16.mxu0 %v2277
      %2454 = vmatpush1.bf16.msra.mxu0 %v2276
      %2455 = vmatprep.subr.bf16.mxu0 %v2280
      %2456 = vmatpush1.bf16.msra.mxu0 %v2279
      %2457 = vmatprep.subr.bf16.mxu0 %v2283
      %2458 = vmatpush1.bf16.msra.mxu0 %v2282
      %2459 = vmatprep.subr.bf16.mxu0 %v2286
      %2460 = vmatpush1.bf16.msra.mxu0 %v2285
      %2461 = vmatprep.subr.bf16.mxu0 %v2289
      %2462 = vmatpush1.bf16.msra.mxu0 %v2288
      %2463 = vmatprep.subr.bf16.mxu0 %v2292
      %2464 = vmatpush1.bf16.msra.mxu0 %v2291
      %2465 = vmatprep.mubr.bf16.mxu0 %v1820
      %2466 = vmatmul.mubr.bf16.gmra.mrb[0].mxu0 %v1819
      %v2467 = vpop.f32.mrb[0].mxu0
      %v2468 = vadd.f32 %v1964, %v2467
      %v2469 = vpop.f32.mrb[0].mxu0
      %v2470 = vadd.f32 %v1968, %v2469
      %v2471 = vpop.f32.mrb[0].mxu0
      %v2472 = vadd.f32 %v1964, %v2471
      %v2473 = vpop.f32.mrb[0].mxu0
      %v2474 = vadd.f32 %v1968, %v2473
      %2475 = vmatprep.mubr.bf16.mxu0 %v1824
      %2476 = vmatmul.mubr.bf16.gmra.mrb[0].mxu0 %v1823
      %v2477 = vpop.f32.mrb[0].mxu0
      %v2478 = vadd.f32 %v1964, %v2477
      %v2479 = vpop.f32.mrb[0].mxu0
      %v2480 = vadd.f32 %v1968, %v2479
      %v2481 = vpop.f32.mrb[0].mxu0
      %v2482 = vadd.f32 %v1964, %v2481
      %v2483 = vpop.f32.mrb[0].mxu0
      %v2484 = vadd.f32 %v1968, %v2483
      %2485 = vmatprep.mubr.bf16.mxu0 %v1828
      %2486 = vmatmul.mubr.bf16.gmra.mrb[0].mxu0 %v1827
      %v2487 = vpop.f32.mrb[0].mxu0
      %v2488 = vadd.f32 %v1964, %v2487
      %v2489 = vpop.f32.mrb[0].mxu0
      %v2490 = vadd.f32 %v1968, %v2489
      %v2491 = vpop.f32.mrb[0].mxu0
      %v2492 = vadd.f32 %v1964, %v2491
      %v2493 = vpop.f32.mrb[0].mxu0
      %v2494 = vadd.f32 %v1968, %v2493
      %2495 = vmatprep.mubr.bf16.mxu0 %v1832
      %2496 = vmatmul.mubr.bf16.gmra.mrb[0].mxu0 %v1831
      %v2497 = vpop.f32.mrb[0].mxu0
      %v2498 = vadd.f32 %v1964, %v2497
      %v2499 = vpop.f32.mrb[0].mxu0
      %v2500 = vadd.f32 %v1968, %v2499
      %v2501 = vpop.f32.mrb[0].mxu0
      %v2502 = vadd.f32 %v1964, %v2501
      %v2503 = vpop.f32.mrb[0].mxu0
      %v2504 = vadd.f32 %v1968, %v2503
      %2505 = vmatprep.mubr.bf16.mxu0 %v1836
      %2506 = vmatmul.mubr.bf16.gmra.mrb[0].mxu0 %v1835
      %v2507 = vpop.f32.mrb[0].mxu0
      %v2508 = vadd.f32 %v1964, %v2507
      %v2509 = vpop.f32.mrb[0].mxu0
      %v2510 = vadd.f32 %v1968, %v2509
      %v2511 = vpop.f32.mrb[0].mxu0
      %v2512 = vadd.f32 %v1964, %v2511
      %v2513 = vpop.f32.mrb[0].mxu0
      %v2514 = vadd.f32 %v1968, %v2513
      %2515 = vmatprep.mubr.bf16.mxu0 %v1840
      %2516 = vmatmul.mubr.bf16.gmra.mrb[0].mxu0 %v1839
      %v2517 = vpop.f32.mrb[0].mxu0
      %v2518 = vadd.f32 %v1964, %v2517
      %v2519 = vpop.f32.mrb[0].mxu0
      %v2520 = vadd.f32 %v1968, %v2519
      %v2521 = vpop.f32.mrb[0].mxu0
      %v2522 = vadd.f32 %v1964, %v2521
      %v2523 = vpop.f32.mrb[0].mxu0
      %v2524 = vadd.f32 %v1968, %v2523
      %2525 = vmatprep.mubr.bf16.mxu0 %v1844
      %2526 = vmatmul.mubr.bf16.gmra.mrb[0].mxu0 %v1843
      %v2527 = vpop.f32.mrb[0].mxu0
      %v2528 = vadd.f32 %v1964, %v2527
      %v2529 = vpop.f32.mrb[0].mxu0
      %v2530 = vadd.f32 %v1968, %v2529
      %v2531 = vpop.f32.mrb[0].mxu0
      %v2532 = vadd.f32 %v1964, %v2531
      %v2533 = vpop.f32.mrb[0].mxu0
      %v2534 = vadd.f32 %v1968, %v2533
      %2535 = vmatprep.mubr.bf16.mxu0 %v1848
      %2536 = vmatmul.mubr.bf16.gmra.mrb[0].mxu0 %v1847
      %v2537 = vpop.f32.mrb[0].mxu0
      %v2538 = vadd.f32 %v1964, %v2537
      %v2539 = vpop.f32.mrb[0].mxu0
      %v2540 = vadd.f32 %v1968, %v2539
      %v2541 = vpop.f32.mrb[0].mxu0
      %v2542 = vadd.f32 %v1964, %v2541
      %v2543 = vpop.f32.mrb[0].mxu0
      %v2544 = vadd.f32 %v1968, %v2543
      %2545 = vdwg.mxu0
      %2546 = vmatprep.subr.bf16.mxu0 %v2295
      %2547 = vmatpush1.bf16.msra.mxu0 %v2294
      %2548 = vmatprep.subr.bf16.mxu0 %v2298
      %2549 = vmatpush1.bf16.msra.mxu0 %v2297
      %2550 = vmatprep.subr.bf16.mxu0 %v2301
      %2551 = vmatpush1.bf16.msra.mxu0 %v2300
      %2552 = vmatprep.subr.bf16.mxu0 %v2304
      %2553 = vmatpush1.bf16.msra.mxu0 %v2303
      %2554 = vmatprep.subr.bf16.mxu0 %v2307
      %2555 = vmatpush1.bf16.msra.mxu0 %v2306
      %2556 = vmatprep.subr.bf16.mxu0 %v2310
      %2557 = vmatpush1.bf16.msra.mxu0 %v2309
      %2558 = vmatprep.subr.bf16.mxu0 %v2313
      %2559 = vmatpush1.bf16.msra.mxu0 %v2312
      %2560 = vmatprep.subr.bf16.mxu0 %v2316
      %2561 = vmatpush1.bf16.msra.mxu0 %v2315
      %2562 = vmatprep.subr.bf16.mxu0 %v2319
      %2563 = vmatpush1.bf16.msra.mxu0 %v2318
      %2564 = vmatprep.subr.bf16.mxu0 %v2322
      %2565 = vmatpush1.bf16.msra.mxu0 %v2321
      %2566 = vmatprep.subr.bf16.mxu0 %v2325
      %2567 = vmatpush1.bf16.msra.mxu0 %v2324
      %2568 = vmatprep.subr.bf16.mxu0 0
      %2569 = vmatpush1.bf16.msra.mxu0 0
      %2570 = vmatprep.subr.bf16.mxu0 0
      %2571 = vmatpush1.bf16.msra.mxu0 0
      %2572 = vmatprep.subr.bf16.mxu0 0
      %2573 = vmatpush1.bf16.msra.mxu0 0
      %2574 = vmatprep.subr.bf16.mxu0 0
      %2575 = vmatpush1.bf16.msra.mxu0 0
      %2576 = vmatprep.subr.bf16.mxu0 0
      %2577 = vmatpush1.bf16.msra.mxu0 0
      %2578 = vmatprep.mubr.bf16.mxu0 %v2410
      %2579 = vmatmul.mubr.bf16.gmra.mrb[0].mxu0 %v1821
      %v2580 = vpop.f32.mrb[0].mxu0
      %v2581 = vadd.f32 %v2468, %v2580
      %v2582 = vpop.f32.mrb[0].mxu0
      %v2583 = vadd.f32 %v2470, %v2582
      %v2584 = vpop.f32.mrb[0].mxu0
      %v2585 = vadd.f32 %v2472, %v2584
      %v2586 = vpop.f32.mrb[0].mxu0
      %v2587 = vadd.f32 %v2474, %v2586
      %2588 = vmatprep.mubr.bf16.mxu0 %v2413
      %2589 = vmatmul.mubr.bf16.gmra.mrb[0].mxu0 %v1825
      %v2590 = vpop.f32.mrb[0].mxu0
      %v2591 = vadd.f32 %v2478, %v2590
      %v2592 = vpop.f32.mrb[0].mxu0
      %v2593 = vadd.f32 %v2480, %v2592
      %v2594 = vpop.f32.mrb[0].mxu0
      %v2595 = vadd.f32 %v2482, %v2594
      %v2596 = vpop.f32.mrb[0].mxu0
      %v2597 = vadd.f32 %v2484, %v2596
      %2598 = vmatprep.mubr.bf16.mxu0 %v2416
      %2599 = vmatmul.mubr.bf16.gmra.mrb[0].mxu0 %v1829
      %v2600 = vpop.f32.mrb[0].mxu0
      %v2601 = vadd.f32 %v2488, %v2600
      %v2602 = vpop.f32.mrb[0].mxu0
      %v2603 = vadd.f32 %v2490, %v2602
      %v2604 = vpop.f32.mrb[0].mxu0
      %v2605 = vadd.f32 %v2492, %v2604
      %v2606 = vpop.f32.mrb[0].mxu0
      %v2607 = vadd.f32 %v2494, %v2606
      %2608 = vmatprep.mubr.bf16.mxu0 %v2419
      %2609 = vmatmul.mubr.bf16.gmra.mrb[0].mxu0 %v1833
      %v2610 = vpop.f32.mrb[0].mxu0
      %v2611 = vadd.f32 %v2498, %v2610
      %v2612 = vpop.f32.mrb[0].mxu0
      %v2613 = vadd.f32 %v2500, %v2612
      %v2614 = vpop.f32.mrb[0].mxu0
      %v2615 = vadd.f32 %v2502, %v2614
      %v2616 = vpop.f32.mrb[0].mxu0
      %v2617 = vadd.f32 %v2504, %v2616
      %2618 = vmatprep.mubr.bf16.mxu0 %v2422
      %2619 = vmatmul.mubr.bf16.gmra.mrb[0].mxu0 %v1837
      %v2620 = vpop.f32.mrb[0].mxu0
      %v2621 = vadd.f32 %v2508, %v2620
      %v2622 = vpop.f32.mrb[0].mxu0
      %v2623 = vadd.f32 %v2510, %v2622
      %v2624 = vpop.f32.mrb[0].mxu0
      %v2625 = vadd.f32 %v2512, %v2624
      %v2626 = vpop.f32.mrb[0].mxu0
      %v2627 = vadd.f32 %v2514, %v2626
      %2628 = vmatprep.mubr.bf16.mxu0 %v2425
      %2629 = vmatmul.mubr.bf16.gmra.mrb[0].mxu0 %v1841
      %v2630 = vpop.f32.mrb[0].mxu0
      %v2631 = vadd.f32 %v2518, %v2630
      %v2632 = vpop.f32.mrb[0].mxu0
      %v2633 = vadd.f32 %v2520, %v2632
      %v2634 = vpop.f32.mrb[0].mxu0
      %v2635 = vadd.f32 %v2522, %v2634
      %v2636 = vpop.f32.mrb[0].mxu0
      %v2637 = vadd.f32 %v2524, %v2636
      %2638 = vmatprep.mubr.bf16.mxu0 %v2428
      %2639 = vmatmul.mubr.bf16.gmra.mrb[0].mxu0 %v1845
      %v2640 = vpop.f32.mrb[0].mxu0
      %v2641 = vadd.f32 %v2528, %v2640
      %v2642 = vpop.f32.mrb[0].mxu0
      %v2643 = vadd.f32 %v2530, %v2642
      %v2644 = vpop.f32.mrb[0].mxu0
      %v2645 = vadd.f32 %v2532, %v2644
      %v2646 = vpop.f32.mrb[0].mxu0
      %v2647 = vadd.f32 %v2534, %v2646
      %2648 = vmatprep.mubr.bf16.mxu0 %v2431
      %2649 = vmatmul.mubr.bf16.gmra.mrb[0].mxu0 %v1849
      %v2650 = vpop.f32.mrb[0].mxu0
      %v2651 = vadd.f32 %v2538, %v2650
      %v2652 = vpop.f32.mrb[0].mxu0
      %v2653 = vadd.f32 %v2540, %v2652
      %v2654 = vpop.f32.mrb[0].mxu0
      %v2655 = vadd.f32 %v2542, %v2654
      %v2656 = vpop.f32.mrb[0].mxu0
      %v2657 = vadd.f32 %v2544, %v2656
      %2658 = vdwg.mxu0
      %2659 = vmatprep.subr.bf16.mxu0 0
      %2660 = vmatpush1.bf16.msra.mxu0 %v2248
      %2661 = vmatprep.subr.bf16.mxu0 0
      %2662 = vmatpush1.bf16.msra.mxu0 %v2251
      %2663 = vmatprep.subr.bf16.mxu0 0
      %2664 = vmatpush1.bf16.msra.mxu0 %v2254
      %2665 = vmatprep.subr.bf16.mxu0 0
      %2666 = vmatpush1.bf16.msra.mxu0 %v2257
      %2667 = vmatprep.subr.bf16.mxu0 0
      %2668 = vmatpush1.bf16.msra.mxu0 %v2260
      %2669 = vmatprep.subr.bf16.mxu0 0
      %2670 = vmatpush1.bf16.msra.mxu0 %v2263
      %2671 = vmatprep.subr.bf16.mxu0 0
      %2672 = vmatpush1.bf16.msra.mxu0 %v2266
      %2673 = vmatprep.subr.bf16.mxu0 0
      %2674 = vmatpush1.bf16.msra.mxu0 %v2269
      %2675 = vmatprep.subr.bf16.mxu0 0
      %2676 = vmatpush1.bf16.msra.mxu0 %v2272
      %2677 = vmatprep.subr.bf16.mxu0 0
      %2678 = vmatpush1.bf16.msra.mxu0 %v2275
      %2679 = vmatprep.subr.bf16.mxu0 0
      %2680 = vmatpush1.bf16.msra.mxu0 %v2278
      %2681 = vmatprep.subr.bf16.mxu0 0
      %2682 = vmatpush1.bf16.msra.mxu0 %v2281
      %2683 = vmatprep.subr.bf16.mxu0 0
      %2684 = vmatpush1.bf16.msra.mxu0 %v2284
      %2685 = vmatprep.subr.bf16.mxu0 0
      %2686 = vmatpush1.bf16.msra.mxu0 %v2287
      %2687 = vmatprep.subr.bf16.mxu0 0
      %2688 = vmatpush1.bf16.msra.mxu0 %v2290
      %2689 = vmatprep.subr.bf16.mxu0 0
      %2690 = vmatpush1.bf16.msra.mxu0 %v2293
      %2691 = vmatprep.mubr.bf16.mxu0 %v1820
      %2692 = vmatmul.mubr.bf16.gmra.mrb[0].mxu0 %v1819
      %v2693 = vpop.f32.mrb[0].mxu0
      %v2694 = vadd.f32 %v1972, %v2693
      %v2695 = vpop.f32.mrb[0].mxu0
      %v2696 = vpop.f32.mrb[0].mxu0
      %v2697 = vadd.f32 %v1972, %v2696
      %v2698 = vpop.f32.mrb[0].mxu0
      %2699 = vmatprep.mubr.bf16.mxu0 %v1824
      %2700 = vmatmul.mubr.bf16.gmra.mrb[0].mxu0 %v1823
      %v2701 = vpop.f32.mrb[0].mxu0
      %v2702 = vadd.f32 %v1972, %v2701
      %v2703 = vpop.f32.mrb[0].mxu0
      %v2704 = vpop.f32.mrb[0].mxu0
      %v2705 = vadd.f32 %v1972, %v2704
      %v2706 = vpop.f32.mrb[0].mxu0
      %2707 = vmatprep.mubr.bf16.mxu0 %v1828
      %2708 = vmatmul.mubr.bf16.gmra.mrb[0].mxu0 %v1827
      %v2709 = vpop.f32.mrb[0].mxu0
      %v2710 = vadd.f32 %v1972, %v2709
      %v2711 = vpop.f32.mrb[0].mxu0
      %v2712 = vpop.f32.mrb[0].mxu0
      %v2713 = vadd.f32 %v1972, %v2712
      %v2714 = vpop.f32.mrb[0].mxu0
      %2715 = vmatprep.mubr.bf16.mxu0 %v1832
      %2716 = vmatmul.mubr.bf16.gmra.mrb[0].mxu0 %v1831
      %v2717 = vpop.f32.mrb[0].mxu0
      %v2718 = vadd.f32 %v1972, %v2717
      %v2719 = vpop.f32.mrb[0].mxu0
      %v2720 = vpop.f32.mrb[0].mxu0
      %v2721 = vadd.f32 %v1972, %v2720
      %v2722 = vpop.f32.mrb[0].mxu0
      %2723 = vmatprep.mubr.bf16.mxu0 %v1836
      %2724 = vmatmul.mubr.bf16.gmra.mrb[0].mxu0 %v1835
      %v2725 = vpop.f32.mrb[0].mxu0
      %v2726 = vadd.f32 %v1972, %v2725
      %v2727 = vpop.f32.mrb[0].mxu0
      %v2728 = vpop.f32.mrb[0].mxu0
      %v2729 = vadd.f32 %v1972, %v2728
      %v2730 = vpop.f32.mrb[0].mxu0
      %2731 = vmatprep.mubr.bf16.mxu0 %v1840
      %2732 = vmatmul.mubr.bf16.gmra.mrb[0].mxu0 %v1839
      %v2733 = vpop.f32.mrb[0].mxu0
      %v2734 = vadd.f32 %v1972, %v2733
      %v2735 = vpop.f32.mrb[0].mxu0
      %v2736 = vpop.f32.mrb[0].mxu0
      %v2737 = vadd.f32 %v1972, %v2736
      %v2738 = vpop.f32.mrb[0].mxu0
      %2739 = vmatprep.mubr.bf16.mxu0 %v1844
      %2740 = vmatmul.mubr.bf16.gmra.mrb[0].mxu0 %v1843
      %v2741 = vpop.f32.mrb[0].mxu0
      %v2742 = vadd.f32 %v1972, %v2741
      %v2743 = vpop.f32.mrb[0].mxu0
      %v2744 = vpop.f32.mrb[0].mxu0
      %v2745 = vadd.f32 %v1972, %v2744
      %v2746 = vpop.f32.mrb[0].mxu0
      %2747 = vmatprep.mubr.bf16.mxu0 %v1848
      %2748 = vmatmul.mubr.bf16.gmra.mrb[0].mxu0 %v1847
      %v2749 = vpop.f32.mrb[0].mxu0
      %v2750 = vadd.f32 %v1972, %v2749
      %v2751 = vpop.f32.mrb[0].mxu0
      %v2752 = vpop.f32.mrb[0].mxu0
      %v2753 = vadd.f32 %v1972, %v2752
      %v2754 = vpop.f32.mrb[0].mxu0
      %2755 = vdwg.mxu0
      %2756 = vmatprep.subr.bf16.mxu0 0
      %2757 = vmatpush1.bf16.msra.mxu0 %v2296
      %2758 = vmatprep.subr.bf16.mxu0 0
      %2759 = vmatpush1.bf16.msra.mxu0 %v2299
      %2760 = vmatprep.subr.bf16.mxu0 0
      %2761 = vmatpush1.bf16.msra.mxu0 %v2302
      %2762 = vmatprep.subr.bf16.mxu0 0
      %2763 = vmatpush1.bf16.msra.mxu0 %v2305
      %2764 = vmatprep.subr.bf16.mxu0 0
      %2765 = vmatpush1.bf16.msra.mxu0 %v2308
      %2766 = vmatprep.subr.bf16.mxu0 0
      %2767 = vmatpush1.bf16.msra.mxu0 %v2311
      %2768 = vmatprep.subr.bf16.mxu0 0
      %2769 = vmatpush1.bf16.msra.mxu0 %v2314
      %2770 = vmatprep.subr.bf16.mxu0 0
      %2771 = vmatpush1.bf16.msra.mxu0 %v2317
      %2772 = vmatprep.subr.bf16.mxu0 0
      %2773 = vmatpush1.bf16.msra.mxu0 %v2320
      %2774 = vmatprep.subr.bf16.mxu0 0
      %2775 = vmatpush1.bf16.msra.mxu0 %v2323
      %2776 = vmatprep.subr.bf16.mxu0 0
      %2777 = vmatpush1.bf16.msra.mxu0 %v2326
      %2778 = vmatprep.subr.bf16.mxu0 0
      %2779 = vmatpush1.bf16.msra.mxu0 0
      %2780 = vmatprep.subr.bf16.mxu0 0
      %2781 = vmatpush1.bf16.msra.mxu0 0
      %2782 = vmatprep.subr.bf16.mxu0 0
      %2783 = vmatpush1.bf16.msra.mxu0 0
      %2784 = vmatprep.subr.bf16.mxu0 0
      %2785 = vmatpush1.bf16.msra.mxu0 0
      %2786 = vmatprep.subr.bf16.mxu0 0
      %2787 = vmatpush1.bf16.msra.mxu0 0
      %2788 = vmatprep.mubr.bf16.mxu0 %v2410
      %2789 = vmatmul.mubr.bf16.gmra.mrb[0].mxu0 %v1821
      %v2790 = vpop.f32.mrb[0].mxu0
      %v2791 = vadd.f32 %v2694, %v2790
      %v2792 = vpop.f32.mrb[0].mxu0
      %v2793 = vpop.f32.mrb[0].mxu0
      %v2794 = vadd.f32 %v2697, %v2793
      %v2795 = vpop.f32.mrb[0].mxu0
      %2796 = vmatprep.mubr.bf16.mxu0 %v2413
      %2797 = vmatmul.mubr.bf16.gmra.mrb[0].mxu0 %v1825
      %v2798 = vpop.f32.mrb[0].mxu0
      %v2799 = vadd.f32 %v2702, %v2798
      %v2800 = vpop.f32.mrb[0].mxu0
      %v2801 = vpop.f32.mrb[0].mxu0
      %v2802 = vadd.f32 %v2705, %v2801
      %v2803 = vpop.f32.mrb[0].mxu0
      %2804 = vmatprep.mubr.bf16.mxu0 %v2416
      %2805 = vmatmul.mubr.bf16.gmra.mrb[0].mxu0 %v1829
      %v2806 = vpop.f32.mrb[0].mxu0
      %v2807 = vadd.f32 %v2710, %v2806
      %v2808 = vpop.f32.mrb[0].mxu0
      %v2809 = vpop.f32.mrb[0].mxu0
      %v2810 = vadd.f32 %v2713, %v2809
      %v2811 = vpop.f32.mrb[0].mxu0
      %2812 = vmatprep.mubr.bf16.mxu0 %v2419
      %2813 = vmatmul.mubr.bf16.gmra.mrb[0].mxu0 %v1833
      %v2814 = vpop.f32.mrb[0].mxu0
      %v2815 = vadd.f32 %v2718, %v2814
      %v2816 = vpop.f32.mrb[0].mxu0
      %v2817 = vpop.f32.mrb[0].mxu0
      %v2818 = vadd.f32 %v2721, %v2817
      %v2819 = vpop.f32.mrb[0].mxu0
      %2820 = vmatprep.mubr.bf16.mxu0 %v2422
      %2821 = vmatmul.mubr.bf16.gmra.mrb[0].mxu0 %v1837
      %v2822 = vpop.f32.mrb[0].mxu0
      %v2823 = vadd.f32 %v2726, %v2822
      %v2824 = vpop.f32.mrb[0].mxu0
      %v2825 = vpop.f32.mrb[0].mxu0
      %v2826 = vadd.f32 %v2729, %v2825
      %v2827 = vpop.f32.mrb[0].mxu0
      %2828 = vmatprep.mubr.bf16.mxu0 %v2425
      %2829 = vmatmul.mubr.bf16.gmra.mrb[0].mxu0 %v1841
      %v2830 = vpop.f32.mrb[0].mxu0
      %v2831 = vadd.f32 %v2734, %v2830
      %v2832 = vpop.f32.mrb[0].mxu0
      %v2833 = vpop.f32.mrb[0].mxu0
      %v2834 = vadd.f32 %v2737, %v2833
      %v2835 = vpop.f32.mrb[0].mxu0
      %2836 = vmatprep.mubr.bf16.mxu0 %v2428
      %2837 = vmatmul.mubr.bf16.gmra.mrb[0].mxu0 %v1845
      %v2838 = vpop.f32.mrb[0].mxu0
      %v2839 = vadd.f32 %v2742, %v2838
      %v2840 = vpop.f32.mrb[0].mxu0
      %v2841 = vpop.f32.mrb[0].mxu0
      %v2842 = vadd.f32 %v2745, %v2841
      %v2843 = vpop.f32.mrb[0].mxu0
      %2844 = vmatprep.mubr.bf16.mxu0 %v2431
      %2845 = vmatmul.mubr.bf16.gmra.mrb[0].mxu0 %v1849
      %v2846 = vpop.f32.mrb[0].mxu0
      %v2847 = vadd.f32 %v2750, %v2846
      %v2848 = vpop.f32.mrb[0].mxu0
      %v2849 = vpop.f32.mrb[0].mxu0
      %v2850 = vadd.f32 %v2753, %v2849
      %v2851 = vpop.f32.mrb[0].mxu0
      %2852 = vdwg.mxu0
      %v2853 = vmax.f32 %v2581, 0.0
      %v2854 = vmax.f32 %v2583, 0.0
      %v2855 = vmax.f32 %v2791, 0.0
      %v2856 = vmax.f32 %v2585, 0.0
      %v2857 = vmax.f32 %v2587, 0.0
      %v2858 = vmax.f32 %v2794, 0.0
      %v2859 = vmax.f32 %v2591, 0.0
      %v2860 = vmax.f32 %v2593, 0.0
      %v2861 = vmax.f32 %v2799, 0.0
      %v2862 = vmax.f32 %v2595, 0.0
      %v2863 = vmax.f32 %v2597, 0.0
      %v2864 = vmax.f32 %v2802, 0.0
      %v2865 = vmax.f32 %v2601, 0.0
      %v2866 = vmax.f32 %v2603, 0.0
      %v2867 = vmax.f32 %v2807, 0.0
      %v2868 = vmax.f32 %v2605, 0.0
      %v2869 = vmax.f32 %v2607, 0.0
      %v2870 = vmax.f32 %v2810, 0.0
      %v2871 = vmax.f32 %v2611, 0.0
      %v2872 = vmax.f32 %v2613, 0.0
      %v2873 = vmax.f32 %v2815, 0.0
      %v2874 = vmax.f32 %v2615, 0.0
      %v2875 = vmax.f32 %v2617, 0.0
      %v2876 = vmax.f32 %v2818, 0.0
      %v2877 = vmax.f32 %v2621, 0.0
      %v2878 = vmax.f32 %v2623, 0.0
      %v2879 = vmax.f32 %v2823, 0.0
      %v2880 = vmax.f32 %v2625, 0.0
      %v2881 = vmax.f32 %v2627, 0.0
      %v2882 = vmax.f32 %v2826, 0.0
      %v2883 = vmax.f32 %v2631, 0.0
      %v2884 = vmax.f32 %v2633, 0.0
      %v2885 = vmax.f32 %v2831, 0.0
      %v2886 = vmax.f32 %v2635, 0.0
      %v2887 = vmax.f32 %v2637, 0.0
      %v2888 = vmax.f32 %v2834, 0.0
      %v2889 = vmax.f32 %v2641, 0.0
      %v2890 = vmax.f32 %v2643, 0.0
      %v2891 = vmax.f32 %v2839, 0.0
      %v2892 = vmax.f32 %v2645, 0.0
      %v2893 = vmax.f32 %v2647, 0.0
      %v2894 = vmax.f32 %v2842, 0.0
      %v2895 = vmax.f32 %v2651, 0.0
      %v2896 = vmax.f32 %v2653, 0.0
      %v2897 = vmax.f32 %v2847, 0.0
      %v2898 = vmax.f32 %v2655, 0.0
      %v2899 = vmax.f32 %v2657, 0.0
      %v2900 = vmax.f32 %v2850, 0.0
      %v2901 = vrot.slane %v2853, 7
      %v2902 = vrot.slane %v2854, 7
      %v2903 = vrot.slane %v2855, 7
      %v2904 = vrot.slane %v2856, 7
      %v2905 = vrot.slane %v2857, 7
      %v2906 = vrot.slane %v2858, 7
      %v2907 = vrot.slane %v2859, 7
      %v2908 = vrot.slane %v2860, 7
      %v2909 = vrot.slane %v2861, 7
      %v2910 = vrot.slane %v2862, 7
      %v2911 = vrot.slane %v2863, 7
      %v2912 = vrot.slane %v2864, 7
      %v2913 = vrot.slane %v2865, 7
      %v2914 = vrot.slane %v2866, 7
      %v2915 = vrot.slane %v2867, 7
      %v2916 = vrot.slane %v2868, 7
      %v2917 = vrot.slane %v2869, 7
      %v2918 = vrot.slane %v2870, 7
      %v2919 = vrot.slane %v2871, 7
      %v2920 = vrot.slane %v2872, 7
      %v2921 = vrot.slane %v2873, 7
      %v2922 = vrot.slane %v2874, 7
      %v2923 = vrot.slane %v2875, 7
      %v2924 = vrot.slane %v2876, 7
      %v2925 = vrot.slane %v2877, 7
      %v2926 = vrot.slane %v2878, 7
      %v2927 = vrot.slane %v2879, 7
      %v2928 = vrot.slane %v2880, 7
      %v2929 = vrot.slane %v2881, 7
      %v2930 = vrot.slane %v2882, 7
      %v2931 = vrot.slane %v2883, 7
      %v2932 = vrot.slane %v2884, 7
      %v2933 = vrot.slane %v2885, 7
      %v2934 = vrot.slane %v2886, 7
      %v2935 = vrot.slane %v2887, 7
      %v2936 = vrot.slane %v2888, 7
      %v2937 = vrot.slane %v2889, 7
      %v2938 = vrot.slane %v2890, 7
      %v2939 = vrot.slane %v2891, 7
      %v2940 = vrot.slane %v2892, 7
      %v2941 = vrot.slane %v2893, 7
      %v2942 = vrot.slane %v2894, 7
      %v2943 = vrot.slane %v2895, 7
      %v2944 = vrot.slane %v2896, 7
      %v2945 = vrot.slane %v2897, 7
      %v2946 = vrot.slane %v2898, 7
      %v2947 = vrot.slane %v2899, 7
      %v2948 = vrot.slane %v2900, 7
      %v2949 = vsel %vm535, %v2943, %v2946
      %v2950 = vsel %vm535, %v2944, %v2947
      %v2951 = vsel %vm535, %v2945, %v2948
      %v2952 = vsel %vm535, %v2940, %v2943
      %v2953 = vsel %vm535, %v2941, %v2944
      %v2954 = vsel %vm535, %v2942, %v2945
      %v2955 = vsel %vm535, %v2937, %v2940
      %v2956 = vsel %vm535, %v2938, %v2941
      %v2957 = vsel %vm535, %v2939, %v2942
      %v2958 = vsel %vm535, %v2934, %v2937
      %v2959 = vsel %vm535, %v2935, %v2938
      %v2960 = vsel %vm535, %v2936, %v2939
      %v2961 = vsel %vm535, %v2931, %v2934
      %v2962 = vsel %vm535, %v2932, %v2935
      %v2963 = vsel %vm535, %v2933, %v2936
      %v2964 = vsel %vm535, %v2928, %v2931
      %v2965 = vsel %vm535, %v2929, %v2932
      %v2966 = vsel %vm535, %v2930, %v2933
      %v2967 = vsel %vm535, %v2925, %v2928
      %v2968 = vsel %vm535, %v2926, %v2929
      %v2969 = vsel %vm535, %v2927, %v2930
      %v2970 = vsel %vm535, %v2922, %v2925
      %v2971 = vsel %vm535, %v2923, %v2926
      %v2972 = vsel %vm535, %v2924, %v2927
      %v2973 = vsel %vm535, %v2919, %v2922
      %v2974 = vsel %vm535, %v2920, %v2923
      %v2975 = vsel %vm535, %v2921, %v2924
      %v2976 = vsel %vm535, %v2916, %v2919
      %v2977 = vsel %vm535, %v2917, %v2920
      %v2978 = vsel %vm535, %v2918, %v2921
      %v2979 = vsel %vm535, %v2913, %v2916
      %v2980 = vsel %vm535, %v2914, %v2917
      %v2981 = vsel %vm535, %v2915, %v2918
      %v2982 = vsel %vm535, %v2910, %v2913
      %v2983 = vsel %vm535, %v2911, %v2914
      %v2984 = vsel %vm535, %v2912, %v2915
      %v2985 = vsel %vm535, %v2907, %v2910
      %v2986 = vsel %vm535, %v2908, %v2911
      %v2987 = vsel %vm535, %v2909, %v2912
      %v2988 = vsel %vm535, %v2904, %v2907
      %v2989 = vsel %vm535, %v2905, %v2908
      %v2990 = vsel %vm535, %v2906, %v2909
      %v2991 = vsel %vm535, %v2901, %v2904
      %v2992 = vsel %vm535, %v2902, %v2905
      %v2993 = vsel %vm535, %v2903, %v2906
      %v2994 = vsel %vm535, %v2946, %v2901
      %v2995 = vsel %vm535, %v2947, %v2902
      %v2996 = vsel %vm535, %v2948, %v2903
      %v2997 = vmul.f32 %v2994, %v555
      %v2998 = vmul.f32 %v2995, %v555
      %v2999 = vmul.f32 %v2996, %v555
      %v3000 = vmul.f32 %v2991, %v560
      %v3001 = vmul.f32 %v2992, %v560
      %v3002 = vmul.f32 %v2993, %v560
      %v3003 = vmul.f32 %v2988, %v565
      %v3004 = vmul.f32 %v2989, %v565
      %v3005 = vmul.f32 %v2990, %v565
      %v3006 = vmul.f32 %v2985, %v570
      %v3007 = vmul.f32 %v2986, %v570
      %v3008 = vmul.f32 %v2987, %v570
      %v3009 = vmul.f32 %v2982, %v575
      %v3010 = vmul.f32 %v2983, %v575
      %v3011 = vmul.f32 %v2984, %v575
      %v3012 = vmul.f32 %v2979, %v580
      %v3013 = vmul.f32 %v2980, %v580
      %v3014 = vmul.f32 %v2981, %v580
      %v3015 = vmul.f32 %v2976, %v585
      %v3016 = vmul.f32 %v2977, %v585
      %v3017 = vmul.f32 %v2978, %v585
      %v3018 = vmul.f32 %v2973, %v590
      %v3019 = vmul.f32 %v2974, %v590
      %v3020 = vmul.f32 %v2975, %v590
      %v3021 = vmul.f32 %v2970, %v595
      %v3022 = vmul.f32 %v2971, %v595
      %v3023 = vmul.f32 %v2972, %v595
      %v3024 = vmul.f32 %v2967, %v600
      %v3025 = vmul.f32 %v2968, %v600
      %v3026 = vmul.f32 %v2969, %v600
      %v3027 = vmul.f32 %v2964, %v605
      %v3028 = vmul.f32 %v2965, %v605
      %v3029 = vmul.f32 %v2966, %v605
      %v3030 = vmul.f32 %v2961, %v610
      %v3031 = vmul.f32 %v2962, %v610
      %v3032 = vmul.f32 %v2963, %v610
      %v3033 = vmul.f32 %v2958, %v615
      %v3034 = vmul.f32 %v2959, %v615
      %v3035 = vmul.f32 %v2960, %v615
      %v3036 = vmul.f32 %v2955, %v620
      %v3037 = vmul.f32 %v2956, %v620
      %v3038 = vmul.f32 %v2957, %v620
      %v3039 = vmul.f32 %v2952, %v625
      %v3040 = vmul.f32 %v2953, %v625
      %v3041 = vmul.f32 %v2954, %v625
      %v3042 = vmul.f32 %v2949, %v630
      %v3043 = vmul.f32 %v2950, %v630
      %v3044 = vmul.f32 %v2951, %v630
      %v3045 = vrot.slane %v2853, 1
      %v3046 = vrot.slane %v2854, 1
      %v3047 = vrot.slane %v2855, 1
      %v3048 = vrot.slane %v2856, 1
      %v3049 = vrot.slane %v2857, 1
      %v3050 = vrot.slane %v2858, 1
      %v3051 = vrot.slane %v2859, 1
      %v3052 = vrot.slane %v2860, 1
      %v3053 = vrot.slane %v2861, 1
      %v3054 = vrot.slane %v2862, 1
      %v3055 = vrot.slane %v2863, 1
      %v3056 = vrot.slane %v2864, 1
      %v3057 = vrot.slane %v2865, 1
      %v3058 = vrot.slane %v2866, 1
      %v3059 = vrot.slane %v2867, 1
      %v3060 = vrot.slane %v2868, 1
      %v3061 = vrot.slane %v2869, 1
      %v3062 = vrot.slane %v2870, 1
      %v3063 = vrot.slane %v2871, 1
      %v3064 = vrot.slane %v2872, 1
      %v3065 = vrot.slane %v2873, 1
      %v3066 = vrot.slane %v2874, 1
      %v3067 = vrot.slane %v2875, 1
      %v3068 = vrot.slane %v2876, 1
      %v3069 = vrot.slane %v2877, 1
      %v3070 = vrot.slane %v2878, 1
      %v3071 = vrot.slane %v2879, 1
      %v3072 = vrot.slane %v2880, 1
      %v3073 = vrot.slane %v2881, 1
      %v3074 = vrot.slane %v2882, 1
      %v3075 = vrot.slane %v2883, 1
      %v3076 = vrot.slane %v2884, 1
      %v3077 = vrot.slane %v2885, 1
      %v3078 = vrot.slane %v2886, 1
      %v3079 = vrot.slane %v2887, 1
      %v3080 = vrot.slane %v2888, 1
      %v3081 = vrot.slane %v2889, 1
      %v3082 = vrot.slane %v2890, 1
      %v3083 = vrot.slane %v2891, 1
      %v3084 = vrot.slane %v2892, 1
      %v3085 = vrot.slane %v2893, 1
      %v3086 = vrot.slane %v2894, 1
      %v3087 = vrot.slane %v2895, 1
      %v3088 = vrot.slane %v2896, 1
      %v3089 = vrot.slane %v2897, 1
      %v3090 = vrot.slane %v2898, 1
      %v3091 = vrot.slane %v2899, 1
      %v3092 = vrot.slane %v2900, 1
      %v3093 = vsel %vm664, %v3087, %v3090
      %v3094 = vsel %vm664, %v3088, %v3091
      %v3095 = vsel %vm664, %v3089, %v3092
      %v3096 = vsel %vm664, %v3084, %v3087
      %v3097 = vsel %vm664, %v3085, %v3088
      %v3098 = vsel %vm664, %v3086, %v3089
      %v3099 = vsel %vm664, %v3081, %v3084
      %v3100 = vsel %vm664, %v3082, %v3085
      %v3101 = vsel %vm664, %v3083, %v3086
      %v3102 = vsel %vm664, %v3078, %v3081
      %v3103 = vsel %vm664, %v3079, %v3082
      %v3104 = vsel %vm664, %v3080, %v3083
      %v3105 = vsel %vm664, %v3075, %v3078
      %v3106 = vsel %vm664, %v3076, %v3079
      %v3107 = vsel %vm664, %v3077, %v3080
      %v3108 = vsel %vm664, %v3072, %v3075
      %v3109 = vsel %vm664, %v3073, %v3076
      %v3110 = vsel %vm664, %v3074, %v3077
      %v3111 = vsel %vm664, %v3069, %v3072
      %v3112 = vsel %vm664, %v3070, %v3073
      %v3113 = vsel %vm664, %v3071, %v3074
      %v3114 = vsel %vm664, %v3066, %v3069
      %v3115 = vsel %vm664, %v3067, %v3070
      %v3116 = vsel %vm664, %v3068, %v3071
      %v3117 = vsel %vm664, %v3063, %v3066
      %v3118 = vsel %vm664, %v3064, %v3067
      %v3119 = vsel %vm664, %v3065, %v3068
      %v3120 = vsel %vm664, %v3060, %v3063
      %v3121 = vsel %vm664, %v3061, %v3064
      %v3122 = vsel %vm664, %v3062, %v3065
      %v3123 = vsel %vm664, %v3057, %v3060
      %v3124 = vsel %vm664, %v3058, %v3061
      %v3125 = vsel %vm664, %v3059, %v3062
      %v3126 = vsel %vm664, %v3054, %v3057
      %v3127 = vsel %vm664, %v3055, %v3058
      %v3128 = vsel %vm664, %v3056, %v3059
      %v3129 = vsel %vm664, %v3051, %v3054
      %v3130 = vsel %vm664, %v3052, %v3055
      %v3131 = vsel %vm664, %v3053, %v3056
      %v3132 = vsel %vm664, %v3048, %v3051
      %v3133 = vsel %vm664, %v3049, %v3052
      %v3134 = vsel %vm664, %v3050, %v3053
      %v3135 = vsel %vm664, %v3045, %v3048
      %v3136 = vsel %vm664, %v3046, %v3049
      %v3137 = vsel %vm664, %v3047, %v3050
      %v3138 = vsel %vm664, %v3090, %v3045
      %v3139 = vsel %vm664, %v3091, %v3046
      %v3140 = vsel %vm664, %v3092, %v3047
      %v3141 = vmul.f32 %v3135, %v684
      %v3142 = vmul.f32 %v3136, %v684
      %v3143 = vmul.f32 %v3137, %v684
      %v3144 = vmul.f32 %v3132, %v689
      %v3145 = vmul.f32 %v3133, %v689
      %v3146 = vmul.f32 %v3134, %v689
      %v3147 = vmul.f32 %v3129, %v694
      %v3148 = vmul.f32 %v3130, %v694
      %v3149 = vmul.f32 %v3131, %v694
      %v3150 = vmul.f32 %v3126, %v699
      %v3151 = vmul.f32 %v3127, %v699
      %v3152 = vmul.f32 %v3128, %v699
      %v3153 = vmul.f32 %v3123, %v704
      %v3154 = vmul.f32 %v3124, %v704
      %v3155 = vmul.f32 %v3125, %v704
      %v3156 = vmul.f32 %v3120, %v709
      %v3157 = vmul.f32 %v3121, %v709
      %v3158 = vmul.f32 %v3122, %v709
      %v3159 = vmul.f32 %v3117, %v714
      %v3160 = vmul.f32 %v3118, %v714
      %v3161 = vmul.f32 %v3119, %v714
      %v3162 = vmul.f32 %v3114, %v719
      %v3163 = vmul.f32 %v3115, %v719
      %v3164 = vmul.f32 %v3116, %v719
      %v3165 = vmul.f32 %v3111, %v724
      %v3166 = vmul.f32 %v3112, %v724
      %v3167 = vmul.f32 %v3113, %v724
      %v3168 = vmul.f32 %v3108, %v729
      %v3169 = vmul.f32 %v3109, %v729
      %v3170 = vmul.f32 %v3110, %v729
      %v3171 = vmul.f32 %v3105, %v734
      %v3172 = vmul.f32 %v3106, %v734
      %v3173 = vmul.f32 %v3107, %v734
      %v3174 = vmul.f32 %v3102, %v739
      %v3175 = vmul.f32 %v3103, %v739
      %v3176 = vmul.f32 %v3104, %v739
      %v3177 = vmul.f32 %v3099, %v744
      %v3178 = vmul.f32 %v3100, %v744
      %v3179 = vmul.f32 %v3101, %v744
      %v3180 = vmul.f32 %v3096, %v749
      %v3181 = vmul.f32 %v3097, %v749
      %v3182 = vmul.f32 %v3098, %v749
      %v3183 = vmul.f32 %v3093, %v754
      %v3184 = vmul.f32 %v3094, %v754
      %v3185 = vmul.f32 %v3095, %v754
      %v3186 = vmul.f32 %v3138, %v759
      %v3187 = vmul.f32 %v3139, %v759
      %v3188 = vmul.f32 %v3140, %v759
      %3237 = vrot.lane.b32.xlu0 %v2853, 32
      %v3238 = vpop.permute.xlu0 %3237
      %3239 = vrot.lane.b32.xlu0 %v2854, 32
      %v3240 = vpop.permute.xlu0 %3239
      %3241 = vrot.lane.b32.xlu0 %v2855, 32
      %v3242 = vpop.permute.xlu0 %3241
      %3243 = vrot.lane.b32.xlu0 %v2856, 32
      %v3244 = vpop.permute.xlu0 %3243
      %3245 = vrot.lane.b32.xlu0 %v2857, 32
      %v3246 = vpop.permute.xlu0 %3245
      %3247 = vrot.lane.b32.xlu0 %v2858, 32
      %v3248 = vpop.permute.xlu0 %3247
      %3249 = vrot.lane.b32.xlu0 %v2859, 32
      %v3250 = vpop.permute.xlu0 %3249
      %3251 = vrot.lane.b32.xlu0 %v2860, 32
      %v3252 = vpop.permute.xlu0 %3251
      %3253 = vrot.lane.b32.xlu0 %v2861, 32
      %v3254 = vpop.permute.xlu0 %3253
      %3255 = vrot.lane.b32.xlu0 %v2862, 32
      %v3256 = vpop.permute.xlu0 %3255
      %3257 = vrot.lane.b32.xlu0 %v2863, 32
      %v3258 = vpop.permute.xlu0 %3257
      %3259 = vrot.lane.b32.xlu0 %v2864, 32
      %v3260 = vpop.permute.xlu0 %3259
      %3261 = vrot.lane.b32.xlu0 %v2865, 32
      %v3262 = vpop.permute.xlu0 %3261
      %3263 = vrot.lane.b32.xlu0 %v2866, 32
      %v3264 = vpop.permute.xlu0 %3263
      %3265 = vrot.lane.b32.xlu0 %v2867, 32
      %v3266 = vpop.permute.xlu0 %3265
      %3267 = vrot.lane.b32.xlu0 %v2868, 32
      %v3268 = vpop.permute.xlu0 %3267
      %3269 = vrot.lane.b32.xlu0 %v2869, 32
      %v3270 = vpop.permute.xlu0 %3269
      %3271 = vrot.lane.b32.xlu0 %v2870, 32
      %v3272 = vpop.permute.xlu0 %3271
      %3273 = vrot.lane.b32.xlu0 %v2871, 32
      %v3274 = vpop.permute.xlu0 %3273
      %3275 = vrot.lane.b32.xlu0 %v2872, 32
      %v3276 = vpop.permute.xlu0 %3275
      %3277 = vrot.lane.b32.xlu0 %v2873, 32
      %v3278 = vpop.permute.xlu0 %3277
      %3279 = vrot.lane.b32.xlu0 %v2874, 32
      %v3280 = vpop.permute.xlu0 %3279
      %3281 = vrot.lane.b32.xlu0 %v2875, 32
      %v3282 = vpop.permute.xlu0 %3281
      %3283 = vrot.lane.b32.xlu0 %v2876, 32
      %v3284 = vpop.permute.xlu0 %3283
      %3285 = vrot.lane.b32.xlu0 %v2877, 32
      %v3286 = vpop.permute.xlu0 %3285
      %3287 = vrot.lane.b32.xlu0 %v2878, 32
      %v3288 = vpop.permute.xlu0 %3287
      %3289 = vrot.lane.b32.xlu0 %v2879, 32
      %v3290 = vpop.permute.xlu0 %3289
      %3291 = vrot.lane.b32.xlu0 %v2880, 32
      %v3292 = vpop.permute.xlu0 %3291
      %3293 = vrot.lane.b32.xlu0 %v2881, 32
      %v3294 = vpop.permute.xlu0 %3293
      %3295 = vrot.lane.b32.xlu0 %v2882, 32
      %v3296 = vpop.permute.xlu0 %3295
      %3297 = vrot.lane.b32.xlu0 %v2883, 32
      %v3298 = vpop.permute.xlu0 %3297
      %3299 = vrot.lane.b32.xlu0 %v2884, 32
      %v3300 = vpop.permute.xlu0 %3299
      %3301 = vrot.lane.b32.xlu0 %v2885, 32
      %v3302 = vpop.permute.xlu0 %3301
      %3303 = vrot.lane.b32.xlu0 %v2886, 32
      %v3304 = vpop.permute.xlu0 %3303
      %3305 = vrot.lane.b32.xlu0 %v2887, 32
      %v3306 = vpop.permute.xlu0 %3305
      %3307 = vrot.lane.b32.xlu0 %v2888, 32
      %v3308 = vpop.permute.xlu0 %3307
      %3309 = vrot.lane.b32.xlu0 %v2889, 32
      %v3310 = vpop.permute.xlu0 %3309
      %3311 = vrot.lane.b32.xlu0 %v2890, 32
      %v3312 = vpop.permute.xlu0 %3311
      %3313 = vrot.lane.b32.xlu0 %v2891, 32
      %v3314 = vpop.permute.xlu0 %3313
      %3315 = vrot.lane.b32.xlu0 %v2892, 32
      %v3316 = vpop.permute.xlu0 %3315
      %3317 = vrot.lane.b32.xlu0 %v2893, 32
      %v3318 = vpop.permute.xlu0 %3317
      %3319 = vrot.lane.b32.xlu0 %v2894, 32
      %v3320 = vpop.permute.xlu0 %3319
      %3321 = vrot.lane.b32.xlu0 %v2895, 32
      %v3322 = vpop.permute.xlu0 %3321
      %3323 = vrot.lane.b32.xlu0 %v2896, 32
      %v3324 = vpop.permute.xlu0 %3323
      %3325 = vrot.lane.b32.xlu0 %v2897, 32
      %v3326 = vpop.permute.xlu0 %3325
      %3327 = vrot.lane.b32.xlu0 %v2898, 32
      %v3328 = vpop.permute.xlu0 %3327
      %3329 = vrot.lane.b32.xlu0 %v2899, 32
      %v3330 = vpop.permute.xlu0 %3329
      %3331 = vrot.lane.b32.xlu0 %v2900, 32
      %v3332 = vpop.permute.xlu0 %3331
      %v3333 = vsel %vm1738, %v3238, %v3240
      %v3334 = vsel %vm1738, %v3240, %v3242
      %v3335 = vsel %vm1738, %v3244, %v3246
      %v3336 = vsel %vm1738, %v3246, %v3248
      %v3337 = vsel %vm1738, %v3250, %v3252
      %v3338 = vsel %vm1738, %v3252, %v3254
      %v3339 = vsel %vm1738, %v3256, %v3258
      %v3340 = vsel %vm1738, %v3258, %v3260
      %v3341 = vsel %vm1738, %v3262, %v3264
      %v3342 = vsel %vm1738, %v3264, %v3266
      %v3343 = vsel %vm1738, %v3268, %v3270
      %v3344 = vsel %vm1738, %v3270, %v3272
      %v3345 = vsel %vm1738, %v3274, %v3276
      %v3346 = vsel %vm1738, %v3276, %v3278
      %v3347 = vsel %vm1738, %v3280, %v3282
      %v3348 = vsel %vm1738, %v3282, %v3284
      %v3349 = vsel %vm1738, %v3286, %v3288
      %v3350 = vsel %vm1738, %v3288, %v3290
      %v3351 = vsel %vm1738, %v3292, %v3294
      %v3352 = vsel %vm1738, %v3294, %v3296
      %v3353 = vsel %vm1738, %v3298, %v3300
      %v3354 = vsel %vm1738, %v3300, %v3302
      %v3355 = vsel %vm1738, %v3304, %v3306
      %v3356 = vsel %vm1738, %v3306, %v3308
      %v3357 = vsel %vm1738, %v3310, %v3312
      %v3358 = vsel %vm1738, %v3312, %v3314
      %v3359 = vsel %vm1738, %v3316, %v3318
      %v3360 = vsel %vm1738, %v3318, %v3320
      %v3361 = vsel %vm1738, %v3322, %v3324
      %v3362 = vsel %vm1738, %v3324, %v3326
      %v3363 = vsel %vm1738, %v3328, %v3330
      %v3364 = vsel %vm1738, %v3330, %v3332
      %3461 = vrot.lane.b32.xlu0 %v3141, 64
      %v3462 = vpop.permute.xlu0 %3461
      %3463 = vrot.lane.b32.xlu0 %v3142, 64
      %v3464 = vpop.permute.xlu0 %3463
      %3465 = vrot.lane.b32.xlu0 %v3143, 64
      %v3466 = vpop.permute.xlu0 %3465
      %3467 = vrot.lane.b32.xlu0 %v3144, 64
      %v3468 = vpop.permute.xlu0 %3467
      %3469 = vrot.lane.b32.xlu0 %v3145, 64
      %v3470 = vpop.permute.xlu0 %3469
      %3471 = vrot.lane.b32.xlu0 %v3146, 64
      %v3472 = vpop.permute.xlu0 %3471
      %3473 = vrot.lane.b32.xlu0 %v3147, 64
      %v3474 = vpop.permute.xlu0 %3473
      %3475 = vrot.lane.b32.xlu0 %v3148, 64
      %v3476 = vpop.permute.xlu0 %3475
      %3477 = vrot.lane.b32.xlu0 %v3149, 64
      %v3478 = vpop.permute.xlu0 %3477
      %3479 = vrot.lane.b32.xlu0 %v3150, 64
      %v3480 = vpop.permute.xlu0 %3479
      %3481 = vrot.lane.b32.xlu0 %v3151, 64
      %v3482 = vpop.permute.xlu0 %3481
      %3483 = vrot.lane.b32.xlu0 %v3152, 64
      %v3484 = vpop.permute.xlu0 %3483
      %3485 = vrot.lane.b32.xlu0 %v3153, 64
      %v3486 = vpop.permute.xlu0 %3485
      %3487 = vrot.lane.b32.xlu0 %v3154, 64
      %v3488 = vpop.permute.xlu0 %3487
      %3489 = vrot.lane.b32.xlu0 %v3155, 64
      %v3490 = vpop.permute.xlu0 %3489
      %3491 = vrot.lane.b32.xlu0 %v3156, 64
      %v3492 = vpop.permute.xlu0 %3491
      %3493 = vrot.lane.b32.xlu0 %v3157, 64
      %v3494 = vpop.permute.xlu0 %3493
      %3495 = vrot.lane.b32.xlu0 %v3158, 64
      %v3496 = vpop.permute.xlu0 %3495
      %3497 = vrot.lane.b32.xlu0 %v3159, 64
      %v3498 = vpop.permute.xlu0 %3497
      %3499 = vrot.lane.b32.xlu0 %v3160, 64
      %v3500 = vpop.permute.xlu0 %3499
      %3501 = vrot.lane.b32.xlu0 %v3161, 64
      %v3502 = vpop.permute.xlu0 %3501
      %3503 = vrot.lane.b32.xlu0 %v3162, 64
      %v3504 = vpop.permute.xlu0 %3503
      %3505 = vrot.lane.b32.xlu0 %v3163, 64
      %v3506 = vpop.permute.xlu0 %3505
      %3507 = vrot.lane.b32.xlu0 %v3164, 64
      %v3508 = vpop.permute.xlu0 %3507
      %3509 = vrot.lane.b32.xlu0 %v3165, 64
      %v3510 = vpop.permute.xlu0 %3509
      %3511 = vrot.lane.b32.xlu0 %v3166, 64
      %v3512 = vpop.permute.xlu0 %3511
      %3513 = vrot.lane.b32.xlu0 %v3167, 64
      %v3514 = vpop.permute.xlu0 %3513
      %3515 = vrot.lane.b32.xlu0 %v3168, 64
      %v3516 = vpop.permute.xlu0 %3515
      %3517 = vrot.lane.b32.xlu0 %v3169, 64
      %v3518 = vpop.permute.xlu0 %3517
      %3519 = vrot.lane.b32.xlu0 %v3170, 64
      %v3520 = vpop.permute.xlu0 %3519
      %3521 = vrot.lane.b32.xlu0 %v3171, 64
      %v3522 = vpop.permute.xlu0 %3521
      %3523 = vrot.lane.b32.xlu0 %v3172, 64
      %v3524 = vpop.permute.xlu0 %3523
      %3525 = vrot.lane.b32.xlu0 %v3173, 64
      %v3526 = vpop.permute.xlu0 %3525
      %3527 = vrot.lane.b32.xlu0 %v3174, 64
      %v3528 = vpop.permute.xlu0 %3527
      %3529 = vrot.lane.b32.xlu0 %v3175, 64
      %v3530 = vpop.permute.xlu0 %3529
      %3531 = vrot.lane.b32.xlu0 %v3176, 64
      %v3532 = vpop.permute.xlu0 %3531
      %3533 = vrot.lane.b32.xlu0 %v3177, 64
      %v3534 = vpop.permute.xlu0 %3533
      %3535 = vrot.lane.b32.xlu0 %v3178, 64
      %v3536 = vpop.permute.xlu0 %3535
      %3537 = vrot.lane.b32.xlu0 %v3179, 64
      %v3538 = vpop.permute.xlu0 %3537
      %3539 = vrot.lane.b32.xlu0 %v3180, 64
      %v3540 = vpop.permute.xlu0 %3539
      %3541 = vrot.lane.b32.xlu0 %v3181, 64
      %v3542 = vpop.permute.xlu0 %3541
      %3543 = vrot.lane.b32.xlu0 %v3182, 64
      %v3544 = vpop.permute.xlu0 %3543
      %3545 = vrot.lane.b32.xlu0 %v3183, 64
      %v3546 = vpop.permute.xlu0 %3545
      %3547 = vrot.lane.b32.xlu0 %v3184, 64
      %v3548 = vpop.permute.xlu0 %3547
      %3549 = vrot.lane.b32.xlu0 %v3185, 64
      %v3550 = vpop.permute.xlu0 %3549
      %3551 = vrot.lane.b32.xlu0 %v3186, 64
      %v3552 = vpop.permute.xlu0 %3551
      %3553 = vrot.lane.b32.xlu0 %v3187, 64
      %v3554 = vpop.permute.xlu0 %3553
      %3555 = vrot.lane.b32.xlu0 %v3188, 64
      %v3556 = vpop.permute.xlu0 %3555
      %vm3557 = vcmask 523264
      %v3558 = vsel %vm3557, %v3462, %v3464
      %v3559 = vsel %vm3557, %v3464, %v3466
      %v3560 = vsel %vm3557, %v3468, %v3470
      %v3561 = vsel %vm3557, %v3470, %v3472
      %v3562 = vsel %vm3557, %v3474, %v3476
      %v3563 = vsel %vm3557, %v3476, %v3478
      %v3564 = vsel %vm3557, %v3480, %v3482
      %v3565 = vsel %vm3557, %v3482, %v3484
      %v3566 = vsel %vm3557, %v3486, %v3488
      %v3567 = vsel %vm3557, %v3488, %v3490
      %v3568 = vsel %vm3557, %v3492, %v3494
      %v3569 = vsel %vm3557, %v3494, %v3496
      %v3570 = vsel %vm3557, %v3498, %v3500
      %v3571 = vsel %vm3557, %v3500, %v3502
      %v3572 = vsel %vm3557, %v3504, %v3506
      %v3573 = vsel %vm3557, %v3506, %v3508
      %v3574 = vsel %vm3557, %v3510, %v3512
      %v3575 = vsel %vm3557, %v3512, %v3514
      %v3576 = vsel %vm3557, %v3516, %v3518
      %v3577 = vsel %vm3557, %v3518, %v3520
      %v3578 = vsel %vm3557, %v3522, %v3524
      %v3579 = vsel %vm3557, %v3524, %v3526
      %v3580 = vsel %vm3557, %v3528, %v3530
      %v3581 = vsel %vm3557, %v3530, %v3532
      %v3582 = vsel %vm3557, %v3534, %v3536
      %v3583 = vsel %vm3557, %v3536, %v3538
      %v3584 = vsel %vm3557, %v3540, %v3542
      %v3585 = vsel %vm3557, %v3542, %v3544
      %v3586 = vsel %vm3557, %v3546, %v3548
      %v3587 = vsel %vm3557, %v3548, %v3550
      %v3588 = vsel %vm3557, %v3552, %v3554
      %v3589 = vsel %vm3557, %v3554, %v3556
      %v3638 = vsel %vm1738, %v2999, %v3238
      %v3639 = vsel %vm1738, %v3002, %v3244
      %v3640 = vsel %vm1738, %v3005, %v3250
      %v3641 = vsel %vm1738, %v3008, %v3256
      %v3642 = vsel %vm1738, %v3011, %v3262
      %v3643 = vsel %vm1738, %v3014, %v3268
      %v3644 = vsel %vm1738, %v3017, %v3274
      %v3645 = vsel %vm1738, %v3020, %v3280
      %v3646 = vsel %vm1738, %v3023, %v3286
      %v3647 = vsel %vm1738, %v3026, %v3292
      %v3648 = vsel %vm1738, %v3029, %v3298
      %v3649 = vsel %vm1738, %v3032, %v3304
      %v3650 = vsel %vm1738, %v3035, %v3310
      %v3651 = vsel %vm1738, %v3038, %v3316
      %v3652 = vsel %vm1738, %v3041, %v3322
      %v3653 = vsel %vm1738, %v3044, %v3328
      %v3654 = vsel %vm3557, %v3334, %v3462
      %v3655 = vsel %vm3557, %v3336, %v3468
      %v3656 = vsel %vm3557, %v3338, %v3474
      %v3657 = vsel %vm3557, %v3340, %v3480
      %v3658 = vsel %vm3557, %v3342, %v3486
      %v3659 = vsel %vm3557, %v3344, %v3492
      %v3660 = vsel %vm3557, %v3346, %v3498
      %v3661 = vsel %vm3557, %v3348, %v3504
      %v3662 = vsel %vm3557, %v3350, %v3510
      %v3663 = vsel %vm3557, %v3352, %v3516
      %v3664 = vsel %vm3557, %v3354, %v3522
      %v3665 = vsel %vm3557, %v3356, %v3528
      %v3666 = vsel %vm3557, %v3358, %v3534
      %v3667 = vsel %vm3557, %v3360, %v3540
      %v3668 = vsel %vm3557, %v3362, %v3546
      %v3669 = vsel %vm3557, %v3364, %v3552
      %v3670 = vpack.c.bf16 %v3000, %v2997
      %v3671 = vpack.c.bf16 %v3001, %v2998
      %v3672 = vpack.c.bf16 %v3639, %v3638
      %v3673 = vpack.c.bf16 %v3335, %v3333
      %v3674 = vpack.c.bf16 %v3655, %v3654
      %v3675 = vpack.c.bf16 %v3560, %v3558
      %v3676 = vpack.c.bf16 %v3561, %v3559
      %v3677 = vpack.c.bf16 %v3006, %v3003
      %v3678 = vpack.c.bf16 %v3007, %v3004
      %v3679 = vpack.c.bf16 %v3641, %v3640
      %v3680 = vpack.c.bf16 %v3339, %v3337
      %v3681 = vpack.c.bf16 %v3657, %v3656
      %v3682 = vpack.c.bf16 %v3564, %v3562
      %v3683 = vpack.c.bf16 %v3565, %v3563
      %v3684 = vpack.c.bf16 %v3012, %v3009
      %v3685 = vpack.c.bf16 %v3013, %v3010
      %v3686 = vpack.c.bf16 %v3643, %v3642
      %v3687 = vpack.c.bf16 %v3343, %v3341
      %v3688 = vpack.c.bf16 %v3659, %v3658
      %v3689 = vpack.c.bf16 %v3568, %v3566
      %v3690 = vpack.c.bf16 %v3569, %v3567
      %v3691 = vpack.c.bf16 %v3018, %v3015
      %v3692 = vpack.c.bf16 %v3019, %v3016
      %v3693 = vpack.c.bf16 %v3645, %v3644
      %v3694 = vpack.c.bf16 %v3347, %v3345
      %v3695 = vpack.c.bf16 %v3661, %v3660
      %v3696 = vpack.c.bf16 %v3572, %v3570
      %v3697 = vpack.c.bf16 %v3573, %v3571
      %v3698 = vpack.c.bf16 %v3024, %v3021
      %v3699 = vpack.c.bf16 %v3025, %v3022
      %v3700 = vpack.c.bf16 %v3647, %v3646
      %v3701 = vpack.c.bf16 %v3351, %v3349
      %v3702 = vpack.c.bf16 %v3663, %v3662
      %v3703 = vpack.c.bf16 %v3576, %v3574
      %v3704 = vpack.c.bf16 %v3577, %v3575
      %v3705 = vpack.c.bf16 %v3030, %v3027
      %v3706 = vpack.c.bf16 %v3031, %v3028
      %v3707 = vpack.c.bf16 %v3649, %v3648
      %v3708 = vpack.c.bf16 %v3355, %v3353
      %v3709 = vpack.c.bf16 %v3665, %v3664
      %v3710 = vpack.c.bf16 %v3580, %v3578
      %v3711 = vpack.c.bf16 %v3581, %v3579
      %v3712 = vpack.c.bf16 %v3036, %v3033
      %v3713 = vpack.c.bf16 %v3037, %v3034
      %v3714 = vpack.c.bf16 %v3651, %v3650
      %v3715 = vpack.c.bf16 %v3359, %v3357
      %v3716 = vpack.c.bf16 %v3667, %v3666
      %v3717 = vpack.c.bf16 %v3584, %v3582
      %v3718 = vpack.c.bf16 %v3585, %v3583
      %v3719 = vpack.c.bf16 %v3042, %v3039
      %v3720 = vpack.c.bf16 %v3043, %v3040
      %v3721 = vpack.c.bf16 %v3653, %v3652
      %v3722 = vpack.c.bf16 %v3363, %v3361
      %v3723 = vpack.c.bf16 %v3669, %v3668
      %v3724 = vpack.c.bf16 %v3588, %v3586
      %v3725 = vpack.c.bf16 %v3589, %v3587
      %v3726 = vld [vmem:[%s7] sm:$0xff]
      %v3727 = vld [vmem:[%s7 + $0x8] sm:$0xff]
      %v3728 = vld [vmem:[%s7 + $0x10] sm:$0xff]
      %v3729 = vld [vmem:[%s7 + $0x18] sm:$0xff]
      %v3730 = vld [vmem:[%s7 + $0x20] sm:$0xff]
      %v3731 = vld [vmem:[%s7 + $0x28] sm:$0xff]
      %v3732 = vld [vmem:[%s7 + $0x30] sm:$0xff]
      %v3733 = vld [vmem:[%s7 + $0x38] sm:$0xff]
      %v3734 = vld [vmem:[%s7 + $0x40] sm:$0xff]
      %v3735 = vld [vmem:[%s7 + $0x48] sm:$0xff]
      %v3736 = vld [vmem:[%s7 + $0x50] sm:$0xff]
      %v3737 = vld [vmem:[%s7 + $0x58] sm:$0xff]
      %v3738 = vld [vmem:[%s7 + $0x60] sm:$0xff]
      %v3739 = vld [vmem:[%s7 + $0x68] sm:$0xff]
      %v3740 = vld [vmem:[%s7 + $0x70] sm:$0xff]
      %v3741 = vld [vmem:[%s7 + $0x78] sm:$0xff]
      %v3742 = vld [vmem:[%s7 + $0x80] sm:$0xff]
      %v3743 = vld [vmem:[%s7 + $0x88] sm:$0xff]
      %v3744 = vld [vmem:[%s7 + $0x90] sm:$0xff]
      %v3745 = vld [vmem:[%s7 + $0x98] sm:$0xff]
      %v3746 = vld [vmem:[%s7 + $0xa0] sm:$0xff]
      %v3747 = vld [vmem:[%s7 + $0xa8] sm:$0xff]
      %v3748 = vld [vmem:[%s7 + $0xb0] sm:$0xff]
      %v3749 = vld [vmem:[%s7 + $0xb8] sm:$0xff]
      %v3750 = vld [vmem:[%s7 + $0xc0] sm:$0xff]
      %v3751 = vld [vmem:[%s7 + $0xc8] sm:$0xff]
      %v3752 = vld [vmem:[%s7 + $0xd0] sm:$0xff]
      %v3753 = vld [vmem:[%s7 + $0xd8] sm:$0xff]
      %v3754 = vld [vmem:[%s7 + $0xe0] sm:$0xff]
      %v3755 = vld [vmem:[%s7 + $0xe8] sm:$0xff]
      %v3756 = vld [vmem:[%s7 + $0xf0] sm:$0xff]
      %v3757 = vld [vmem:[%s7 + $0xf8] sm:$0xff]
      %v3758 = vld [vmem:[%s7 + $0x100] sm:$0xff]
      %v3759 = vld [vmem:[%s7 + $0x108] sm:$0xff]
      %v3760 = vld [vmem:[%s7 + $0x110] sm:$0xff]
      %v3761 = vld [vmem:[%s7 + $0x118] sm:$0xff]
      %v3762 = vld [vmem:[%s7 + $0x120] sm:$0xff]
      %v3763 = vld [vmem:[%s7 + $0x128] sm:$0xff]
      %v3764 = vld [vmem:[%s7 + $0x130] sm:$0xff]
      %v3765 = vld [vmem:[%s7 + $0x138] sm:$0xff]
      %v3766 = vld [vmem:[%s7 + $0x140] sm:$0xff]
      %v3767 = vld [vmem:[%s7 + $0x148] sm:$0xff]
      %v3768 = vld [vmem:[%s7 + $0x150] sm:$0xff]
      %v3769 = vld [vmem:[%s7 + $0x158] sm:$0xff]
      %v3770 = vld [vmem:[%s7 + $0x160] sm:$0xff]
      %v3771 = vld [vmem:[%s7 + $0x168] sm:$0xff]
      %v3772 = vld [vmem:[%s7 + $0x170] sm:$0xff]
      %v3773 = vld [vmem:[%s7 + $0x178] sm:$0xff]
      %v3774 = vld [vmem:[%s7 + $0x180] sm:$0xff]
      %v3775 = vld [vmem:[%s7 + $0x188] sm:$0xff]
      %v3776 = vld [vmem:[%s7 + $0x190] sm:$0xff]
      %v3777 = vld [vmem:[%s7 + $0x198] sm:$0xff]
      %v3778 = vld [vmem:[%s7 + $0x1a0] sm:$0xff]
      %v3779 = vld [vmem:[%s7 + $0x1a8] sm:$0xff]
      %v3780 = vld [vmem:[%s7 + $0x1b0] sm:$0xff]
      %v3781 = vld [vmem:[%s7 + $0x1b8] sm:$0xff]
      %v3782 = vld [vmem:[%s7 + $0x1c0] sm:$0xff]
      %v3783 = vld [vmem:[%s7 + $0x1c8] sm:$0xff]
      %v3784 = vld [vmem:[%s7 + $0x1d0] sm:$0xff]
      %v3785 = vld [vmem:[%s7 + $0x1d8] sm:$0xff]
      %v3786 = vld [vmem:[%s7 + $0x1e0] sm:$0xff]
      %v3787 = vld [vmem:[%s7 + $0x1e8] sm:$0xff]
      %v3788 = vld [vmem:[%s7 + $0x1f0] sm:$0xff]
      %v3789 = vld [vmem:[%s7 + $0x1f8] sm:$0xff]
      %v3790 = vld [vmem:[%s7 + $0x200] sm:$0xff]
      %v3791 = vld [vmem:[%s7 + $0x208] sm:$0xff]
      %v3792 = vld [vmem:[%s7 + $0x210] sm:$0xff]
      %v3793 = vld [vmem:[%s7 + $0x218] sm:$0xff]
      %v3794 = vld [vmem:[%s7 + $0x220] sm:$0xff]
      %v3795 = vld [vmem:[%s7 + $0x228] sm:$0xff]
      %v3796 = vld [vmem:[%s7 + $0x230] sm:$0xff]
      %v3797 = vld [vmem:[%s7 + $0x238] sm:$0xff]
      %v3798 = vld [vmem:[%s7 + $0x240] sm:$0xff]
      %v3799 = vld [vmem:[%s7 + $0x248] sm:$0xff]
      %v3800 = vld [vmem:[%s7 + $0x250] sm:$0xff]
      %v3801 = vld [vmem:[%s7 + $0x258] sm:$0xff]
      %v3802 = vld [vmem:[%s7 + $0x260] sm:$0xff]
      %v3803 = vld [vmem:[%s7 + $0x268] sm:$0xff]
      %v3804 = vld [vmem:[%s7 + $0x270] sm:$0xff]
      %v3805 = vld [vmem:[%s7 + $0x278] sm:$0xff]
      %v3806 = vld [vmem:[%s7 + $0x280] sm:$0xff]
      %v3807 = vld [vmem:[%s7 + $0x288] sm:$0xff]
      %v3808 = vld [vmem:[%s7 + $0x290] sm:$0xff]
      %v3809 = vld [vmem:[%s7 + $0x298] sm:$0xff]
      %v3810 = vld [vmem:[%s7 + $0x2a0] sm:$0xff]
      %v3811 = vld [vmem:[%s7 + $0x2a8] sm:$0xff]
      %v3812 = vld [vmem:[%s7 + $0x2b0] sm:$0xff]
      %v3813 = vld [vmem:[%s7 + $0x2b8] sm:$0xff]
      %v3814 = vld [vmem:[%s7 + $0x2c0] sm:$0xff]
      %v3815 = vld [vmem:[%s7 + $0x2c8] sm:$0xff]
      %v3816 = vld [vmem:[%s7 + $0x2d0] sm:$0xff]
      %v3817 = vld [vmem:[%s7 + $0x2d8] sm:$0xff]
      %v3818 = vld [vmem:[%s7 + $0x2e0] sm:$0xff]
      %v3819 = vld [vmem:[%s7 + $0x2e8] sm:$0xff]
      %v3820 = vld [vmem:[%s7 + $0x2f0] sm:$0xff]
      %v3821 = vld [vmem:[%s7 + $0x2f8] sm:$0xff]
      %v3822 = vld [vmem:[%s7 + $0x300] sm:$0xff]
      %v3823 = vld [vmem:[%s7 + $0x308] sm:$0xff]
      %v3824 = vld [vmem:[%s7 + $0x310] sm:$0xff]
      %v3825 = vld [vmem:[%s7 + $0x318] sm:$0xff]
      %v3826 = vld [vmem:[%s7 + $0x320] sm:$0xff]
      %v3827 = vld [vmem:[%s7 + $0x328] sm:$0xff]
      %v3828 = vld [vmem:[%s7 + $0x330] sm:$0xff]
      %v3829 = vld [vmem:[%s7 + $0x338] sm:$0xff]
      %v3830 = vld [vmem:[%s7 + $0x340] sm:$0xff]
      %v3831 = vld [vmem:[%s7 + $0x348] sm:$0xff]
      %v3832 = vld [vmem:[%s7 + $0x350] sm:$0xff]
      %v3833 = vld [vmem:[%s7 + $0x358] sm:$0xff]
      %v3834 = vld [vmem:[%s8] sm:$0x3]
      %v3836 = vlaneseq
      %v3837 = vshrl.u32 %v3836, 7
      %v3838 = vsub.s32 0, %v3837
      %v3839 = vrot.slane %v3834, %v3838
      %v3840 = vlaneseq
      %v3841 = vshrl.u32 %v3840, 7
      %v3842 = vsub.s32 1, %v3841
      %v3843 = vrot.slane %v3834, %v3842
      %v3954 = vunpack.c.l.b16 %v3726
      %v3955 = vunpack.c.h.b16 %v3726
      %v3956 = vunpack.c.l.b16 %v3727
      %v3957 = vunpack.c.h.b16 %v3727
      %v3958 = vunpack.c.l.b16 %v3728
      %v3959 = vunpack.c.h.b16 %v3728
      %v3960 = vunpack.c.l.b16 %v3729
      %v3961 = vunpack.c.h.b16 %v3729
      %v3962 = vunpack.c.l.b16 %v3730
      %v3963 = vunpack.c.h.b16 %v3730
      %v3964 = vunpack.c.l.b16 %v3731
      %v3965 = vunpack.c.h.b16 %v3731
      %v3966 = vunpack.c.l.b16 %v3732
      %v3967 = vunpack.c.h.b16 %v3732
      %v3968 = vunpack.c.l.b16 %v3733
      %v3969 = vunpack.c.h.b16 %v3733
      %v3970 = vunpack.c.l.b16 %v3734
      %v3971 = vunpack.c.h.b16 %v3734
      %v3972 = vunpack.c.l.b16 %v3735
      %v3973 = vunpack.c.h.b16 %v3735
      %v3974 = vunpack.c.l.b16 %v3736
      %v3975 = vunpack.c.h.b16 %v3736
      %v3976 = vunpack.c.l.b16 %v3737
      %v3977 = vunpack.c.h.b16 %v3737
      %v3978 = vunpack.c.l.b16 %v3738
      %v3979 = vunpack.c.h.b16 %v3738
      %v3980 = vunpack.c.l.b16 %v3739
      %v3981 = vunpack.c.h.b16 %v3739
      %v3982 = vunpack.c.l.b16 %v3740
      %v3983 = vunpack.c.h.b16 %v3740
      %v3984 = vunpack.c.l.b16 %v3741
      %v3985 = vunpack.c.h.b16 %v3741
      %v3986 = vunpack.c.l.b16 %v3742
      %v3987 = vunpack.c.h.b16 %v3742
      %v3988 = vunpack.c.l.b16 %v3743
      %v3989 = vunpack.c.h.b16 %v3743
      %v3990 = vunpack.c.l.b16 %v3744
      %v3991 = vunpack.c.h.b16 %v3744
      %v3992 = vunpack.c.l.b16 %v3745
      %v3993 = vunpack.c.h.b16 %v3745
      %v3994 = vunpack.c.l.b16 %v3746
      %v3995 = vunpack.c.h.b16 %v3746
      %v3996 = vunpack.c.l.b16 %v3747
      %v3997 = vunpack.c.h.b16 %v3747
      %v3998 = vunpack.c.l.b16 %v3748
      %v3999 = vunpack.c.h.b16 %v3748
      %v4000 = vunpack.c.l.b16 %v3749
      %v4001 = vunpack.c.h.b16 %v3749
      %v4002 = vunpack.c.l.b16 %v3750
      %v4003 = vunpack.c.h.b16 %v3750
      %v4004 = vunpack.c.l.b16 %v3751
      %v4005 = vunpack.c.h.b16 %v3751
      %v4006 = vunpack.c.l.b16 %v3752
      %v4007 = vunpack.c.h.b16 %v3752
      %v4008 = vunpack.c.l.b16 %v3753
      %v4009 = vunpack.c.h.b16 %v3753
      %v4010 = vunpack.c.l.b16 %v3754
      %v4011 = vunpack.c.h.b16 %v3754
      %v4012 = vunpack.c.l.b16 %v3755
      %v4013 = vunpack.c.h.b16 %v3755
      %v4014 = vunpack.c.l.b16 %v3756
      %v4015 = vunpack.c.h.b16 %v3756
      %v4016 = vunpack.c.l.b16 %v3757
      %v4017 = vunpack.c.h.b16 %v3757
      %v4018 = vunpack.c.l.b16 %v3758
      %v4019 = vunpack.c.h.b16 %v3758
      %v4020 = vunpack.c.l.b16 %v3759
      %v4021 = vunpack.c.h.b16 %v3759
      %v4022 = vunpack.c.l.b16 %v3760
      %v4023 = vunpack.c.h.b16 %v3760
      %v4024 = vunpack.c.l.b16 %v3761
      %v4025 = vunpack.c.h.b16 %v3761
      %v4026 = vunpack.c.l.b16 %v3762
      %v4027 = vunpack.c.h.b16 %v3762
      %v4028 = vunpack.c.l.b16 %v3763
      %v4029 = vunpack.c.h.b16 %v3763
      %v4030 = vunpack.c.l.b16 %v3764
      %v4031 = vunpack.c.h.b16 %v3764
      %v4032 = vunpack.c.l.b16 %v3765
      %v4033 = vunpack.c.h.b16 %v3765
      %v4034 = vunpack.c.l.b16 %v3766
      %v4035 = vunpack.c.h.b16 %v3766
      %v4036 = vunpack.c.l.b16 %v3767
      %v4037 = vunpack.c.h.b16 %v3767
      %v4038 = vunpack.c.l.b16 %v3768
      %v4039 = vunpack.c.h.b16 %v3768
      %v4040 = vunpack.c.l.b16 %v3769
      %v4041 = vunpack.c.h.b16 %v3769
      %v4042 = vunpack.c.l.b16 %v3770
      %v4043 = vunpack.c.h.b16 %v3770
      %v4044 = vunpack.c.l.b16 %v3771
      %v4045 = vunpack.c.h.b16 %v3771
      %v4046 = vunpack.c.l.b16 %v3772
      %v4047 = vunpack.c.h.b16 %v3772
      %v4048 = vunpack.c.l.b16 %v3773
      %v4049 = vunpack.c.h.b16 %v3773
      %v4050 = vunpack.c.l.b16 %v3774
      %v4051 = vunpack.c.h.b16 %v3774
      %v4052 = vunpack.c.l.b16 %v3775
      %v4053 = vunpack.c.h.b16 %v3775
      %v4054 = vunpack.c.l.b16 %v3776
      %v4055 = vunpack.c.h.b16 %v3776
      %v4056 = vunpack.c.l.b16 %v3777
      %v4057 = vunpack.c.h.b16 %v3777
      %v4058 = vunpack.c.l.b16 %v3778
      %v4059 = vunpack.c.h.b16 %v3778
      %v4060 = vunpack.c.l.b16 %v3779
      %v4061 = vunpack.c.h.b16 %v3779
      %v4062 = vunpack.c.l.b16 %v3780
      %v4063 = vunpack.c.h.b16 %v3780
      %v4064 = vunpack.c.l.b16 %v3781
      %v4065 = vunpack.c.h.b16 %v3781
      %v4066 = vunpack.c.l.b16 %v3782
      %v4067 = vunpack.c.h.b16 %v3782
      %v4068 = vunpack.c.l.b16 %v3783
      %v4069 = vunpack.c.h.b16 %v3783
      %v4070 = vunpack.c.l.b16 %v3784
      %v4071 = vunpack.c.h.b16 %v3784
      %v4072 = vunpack.c.l.b16 %v3785
      %v4073 = vunpack.c.h.b16 %v3785
      %v4074 = vunpack.c.l.b16 %v3786
      %v4075 = vunpack.c.h.b16 %v3786
      %v4076 = vunpack.c.l.b16 %v3787
      %v4077 = vunpack.c.h.b16 %v3787
      %v4078 = vunpack.c.l.b16 %v3788
      %v4079 = vunpack.c.h.b16 %v3788
      %v4080 = vunpack.c.l.b16 %v3789
      %v4081 = vunpack.c.h.b16 %v3789
      %v4082 = vunpack.c.l.b16 %v3790
      %v4083 = vunpack.c.h.b16 %v3790
      %v4084 = vunpack.c.l.b16 %v3791
      %v4085 = vunpack.c.h.b16 %v3791
      %v4086 = vunpack.c.l.b16 %v3792
      %v4087 = vunpack.c.h.b16 %v3792
      %v4088 = vunpack.c.l.b16 %v3793
      %v4089 = vunpack.c.h.b16 %v3793
      %v4090 = vunpack.c.l.b16 %v3794
      %v4091 = vunpack.c.h.b16 %v3794
      %v4092 = vunpack.c.l.b16 %v3795
      %v4093 = vunpack.c.h.b16 %v3795
      %v4094 = vunpack.c.l.b16 %v3796
      %v4095 = vunpack.c.h.b16 %v3796
      %v4096 = vunpack.c.l.b16 %v3797
      %v4097 = vunpack.c.h.b16 %v3797
      %v4098 = vunpack.c.l.b16 %v3798
      %v4099 = vunpack.c.h.b16 %v3798
      %v4100 = vunpack.c.l.b16 %v3799
      %v4101 = vunpack.c.h.b16 %v3799
      %v4102 = vunpack.c.l.b16 %v3800
      %v4103 = vunpack.c.h.b16 %v3800
      %v4104 = vunpack.c.l.b16 %v3801
      %v4105 = vunpack.c.h.b16 %v3801
      %v4106 = vunpack.c.l.b16 %v3802
      %v4107 = vunpack.c.h.b16 %v3802
      %v4108 = vunpack.c.l.b16 %v3803
      %v4109 = vunpack.c.h.b16 %v3803
      %v4110 = vunpack.c.l.b16 %v3804
      %v4111 = vunpack.c.h.b16 %v3804
      %v4112 = vunpack.c.l.b16 %v3805
      %v4113 = vunpack.c.h.b16 %v3805
      %v4114 = vunpack.c.l.b16 %v3806
      %v4115 = vunpack.c.h.b16 %v3806
      %v4116 = vunpack.c.l.b16 %v3807
      %v4117 = vunpack.c.h.b16 %v3807
      %v4118 = vunpack.c.l.b16 %v3808
      %v4119 = vunpack.c.h.b16 %v3808
      %v4120 = vunpack.c.l.b16 %v3809
      %v4121 = vunpack.c.h.b16 %v3809
      %v4122 = vunpack.c.l.b16 %v3810
      %v4123 = vunpack.c.h.b16 %v3810
      %v4124 = vunpack.c.l.b16 %v3811
      %v4125 = vunpack.c.h.b16 %v3811
      %v4126 = vunpack.c.l.b16 %v3812
      %v4127 = vunpack.c.h.b16 %v3812
      %v4128 = vunpack.c.l.b16 %v3813
      %v4129 = vunpack.c.h.b16 %v3813
      %v4130 = vunpack.c.l.b16 %v3814
      %v4131 = vunpack.c.h.b16 %v3814
      %v4132 = vunpack.c.l.b16 %v3815
      %v4133 = vunpack.c.h.b16 %v3815
      %v4134 = vunpack.c.l.b16 %v3816
      %v4135 = vunpack.c.h.b16 %v3816
      %v4136 = vunpack.c.l.b16 %v3817
      %v4137 = vunpack.c.h.b16 %v3817
      %v4138 = vunpack.c.l.b16 %v3818
      %v4139 = vunpack.c.h.b16 %v3818
      %v4140 = vunpack.c.l.b16 %v3819
      %v4141 = vunpack.c.h.b16 %v3819
      %v4142 = vunpack.c.l.b16 %v3820
      %v4143 = vunpack.c.h.b16 %v3820
      %v4144 = vunpack.c.l.b16 %v3821
      %v4145 = vunpack.c.h.b16 %v3821
      %v4146 = vunpack.c.l.b16 %v3822
      %v4147 = vunpack.c.h.b16 %v3822
      %v4148 = vunpack.c.l.b16 %v3823
      %v4149 = vunpack.c.h.b16 %v3823
      %v4150 = vunpack.c.l.b16 %v3824
      %v4151 = vunpack.c.h.b16 %v3824
      %v4152 = vunpack.c.l.b16 %v3825
      %v4153 = vunpack.c.h.b16 %v3825
      %v4154 = vunpack.c.l.b16 %v3826
      %v4155 = vunpack.c.h.b16 %v3826
      %v4156 = vunpack.c.l.b16 %v3827
      %v4157 = vunpack.c.h.b16 %v3827
      %v4158 = vunpack.c.l.b16 %v3828
      %v4159 = vunpack.c.h.b16 %v3828
      %v4160 = vunpack.c.l.b16 %v3829
      %v4161 = vunpack.c.h.b16 %v3829
      %v4162 = vunpack.c.l.b16 %v3830
      %v4163 = vunpack.c.h.b16 %v3830
      %v4164 = vunpack.c.l.b16 %v3831
      %v4165 = vunpack.c.h.b16 %v3831
      %v4166 = vunpack.c.l.b16 %v3832
      %v4167 = vunpack.c.h.b16 %v3832
      %v4168 = vunpack.c.l.b16 %v3833
      %v4169 = vunpack.c.h.b16 %v3833
      %v4170 = vpack.c.b16 %v3956, %v3954
      %v4171 = vpack.c.b16 %v3957, %v3955
      %v4172 = vpack.c.b16 %v3960, %v3958
      %v4173 = vpack.c.b16 %v3961, %v3959
      %v4174 = vpack.c.b16 %v3964, %v3962
      %v4175 = vpack.c.b16 %v3965, %v3963
      %v4176 = vpack.c.b16 %v3968, %v3966
      %v4177 = vpack.c.b16 %v3969, %v3967
      %v4178 = vpack.c.b16 %v3972, %v3970
      %v4179 = vpack.c.b16 %v3973, %v3971
      %v4180 = vpack.c.b16 %v3976, %v3974
      %v4181 = vpack.c.b16 %v3977, %v3975
      %v4182 = vpack.c.b16 %v3980, %v3978
      %v4183 = vpack.c.b16 %v3981, %v3979
      %v4184 = vpack.c.b16 %v3984, %v3982
      %v4185 = vpack.c.b16 %v3985, %v3983
      %v4186 = vpack.c.b16 %v3988, %v3986
      %v4187 = vpack.c.b16 %v3989, %v3987
      %v4188 = vpack.c.b16 %v3992, %v3990
      %v4189 = vpack.c.b16 %v3993, %v3991
      %v4190 = vpack.c.b16 %v3996, %v3994
      %v4191 = vpack.c.b16 %v3997, %v3995
      %v4192 = vpack.c.b16 %v4000, %v3998
      %v4193 = vpack.c.b16 %v4001, %v3999
      %v4194 = vpack.c.b16 %v4004, %v4002
      %v4195 = vpack.c.b16 %v4005, %v4003
      %v4196 = vpack.c.b16 %v4008, %v4006
      %v4197 = vpack.c.b16 %v4009, %v4007
      %v4198 = vpack.c.b16 %v4012, %v4010
      %v4199 = vpack.c.b16 %v4013, %v4011
      %v4200 = vpack.c.b16 %v4016, %v4014
      %v4201 = vpack.c.b16 %v4017, %v4015
      %v4202 = vpack.c.b16 %v4020, %v4018
      %v4203 = vpack.c.b16 %v4021, %v4019
      %v4204 = vpack.c.b16 %v4024, %v4022
      %v4205 = vpack.c.b16 %v4025, %v4023
      %v4206 = vpack.c.b16 %v4028, %v4026
      %v4207 = vpack.c.b16 %v4029, %v4027
      %v4208 = vpack.c.b16 %v4032, %v4030
      %v4209 = vpack.c.b16 %v4033, %v4031
      %v4210 = vpack.c.b16 %v4036, %v4034
      %v4211 = vpack.c.b16 %v4037, %v4035
      %v4212 = vpack.c.b16 %v4040, %v4038
      %v4213 = vpack.c.b16 %v4041, %v4039
      %v4214 = vpack.c.b16 %v4044, %v4042
      %v4215 = vpack.c.b16 %v4045, %v4043
      %v4216 = vpack.c.b16 %v4048, %v4046
      %v4217 = vpack.c.b16 %v4049, %v4047
      %v4218 = vpack.c.b16 %v4052, %v4050
      %v4219 = vpack.c.b16 %v4053, %v4051
      %v4220 = vpack.c.b16 %v4056, %v4054
      %v4221 = vpack.c.b16 %v4057, %v4055
      %v4222 = vpack.c.b16 %v4060, %v4058
      %v4223 = vpack.c.b16 %v4061, %v4059
      %v4224 = vpack.c.b16 %v4064, %v4062
      %v4225 = vpack.c.b16 %v4065, %v4063
      %v4226 = vpack.c.b16 %v4068, %v4066
      %v4227 = vpack.c.b16 %v4069, %v4067
      %v4228 = vpack.c.b16 %v4072, %v4070
      %v4229 = vpack.c.b16 %v4073, %v4071
      %v4230 = vpack.c.b16 %v4076, %v4074
      %v4231 = vpack.c.b16 %v4077, %v4075
      %v4232 = vpack.c.b16 %v4080, %v4078
      %v4233 = vpack.c.b16 %v4081, %v4079
      %v4234 = vpack.c.b16 %v4084, %v4082
      %v4235 = vpack.c.b16 %v4085, %v4083
      %v4236 = vpack.c.b16 %v4088, %v4086
      %v4237 = vpack.c.b16 %v4089, %v4087
      %v4238 = vpack.c.b16 %v4092, %v4090
      %v4239 = vpack.c.b16 %v4093, %v4091
      %v4240 = vpack.c.b16 %v4096, %v4094
      %v4241 = vpack.c.b16 %v4097, %v4095
      %v4242 = vpack.c.b16 %v4100, %v4098
      %v4243 = vpack.c.b16 %v4101, %v4099
      %v4244 = vpack.c.b16 %v4104, %v4102
      %v4245 = vpack.c.b16 %v4105, %v4103
      %v4246 = vpack.c.b16 %v4108, %v4106
      %v4247 = vpack.c.b16 %v4109, %v4107
      %v4248 = vpack.c.b16 %v4112, %v4110
      %v4249 = vpack.c.b16 %v4113, %v4111
      %v4250 = vpack.c.b16 %v4116, %v4114
      %v4251 = vpack.c.b16 %v4117, %v4115
      %v4252 = vpack.c.b16 %v4120, %v4118
      %v4253 = vpack.c.b16 %v4121, %v4119
      %v4254 = vpack.c.b16 %v4124, %v4122
      %v4255 = vpack.c.b16 %v4125, %v4123
      %v4256 = vpack.c.b16 %v4128, %v4126
      %v4257 = vpack.c.b16 %v4129, %v4127
      %v4258 = vpack.c.b16 %v4132, %v4130
      %v4259 = vpack.c.b16 %v4133, %v4131
      %v4260 = vpack.c.b16 %v4136, %v4134
      %v4261 = vpack.c.b16 %v4137, %v4135
      %v4262 = vpack.c.b16 %v4140, %v4138
      %v4263 = vpack.c.b16 %v4141, %v4139
      %v4264 = vpack.c.b16 %v4144, %v4142
      %v4265 = vpack.c.b16 %v4145, %v4143
      %v4266 = vpack.c.b16 %v4148, %v4146
      %v4267 = vpack.c.b16 %v4149, %v4147
      %v4268 = vpack.c.b16 %v4152, %v4150
      %v4269 = vpack.c.b16 %v4153, %v4151
      %v4270 = vpack.c.b16 %v4156, %v4154
      %v4271 = vpack.c.b16 %v4157, %v4155
      %v4272 = vpack.c.b16 %v4160, %v4158
      %v4273 = vpack.c.b16 %v4161, %v4159
      %v4274 = vpack.c.b16 %v4164, %v4162
      %v4275 = vpack.c.b16 %v4165, %v4163
      %v4276 = vpack.c.b16 %v4168, %v4166
      %v4277 = vpack.c.b16 %v4169, %v4167
      %vm4386 = vcmask 785408
      %v4388 = vsel %vm4386, %v3676, 0
      %v4391 = vsel %vm4386, %v3683, 0
      %v4394 = vsel %vm4386, %v3690, 0
      %v4397 = vsel %vm4386, %v3697, 0
      %v4400 = vsel %vm4386, %v3704, 0
      %v4403 = vsel %vm4386, %v3711, 0
      %v4406 = vsel %vm4386, %v3718, 0
      %v4409 = vsel %vm4386, %v3725, 0
      %4411 = vmatprep.subr.bf16.mxu0 %v4171
      %4412 = vmatpush1.bf16.msra.mxu0 %v4170
      %4413 = vmatprep.subr.bf16.mxu0 %v4173
      %4414 = vmatpush1.bf16.msra.mxu0 %v4172
      %4415 = vmatprep.subr.bf16.mxu0 %v4175
      %4416 = vmatpush1.bf16.msra.mxu0 %v4174
      %4417 = vmatprep.subr.bf16.mxu0 %v4177
      %4418 = vmatpush1.bf16.msra.mxu0 %v4176
      %4419 = vmatprep.subr.bf16.mxu0 %v4179
      %4420 = vmatpush1.bf16.msra.mxu0 %v4178
      %4421 = vmatprep.subr.bf16.mxu0 %v4181
      %4422 = vmatpush1.bf16.msra.mxu0 %v4180
      %4423 = vmatprep.subr.bf16.mxu0 %v4183
      %4424 = vmatpush1.bf16.msra.mxu0 %v4182
      %4425 = vmatprep.subr.bf16.mxu0 %v4185
      %4426 = vmatpush1.bf16.msra.mxu0 %v4184
      %4427 = vmatprep.subr.bf16.mxu0 %v4187
      %4428 = vmatpush1.bf16.msra.mxu0 %v4186
      %4429 = vmatprep.subr.bf16.mxu0 %v4189
      %4430 = vmatpush1.bf16.msra.mxu0 %v4188
      %4431 = vmatprep.subr.bf16.mxu0 %v4191
      %4432 = vmatpush1.bf16.msra.mxu0 %v4190
      %4433 = vmatprep.subr.bf16.mxu0 %v4193
      %4434 = vmatpush1.bf16.msra.mxu0 %v4192
      %4435 = vmatprep.subr.bf16.mxu0 %v4195
      %4436 = vmatpush1.bf16.msra.mxu0 %v4194
      %4437 = vmatprep.subr.bf16.mxu0 %v4197
      %4438 = vmatpush1.bf16.msra.mxu0 %v4196
      %4439 = vmatprep.subr.bf16.mxu0 %v4199
      %4440 = vmatpush1.bf16.msra.mxu0 %v4198
      %4441 = vmatprep.subr.bf16.mxu0 %v4201
      %4442 = vmatpush1.bf16.msra.mxu0 %v4200
      %4443 = vmatprep.mubr.bf16.mxu0 %v3671
      %4444 = vmatmul.mubr.bf16.gmra.mrb[0].mxu0 %v3670
      %v4445 = vpop.f32.mrb[0].mxu0
      %v4446 = vadd.f32 %v3839, %v4445
      %v4447 = vpop.f32.mrb[0].mxu0
      %v4448 = vadd.f32 %v3843, %v4447
      %v4449 = vpop.f32.mrb[0].mxu0
      %v4450 = vadd.f32 %v3839, %v4449
      %v4451 = vpop.f32.mrb[0].mxu0
      %v4452 = vadd.f32 %v3843, %v4451
      %4453 = vmatprep.mubr.bf16.mxu0 %v3678
      %4454 = vmatmul.mubr.bf16.gmra.mrb[0].mxu0 %v3677
      %v4455 = vpop.f32.mrb[0].mxu0
      %v4456 = vadd.f32 %v3839, %v4455
      %v4457 = vpop.f32.mrb[0].mxu0
      %v4458 = vadd.f32 %v3843, %v4457
      %v4459 = vpop.f32.mrb[0].mxu0
      %v4460 = vadd.f32 %v3839, %v4459
      %v4461 = vpop.f32.mrb[0].mxu0
      %v4462 = vadd.f32 %v3843, %v4461
      %4463 = vmatprep.mubr.bf16.mxu0 %v3685
      %4464 = vmatmul.mubr.bf16.gmra.mrb[0].mxu0 %v3684
      %v4465 = vpop.f32.mrb[0].mxu0
      %v4466 = vadd.f32 %v3839, %v4465
      %v4467 = vpop.f32.mrb[0].mxu0
      %v4468 = vadd.f32 %v3843, %v4467
      %v4469 = vpop.f32.mrb[0].mxu0
      %v4470 = vadd.f32 %v3839, %v4469
      %v4471 = vpop.f32.mrb[0].mxu0
      %v4472 = vadd.f32 %v3843, %v4471
      %4473 = vmatprep.mubr.bf16.mxu0 %v3692
      %4474 = vmatmul.mubr.bf16.gmra.mrb[0].mxu0 %v3691
      %v4475 = vpop.f32.mrb[0].mxu0
      %v4476 = vadd.f32 %v3839, %v4475
      %v4477 = vpop.f32.mrb[0].mxu0
      %v4478 = vadd.f32 %v3843, %v4477
      %v4479 = vpop.f32.mrb[0].mxu0
      %v4480 = vadd.f32 %v3839, %v4479
      %v4481 = vpop.f32.mrb[0].mxu0
      %v4482 = vadd.f32 %v3843, %v4481
      %4483 = vmatprep.mubr.bf16.mxu0 %v3699
      %4484 = vmatmul.mubr.bf16.gmra.mrb[0].mxu0 %v3698
      %v4485 = vpop.f32.mrb[0].mxu0
      %v4486 = vadd.f32 %v3839, %v4485
      %v4487 = vpop.f32.mrb[0].mxu0
      %v4488 = vadd.f32 %v3843, %v4487
      %v4489 = vpop.f32.mrb[0].mxu0
      %v4490 = vadd.f32 %v3839, %v4489
      %v4491 = vpop.f32.mrb[0].mxu0
      %v4492 = vadd.f32 %v3843, %v4491
      %4493 = vmatprep.mubr.bf16.mxu0 %v3706
      %4494 = vmatmul.mubr.bf16.gmra.mrb[0].mxu0 %v3705
      %v4495 = vpop.f32.mrb[0].mxu0
      %v4496 = vadd.f32 %v3839, %v4495
      %v4497 = vpop.f32.mrb[0].mxu0
      %v4498 = vadd.f32 %v3843, %v4497
      %v4499 = vpop.f32.mrb[0].mxu0
      %v4500 = vadd.f32 %v3839, %v4499
      %v4501 = vpop.f32.mrb[0].mxu0
      %v4502 = vadd.f32 %v3843, %v4501
      %4503 = vmatprep.mubr.bf16.mxu0 %v3713
      %4504 = vmatmul.mubr.bf16.gmra.mrb[0].mxu0 %v3712
      %v4505 = vpop.f32.mrb[0].mxu0
      %v4506 = vadd.f32 %v3839, %v4505
      %v4507 = vpop.f32.mrb[0].mxu0
      %v4508 = vadd.f32 %v3843, %v4507
      %v4509 = vpop.f32.mrb[0].mxu0
      %v4510 = vadd.f32 %v3839, %v4509
      %v4511 = vpop.f32.mrb[0].mxu0
      %v4512 = vadd.f32 %v3843, %v4511
      %4513 = vmatprep.mubr.bf16.mxu0 %v3720
      %4514 = vmatmul.mubr.bf16.gmra.mrb[0].mxu0 %v3719
      %v4515 = vpop.f32.mrb[0].mxu0
      %v4516 = vadd.f32 %v3839, %v4515
      %v4517 = vpop.f32.mrb[0].mxu0
      %v4518 = vadd.f32 %v3843, %v4517
      %v4519 = vpop.f32.mrb[0].mxu0
      %v4520 = vadd.f32 %v3839, %v4519
      %v4521 = vpop.f32.mrb[0].mxu0
      %v4522 = vadd.f32 %v3843, %v4521
      %4523 = vdwg.mxu0
      %4524 = vmatprep.subr.bf16.mxu0 %v4203
      %4525 = vmatpush1.bf16.msra.mxu0 %v4202
      %4526 = vmatprep.subr.bf16.mxu0 %v4205
      %4527 = vmatpush1.bf16.msra.mxu0 %v4204
      %4528 = vmatprep.subr.bf16.mxu0 %v4207
      %4529 = vmatpush1.bf16.msra.mxu0 %v4206
      %4530 = vmatprep.subr.bf16.mxu0 %v4209
      %4531 = vmatpush1.bf16.msra.mxu0 %v4208
      %4532 = vmatprep.subr.bf16.mxu0 %v4211
      %4533 = vmatpush1.bf16.msra.mxu0 %v4210
      %4534 = vmatprep.subr.bf16.mxu0 %v4213
      %4535 = vmatpush1.bf16.msra.mxu0 %v4212
      %4536 = vmatprep.subr.bf16.mxu0 %v4215
      %4537 = vmatpush1.bf16.msra.mxu0 %v4214
      %4538 = vmatprep.subr.bf16.mxu0 %v4217
      %4539 = vmatpush1.bf16.msra.mxu0 %v4216
      %4540 = vmatprep.subr.bf16.mxu0 %v4219
      %4541 = vmatpush1.bf16.msra.mxu0 %v4218
      %4542 = vmatprep.subr.bf16.mxu0 %v4221
      %4543 = vmatpush1.bf16.msra.mxu0 %v4220
      %4544 = vmatprep.subr.bf16.mxu0 %v4223
      %4545 = vmatpush1.bf16.msra.mxu0 %v4222
      %4546 = vmatprep.subr.bf16.mxu0 %v4225
      %4547 = vmatpush1.bf16.msra.mxu0 %v4224
      %4548 = vmatprep.subr.bf16.mxu0 %v4227
      %4549 = vmatpush1.bf16.msra.mxu0 %v4226
      %4550 = vmatprep.subr.bf16.mxu0 %v4229
      %4551 = vmatpush1.bf16.msra.mxu0 %v4228
      %4552 = vmatprep.subr.bf16.mxu0 %v4231
      %4553 = vmatpush1.bf16.msra.mxu0 %v4230
      %4554 = vmatprep.subr.bf16.mxu0 %v4233
      %4555 = vmatpush1.bf16.msra.mxu0 %v4232
      %4556 = vmatprep.mubr.bf16.mxu0 %v3673
      %4557 = vmatmul.mubr.bf16.gmra.mrb[0].mxu0 %v3672
      %v4558 = vpop.f32.mrb[0].mxu0
      %v4559 = vadd.f32 %v4446, %v4558
      %v4560 = vpop.f32.mrb[0].mxu0
      %v4561 = vadd.f32 %v4448, %v4560
      %v4562 = vpop.f32.mrb[0].mxu0
      %v4563 = vadd.f32 %v4450, %v4562
      %v4564 = vpop.f32.mrb[0].mxu0
      %v4565 = vadd.f32 %v4452, %v4564
      %4566 = vmatprep.mubr.bf16.mxu0 %v3680
      %4567 = vmatmul.mubr.bf16.gmra.mrb[0].mxu0 %v3679
      %v4568 = vpop.f32.mrb[0].mxu0
      %v4569 = vadd.f32 %v4456, %v4568
      %v4570 = vpop.f32.mrb[0].mxu0
      %v4571 = vadd.f32 %v4458, %v4570
      %v4572 = vpop.f32.mrb[0].mxu0
      %v4573 = vadd.f32 %v4460, %v4572
      %v4574 = vpop.f32.mrb[0].mxu0
      %v4575 = vadd.f32 %v4462, %v4574
      %4576 = vmatprep.mubr.bf16.mxu0 %v3687
      %4577 = vmatmul.mubr.bf16.gmra.mrb[0].mxu0 %v3686
      %v4578 = vpop.f32.mrb[0].mxu0
      %v4579 = vadd.f32 %v4466, %v4578
      %v4580 = vpop.f32.mrb[0].mxu0
      %v4581 = vadd.f32 %v4468, %v4580
      %v4582 = vpop.f32.mrb[0].mxu0
      %v4583 = vadd.f32 %v4470, %v4582
      %v4584 = vpop.f32.mrb[0].mxu0
      %v4585 = vadd.f32 %v4472, %v4584
      %4586 = vmatprep.mubr.bf16.mxu0 %v3694
      %4587 = vmatmul.mubr.bf16.gmra.mrb[0].mxu0 %v3693
      %v4588 = vpop.f32.mrb[0].mxu0
      %v4589 = vadd.f32 %v4476, %v4588
      %v4590 = vpop.f32.mrb[0].mxu0
      %v4591 = vadd.f32 %v4478, %v4590
      %v4592 = vpop.f32.mrb[0].mxu0
      %v4593 = vadd.f32 %v4480, %v4592
      %v4594 = vpop.f32.mrb[0].mxu0
      %v4595 = vadd.f32 %v4482, %v4594
      %4596 = vmatprep.mubr.bf16.mxu0 %v3701
      %4597 = vmatmul.mubr.bf16.gmra.mrb[0].mxu0 %v3700
      %v4598 = vpop.f32.mrb[0].mxu0
      %v4599 = vadd.f32 %v4486, %v4598
      %v4600 = vpop.f32.mrb[0].mxu0
      %v4601 = vadd.f32 %v4488, %v4600
      %v4602 = vpop.f32.mrb[0].mxu0
      %v4603 = vadd.f32 %v4490, %v4602
      %v4604 = vpop.f32.mrb[0].mxu0
      %v4605 = vadd.f32 %v4492, %v4604
      %4606 = vmatprep.mubr.bf16.mxu0 %v3708
      %4607 = vmatmul.mubr.bf16.gmra.mrb[0].mxu0 %v3707
      %v4608 = vpop.f32.mrb[0].mxu0
      %v4609 = vadd.f32 %v4496, %v4608
      %v4610 = vpop.f32.mrb[0].mxu0
      %v4611 = vadd.f32 %v4498, %v4610
      %v4612 = vpop.f32.mrb[0].mxu0
      %v4613 = vadd.f32 %v4500, %v4612
      %v4614 = vpop.f32.mrb[0].mxu0
      %v4615 = vadd.f32 %v4502, %v4614
      %4616 = vmatprep.mubr.bf16.mxu0 %v3715
      %4617 = vmatmul.mubr.bf16.gmra.mrb[0].mxu0 %v3714
      %v4618 = vpop.f32.mrb[0].mxu0
      %v4619 = vadd.f32 %v4506, %v4618
      %v4620 = vpop.f32.mrb[0].mxu0
      %v4621 = vadd.f32 %v4508, %v4620
      %v4622 = vpop.f32.mrb[0].mxu0
      %v4623 = vadd.f32 %v4510, %v4622
      %v4624 = vpop.f32.mrb[0].mxu0
      %v4625 = vadd.f32 %v4512, %v4624
      %4626 = vmatprep.mubr.bf16.mxu0 %v3722
      %4627 = vmatmul.mubr.bf16.gmra.mrb[0].mxu0 %v3721
      %v4628 = vpop.f32.mrb[0].mxu0
      %v4629 = vadd.f32 %v4516, %v4628
      %v4630 = vpop.f32.mrb[0].mxu0
      %v4631 = vadd.f32 %v4518, %v4630
      %v4632 = vpop.f32.mrb[0].mxu0
      %v4633 = vadd.f32 %v4520, %v4632
      %v4634 = vpop.f32.mrb[0].mxu0
      %v4635 = vadd.f32 %v4522, %v4634
      %4636 = vdwg.mxu0
      %4637 = vmatprep.subr.bf16.mxu0 %v4235
      %4638 = vmatpush1.bf16.msra.mxu0 %v4234
      %4639 = vmatprep.subr.bf16.mxu0 %v4237
      %4640 = vmatpush1.bf16.msra.mxu0 %v4236
      %4641 = vmatprep.subr.bf16.mxu0 %v4239
      %4642 = vmatpush1.bf16.msra.mxu0 %v4238
      %4643 = vmatprep.subr.bf16.mxu0 %v4241
      %4644 = vmatpush1.bf16.msra.mxu0 %v4240
      %4645 = vmatprep.subr.bf16.mxu0 %v4243
      %4646 = vmatpush1.bf16.msra.mxu0 %v4242
      %4647 = vmatprep.subr.bf16.mxu0 %v4245
      %4648 = vmatpush1.bf16.msra.mxu0 %v4244
      %4649 = vmatprep.subr.bf16.mxu0 %v4247
      %4650 = vmatpush1.bf16.msra.mxu0 %v4246
      %4651 = vmatprep.subr.bf16.mxu0 %v4249
      %4652 = vmatpush1.bf16.msra.mxu0 %v4248
      %4653 = vmatprep.subr.bf16.mxu0 %v4251
      %4654 = vmatpush1.bf16.msra.mxu0 %v4250
      %4655 = vmatprep.subr.bf16.mxu0 %v4253
      %4656 = vmatpush1.bf16.msra.mxu0 %v4252
      %4657 = vmatprep.subr.bf16.mxu0 %v4255
      %4658 = vmatpush1.bf16.msra.mxu0 %v4254
      %4659 = vmatprep.subr.bf16.mxu0 %v4257
      %4660 = vmatpush1.bf16.msra.mxu0 %v4256
      %4661 = vmatprep.subr.bf16.mxu0 %v4259
      %4662 = vmatpush1.bf16.msra.mxu0 %v4258
      %4663 = vmatprep.subr.bf16.mxu0 %v4261
      %4664 = vmatpush1.bf16.msra.mxu0 %v4260
      %4665 = vmatprep.subr.bf16.mxu0 %v4263
      %4666 = vmatpush1.bf16.msra.mxu0 %v4262
      %4667 = vmatprep.subr.bf16.mxu0 %v4265
      %4668 = vmatpush1.bf16.msra.mxu0 %v4264
      %4669 = vmatprep.mubr.bf16.mxu0 %v3675
      %4670 = vmatmul.mubr.bf16.gmra.mrb[0].mxu0 %v3674
      %v4671 = vpop.f32.mrb[0].mxu0
      %v4672 = vadd.f32 %v4559, %v4671
      %v4673 = vpop.f32.mrb[0].mxu0
      %v4674 = vadd.f32 %v4561, %v4673
      %v4675 = vpop.f32.mrb[0].mxu0
      %v4676 = vadd.f32 %v4563, %v4675
      %v4677 = vpop.f32.mrb[0].mxu0
      %v4678 = vadd.f32 %v4565, %v4677
      %4679 = vmatprep.mubr.bf16.mxu0 %v3682
      %4680 = vmatmul.mubr.bf16.gmra.mrb[0].mxu0 %v3681
      %v4681 = vpop.f32.mrb[0].mxu0
      %v4682 = vadd.f32 %v4569, %v4681
      %v4683 = vpop.f32.mrb[0].mxu0
      %v4684 = vadd.f32 %v4571, %v4683
      %v4685 = vpop.f32.mrb[0].mxu0
      %v4686 = vadd.f32 %v4573, %v4685
      %v4687 = vpop.f32.mrb[0].mxu0
      %v4688 = vadd.f32 %v4575, %v4687
      %4689 = vmatprep.mubr.bf16.mxu0 %v3689
      %4690 = vmatmul.mubr.bf16.gmra.mrb[0].mxu0 %v3688
      %v4691 = vpop.f32.mrb[0].mxu0
      %v4692 = vadd.f32 %v4579, %v4691
      %v4693 = vpop.f32.mrb[0].mxu0
      %v4694 = vadd.f32 %v4581, %v4693
      %v4695 = vpop.f32.mrb[0].mxu0
      %v4696 = vadd.f32 %v4583, %v4695
      %v4697 = vpop.f32.mrb[0].mxu0
      %v4698 = vadd.f32 %v4585, %v4697
      %4699 = vmatprep.mubr.bf16.mxu0 %v3696
      %4700 = vmatmul.mubr.bf16.gmra.mrb[0].mxu0 %v3695
      %v4701 = vpop.f32.mrb[0].mxu0
      %v4702 = vadd.f32 %v4589, %v4701
      %v4703 = vpop.f32.mrb[0].mxu0
      %v4704 = vadd.f32 %v4591, %v4703
      %v4705 = vpop.f32.mrb[0].mxu0
      %v4706 = vadd.f32 %v4593, %v4705
      %v4707 = vpop.f32.mrb[0].mxu0
      %v4708 = vadd.f32 %v4595, %v4707
      %4709 = vmatprep.mubr.bf16.mxu0 %v3703
      %4710 = vmatmul.mubr.bf16.gmra.mrb[0].mxu0 %v3702
      %v4711 = vpop.f32.mrb[0].mxu0
      %v4712 = vadd.f32 %v4599, %v4711
      %v4713 = vpop.f32.mrb[0].mxu0
      %v4714 = vadd.f32 %v4601, %v4713
      %v4715 = vpop.f32.mrb[0].mxu0
      %v4716 = vadd.f32 %v4603, %v4715
      %v4717 = vpop.f32.mrb[0].mxu0
      %v4718 = vadd.f32 %v4605, %v4717
      %4719 = vmatprep.mubr.bf16.mxu0 %v3710
      %4720 = vmatmul.mubr.bf16.gmra.mrb[0].mxu0 %v3709
      %v4721 = vpop.f32.mrb[0].mxu0
      %v4722 = vadd.f32 %v4609, %v4721
      %v4723 = vpop.f32.mrb[0].mxu0
      %v4724 = vadd.f32 %v4611, %v4723
      %v4725 = vpop.f32.mrb[0].mxu0
      %v4726 = vadd.f32 %v4613, %v4725
      %v4727 = vpop.f32.mrb[0].mxu0
      %v4728 = vadd.f32 %v4615, %v4727
      %4729 = vmatprep.mubr.bf16.mxu0 %v3717
      %4730 = vmatmul.mubr.bf16.gmra.mrb[0].mxu0 %v3716
      %v4731 = vpop.f32.mrb[0].mxu0
      %v4732 = vadd.f32 %v4619, %v4731
      %v4733 = vpop.f32.mrb[0].mxu0
      %v4734 = vadd.f32 %v4621, %v4733
      %v4735 = vpop.f32.mrb[0].mxu0
      %v4736 = vadd.f32 %v4623, %v4735
      %v4737 = vpop.f32.mrb[0].mxu0
      %v4738 = vadd.f32 %v4625, %v4737
      %4739 = vmatprep.mubr.bf16.mxu0 %v3724
      %4740 = vmatmul.mubr.bf16.gmra.mrb[0].mxu0 %v3723
      %v4741 = vpop.f32.mrb[0].mxu0
      %v4742 = vadd.f32 %v4629, %v4741
      %v4743 = vpop.f32.mrb[0].mxu0
      %v4744 = vadd.f32 %v4631, %v4743
      %v4745 = vpop.f32.mrb[0].mxu0
      %v4746 = vadd.f32 %v4633, %v4745
      %v4747 = vpop.f32.mrb[0].mxu0
      %v4748 = vadd.f32 %v4635, %v4747
      %4749 = vdwg.mxu0
      %4750 = vmatprep.subr.bf16.mxu0 %v4267
      %4751 = vmatpush1.bf16.msra.mxu0 %v4266
      %4752 = vmatprep.subr.bf16.mxu0 %v4269
      %4753 = vmatpush1.bf16.msra.mxu0 %v4268
      %4754 = vmatprep.subr.bf16.mxu0 %v4271
      %4755 = vmatpush1.bf16.msra.mxu0 %v4270
      %4756 = vmatprep.subr.bf16.mxu0 %v4273
      %4757 = vmatpush1.bf16.msra.mxu0 %v4272
      %4758 = vmatprep.subr.bf16.mxu0 %v4275
      %4759 = vmatpush1.bf16.msra.mxu0 %v4274
      %4760 = vmatprep.subr.bf16.mxu0 %v4277
      %4761 = vmatpush1.bf16.msra.mxu0 %v4276
      %4762 = vmatprep.subr.bf16.mxu0 0
      %4763 = vmatpush1.bf16.msra.mxu0 0
      %4764 = vmatprep.subr.bf16.mxu0 0
      %4765 = vmatpush1.bf16.msra.mxu0 0
      %4766 = vmatprep.subr.bf16.mxu0 0
      %4767 = vmatpush1.bf16.msra.mxu0 0
      %4768 = vmatprep.subr.bf16.mxu0 0
      %4769 = vmatpush1.bf16.msra.mxu0 0
      %4770 = vmatprep.subr.bf16.mxu0 0
      %4771 = vmatpush1.bf16.msra.mxu0 0
      %4772 = vmatprep.subr.bf16.mxu0 0
      %4773 = vmatpush1.bf16.msra.mxu0 0
      %4774 = vmatprep.subr.bf16.mxu0 0
      %4775 = vmatpush1.bf16.msra.mxu0 0
      %4776 = vmatprep.subr.bf16.mxu0 0
      %4777 = vmatpush1.bf16.msra.mxu0 0
      %4778 = vmatprep.subr.bf16.mxu0 0
      %4779 = vmatpush1.bf16.msra.mxu0 0
      %4780 = vmatprep.subr.bf16.mxu0 0
      %4781 = vmatpush1.bf16.msra.mxu0 0
      %4782 = vmatprep.mubr.bf16.mxu0 0
      %4783 = vmatmul.mubr.bf16.gmra.mrb[0].mxu0 %v4388
      %v4784 = vpop.f32.mrb[0].mxu0
      %v4785 = vadd.f32 %v4672, %v4784
      %v4786 = vpop.f32.mrb[0].mxu0
      %v4787 = vadd.f32 %v4674, %v4786
      %v4788 = vpop.f32.mrb[0].mxu0
      %v4789 = vadd.f32 %v4676, %v4788
      %v4790 = vpop.f32.mrb[0].mxu0
      %v4791 = vadd.f32 %v4678, %v4790
      %4792 = vmatprep.mubr.bf16.mxu0 0
      %4793 = vmatmul.mubr.bf16.gmra.mrb[0].mxu0 %v4391
      %v4794 = vpop.f32.mrb[0].mxu0
      %v4795 = vadd.f32 %v4682, %v4794
      %v4796 = vpop.f32.mrb[0].mxu0
      %v4797 = vadd.f32 %v4684, %v4796
      %v4798 = vpop.f32.mrb[0].mxu0
      %v4799 = vadd.f32 %v4686, %v4798
      %v4800 = vpop.f32.mrb[0].mxu0
      %v4801 = vadd.f32 %v4688, %v4800
      %4802 = vmatprep.mubr.bf16.mxu0 0
      %4803 = vmatmul.mubr.bf16.gmra.mrb[0].mxu0 %v4394
      %v4804 = vpop.f32.mrb[0].mxu0
      %v4805 = vadd.f32 %v4692, %v4804
      %v4806 = vpop.f32.mrb[0].mxu0
      %v4807 = vadd.f32 %v4694, %v4806
      %v4808 = vpop.f32.mrb[0].mxu0
      %v4809 = vadd.f32 %v4696, %v4808
      %v4810 = vpop.f32.mrb[0].mxu0
      %v4811 = vadd.f32 %v4698, %v4810
      %4812 = vmatprep.mubr.bf16.mxu0 0
      %4813 = vmatmul.mubr.bf16.gmra.mrb[0].mxu0 %v4397
      %v4814 = vpop.f32.mrb[0].mxu0
      %v4815 = vadd.f32 %v4702, %v4814
      %v4816 = vpop.f32.mrb[0].mxu0
      %v4817 = vadd.f32 %v4704, %v4816
      %v4818 = vpop.f32.mrb[0].mxu0
      %v4819 = vadd.f32 %v4706, %v4818
      %v4820 = vpop.f32.mrb[0].mxu0
      %v4821 = vadd.f32 %v4708, %v4820
      %4822 = vmatprep.mubr.bf16.mxu0 0
      %4823 = vmatmul.mubr.bf16.gmra.mrb[0].mxu0 %v4400
      %v4824 = vpop.f32.mrb[0].mxu0
      %v4825 = vadd.f32 %v4712, %v4824
      %v4826 = vpop.f32.mrb[0].mxu0
      %v4827 = vadd.f32 %v4714, %v4826
      %v4828 = vpop.f32.mrb[0].mxu0
      %v4829 = vadd.f32 %v4716, %v4828
      %v4830 = vpop.f32.mrb[0].mxu0
      %v4831 = vadd.f32 %v4718, %v4830
      %4832 = vmatprep.mubr.bf16.mxu0 0
      %4833 = vmatmul.mubr.bf16.gmra.mrb[0].mxu0 %v4403
      %v4834 = vpop.f32.mrb[0].mxu0
      %v4835 = vadd.f32 %v4722, %v4834
      %v4836 = vpop.f32.mrb[0].mxu0
      %v4837 = vadd.f32 %v4724, %v4836
      %v4838 = vpop.f32.mrb[0].mxu0
      %v4839 = vadd.f32 %v4726, %v4838
      %v4840 = vpop.f32.mrb[0].mxu0
      %v4841 = vadd.f32 %v4728, %v4840
      %4842 = vmatprep.mubr.bf16.mxu0 0
      %4843 = vmatmul.mubr.bf16.gmra.mrb[0].mxu0 %v4406
      %v4844 = vpop.f32.mrb[0].mxu0
      %v4845 = vadd.f32 %v4732, %v4844
      %v4846 = vpop.f32.mrb[0].mxu0
      %v4847 = vadd.f32 %v4734, %v4846
      %v4848 = vpop.f32.mrb[0].mxu0
      %v4849 = vadd.f32 %v4736, %v4848
      %v4850 = vpop.f32.mrb[0].mxu0
      %v4851 = vadd.f32 %v4738, %v4850
      %4852 = vmatprep.mubr.bf16.mxu0 0
      %4853 = vmatmul.mubr.bf16.gmra.mrb[0].mxu0 %v4409
      %v4854 = vpop.f32.mrb[0].mxu0
      %v4855 = vadd.f32 %v4742, %v4854
      %v4856 = vpop.f32.mrb[0].mxu0
      %v4857 = vadd.f32 %v4744, %v4856
      %v4858 = vpop.f32.mrb[0].mxu0
      %v4859 = vadd.f32 %v4746, %v4858
      %v4860 = vpop.f32.mrb[0].mxu0
      %v4861 = vadd.f32 %v4748, %v4860
      %4862 = vdwg.mxu0
      %v4863 = vmax.f32 %v4785, 0.0
      %v4864 = vmax.f32 %v4787, 0.0
      %v4865 = vmax.f32 %v4789, 0.0
      %v4866 = vmax.f32 %v4791, 0.0
      %v4867 = vmax.f32 %v4795, 0.0
      %v4868 = vmax.f32 %v4797, 0.0
      %v4869 = vmax.f32 %v4799, 0.0
      %v4870 = vmax.f32 %v4801, 0.0
      %v4871 = vmax.f32 %v4805, 0.0
      %v4872 = vmax.f32 %v4807, 0.0
      %v4873 = vmax.f32 %v4809, 0.0
      %v4874 = vmax.f32 %v4811, 0.0
      %v4875 = vmax.f32 %v4815, 0.0
      %v4876 = vmax.f32 %v4817, 0.0
      %v4877 = vmax.f32 %v4819, 0.0
      %v4878 = vmax.f32 %v4821, 0.0
      %v4879 = vmax.f32 %v4825, 0.0
      %v4880 = vmax.f32 %v4827, 0.0
      %v4881 = vmax.f32 %v4829, 0.0
      %v4882 = vmax.f32 %v4831, 0.0
      %v4883 = vmax.f32 %v4835, 0.0
      %v4884 = vmax.f32 %v4837, 0.0
      %v4885 = vmax.f32 %v4839, 0.0
      %v4886 = vmax.f32 %v4841, 0.0
      %v4887 = vmax.f32 %v4845, 0.0
      %v4888 = vmax.f32 %v4847, 0.0
      %v4889 = vmax.f32 %v4849, 0.0
      %v4890 = vmax.f32 %v4851, 0.0
      %v4891 = vmax.f32 %v4855, 0.0
      %v4892 = vmax.f32 %v4857, 0.0
      %v4893 = vmax.f32 %v4859, 0.0
      %v4894 = vmax.f32 %v4861, 0.0
      %v4895 = vrot.slane %v4863, 7
      %v4896 = vrot.slane %v4864, 7
      %v4897 = vrot.slane %v4865, 7
      %v4898 = vrot.slane %v4866, 7
      %v4899 = vrot.slane %v4867, 7
      %v4900 = vrot.slane %v4868, 7
      %v4901 = vrot.slane %v4869, 7
      %v4902 = vrot.slane %v4870, 7
      %v4903 = vrot.slane %v4871, 7
      %v4904 = vrot.slane %v4872, 7
      %v4905 = vrot.slane %v4873, 7
      %v4906 = vrot.slane %v4874, 7
      %v4907 = vrot.slane %v4875, 7
      %v4908 = vrot.slane %v4876, 7
      %v4909 = vrot.slane %v4877, 7
      %v4910 = vrot.slane %v4878, 7
      %v4911 = vrot.slane %v4879, 7
      %v4912 = vrot.slane %v4880, 7
      %v4913 = vrot.slane %v4881, 7
      %v4914 = vrot.slane %v4882, 7
      %v4915 = vrot.slane %v4883, 7
      %v4916 = vrot.slane %v4884, 7
      %v4917 = vrot.slane %v4885, 7
      %v4918 = vrot.slane %v4886, 7
      %v4919 = vrot.slane %v4887, 7
      %v4920 = vrot.slane %v4888, 7
      %v4921 = vrot.slane %v4889, 7
      %v4922 = vrot.slane %v4890, 7
      %v4923 = vrot.slane %v4891, 7
      %v4924 = vrot.slane %v4892, 7
      %v4925 = vrot.slane %v4893, 7
      %v4926 = vrot.slane %v4894, 7
      %v4927 = vsel %vm535, %v4923, %v4925
      %v4928 = vsel %vm535, %v4924, %v4926
      %v4929 = vsel %vm535, %v4921, %v4923
      %v4930 = vsel %vm535, %v4922, %v4924
      %v4931 = vsel %vm535, %v4919, %v4921
      %v4932 = vsel %vm535, %v4920, %v4922
      %v4933 = vsel %vm535, %v4917, %v4919
      %v4934 = vsel %vm535, %v4918, %v4920
      %v4935 = vsel %vm535, %v4915, %v4917
      %v4936 = vsel %vm535, %v4916, %v4918
      %v4937 = vsel %vm535, %v4913, %v4915
      %v4938 = vsel %vm535, %v4914, %v4916
      %v4939 = vsel %vm535, %v4911, %v4913
      %v4940 = vsel %vm535, %v4912, %v4914
      %v4941 = vsel %vm535, %v4909, %v4911
      %v4942 = vsel %vm535, %v4910, %v4912
      %v4943 = vsel %vm535, %v4907, %v4909
      %v4944 = vsel %vm535, %v4908, %v4910
      %v4945 = vsel %vm535, %v4905, %v4907
      %v4946 = vsel %vm535, %v4906, %v4908
      %v4947 = vsel %vm535, %v4903, %v4905
      %v4948 = vsel %vm535, %v4904, %v4906
      %v4949 = vsel %vm535, %v4901, %v4903
      %v4950 = vsel %vm535, %v4902, %v4904
      %v4951 = vsel %vm535, %v4899, %v4901
      %v4952 = vsel %vm535, %v4900, %v4902
      %v4953 = vsel %vm535, %v4897, %v4899
      %v4954 = vsel %vm535, %v4898, %v4900
      %v4955 = vsel %vm535, %v4895, %v4897
      %v4956 = vsel %vm535, %v4896, %v4898
      %v4957 = vsel %vm535, %v4925, %v4895
      %v4958 = vsel %vm535, %v4926, %v4896
      %v4959 = vmul.f32 %v4957, %v555
      %v4960 = vmul.f32 %v4958, %v555
      %v4961 = vmul.f32 %v4955, %v560
      %v4962 = vmul.f32 %v4956, %v560
      %v4963 = vmul.f32 %v4953, %v565
      %v4964 = vmul.f32 %v4954, %v565
      %v4965 = vmul.f32 %v4951, %v570
      %v4966 = vmul.f32 %v4952, %v570
      %v4967 = vmul.f32 %v4949, %v575
      %v4968 = vmul.f32 %v4950, %v575
      %v4969 = vmul.f32 %v4947, %v580
      %v4970 = vmul.f32 %v4948, %v580
      %v4971 = vmul.f32 %v4945, %v585
      %v4972 = vmul.f32 %v4946, %v585
      %v4973 = vmul.f32 %v4943, %v590
      %v4974 = vmul.f32 %v4944, %v590
      %v4975 = vmul.f32 %v4941, %v595
      %v4976 = vmul.f32 %v4942, %v595
      %v4977 = vmul.f32 %v4939, %v600
      %v4978 = vmul.f32 %v4940, %v600
      %v4979 = vmul.f32 %v4937, %v605
      %v4980 = vmul.f32 %v4938, %v605
      %v4981 = vmul.f32 %v4935, %v610
      %v4982 = vmul.f32 %v4936, %v610
      %v4983 = vmul.f32 %v4933, %v615
      %v4984 = vmul.f32 %v4934, %v615
      %v4985 = vmul.f32 %v4931, %v620
      %v4986 = vmul.f32 %v4932, %v620
      %v4987 = vmul.f32 %v4929, %v625
      %v4988 = vmul.f32 %v4930, %v625
      %v4989 = vmul.f32 %v4927, %v630
      %v4990 = vmul.f32 %v4928, %v630
      %v4991 = vrot.slane %v4863, 1
      %v4992 = vrot.slane %v4864, 1
      %v4993 = vrot.slane %v4865, 1
      %v4994 = vrot.slane %v4866, 1
      %v4995 = vrot.slane %v4867, 1
      %v4996 = vrot.slane %v4868, 1
      %v4997 = vrot.slane %v4869, 1
      %v4998 = vrot.slane %v4870, 1
      %v4999 = vrot.slane %v4871, 1
      %v5000 = vrot.slane %v4872, 1
      %v5001 = vrot.slane %v4873, 1
      %v5002 = vrot.slane %v4874, 1
      %v5003 = vrot.slane %v4875, 1
      %v5004 = vrot.slane %v4876, 1
      %v5005 = vrot.slane %v4877, 1
      %v5006 = vrot.slane %v4878, 1
      %v5007 = vrot.slane %v4879, 1
      %v5008 = vrot.slane %v4880, 1
      %v5009 = vrot.slane %v4881, 1
      %v5010 = vrot.slane %v4882, 1
      %v5011 = vrot.slane %v4883, 1
      %v5012 = vrot.slane %v4884, 1
      %v5013 = vrot.slane %v4885, 1
      %v5014 = vrot.slane %v4886, 1
      %v5015 = vrot.slane %v4887, 1
      %v5016 = vrot.slane %v4888, 1
      %v5017 = vrot.slane %v4889, 1
      %v5018 = vrot.slane %v4890, 1
      %v5019 = vrot.slane %v4891, 1
      %v5020 = vrot.slane %v4892, 1
      %v5021 = vrot.slane %v4893, 1
      %v5022 = vrot.slane %v4894, 1
      %v5023 = vsel %vm664, %v5019, %v5021
      %v5024 = vsel %vm664, %v5020, %v5022
      %v5025 = vsel %vm664, %v5017, %v5019
      %v5026 = vsel %vm664, %v5018, %v5020
      %v5027 = vsel %vm664, %v5015, %v5017
      %v5028 = vsel %vm664, %v5016, %v5018
      %v5029 = vsel %vm664, %v5013, %v5015
      %v5030 = vsel %vm664, %v5014, %v5016
      %v5031 = vsel %vm664, %v5011, %v5013
      %v5032 = vsel %vm664, %v5012, %v5014
      %v5033 = vsel %vm664, %v5009, %v5011
      %v5034 = vsel %vm664, %v5010, %v5012
      %v5035 = vsel %vm664, %v5007, %v5009
      %v5036 = vsel %vm664, %v5008, %v5010
      %v5037 = vsel %vm664, %v5005, %v5007
      %v5038 = vsel %vm664, %v5006, %v5008
      %v5039 = vsel %vm664, %v5003, %v5005
      %v5040 = vsel %vm664, %v5004, %v5006
      %v5041 = vsel %vm664, %v5001, %v5003
      %v5042 = vsel %vm664, %v5002, %v5004
      %v5043 = vsel %vm664, %v4999, %v5001
      %v5044 = vsel %vm664, %v5000, %v5002
      %v5045 = vsel %vm664, %v4997, %v4999
      %v5046 = vsel %vm664, %v4998, %v5000
      %v5047 = vsel %vm664, %v4995, %v4997
      %v5048 = vsel %vm664, %v4996, %v4998
      %v5049 = vsel %vm664, %v4993, %v4995
      %v5050 = vsel %vm664, %v4994, %v4996
      %v5051 = vsel %vm664, %v4991, %v4993
      %v5052 = vsel %vm664, %v4992, %v4994
      %v5053 = vsel %vm664, %v5021, %v4991
      %v5054 = vsel %vm664, %v5022, %v4992
      %v5055 = vmul.f32 %v5051, %v684
      %v5056 = vmul.f32 %v5052, %v684
      %v5057 = vmul.f32 %v5049, %v689
      %v5058 = vmul.f32 %v5050, %v689
      %v5059 = vmul.f32 %v5047, %v694
      %v5060 = vmul.f32 %v5048, %v694
      %v5061 = vmul.f32 %v5045, %v699
      %v5062 = vmul.f32 %v5046, %v699
      %v5063 = vmul.f32 %v5043, %v704
      %v5064 = vmul.f32 %v5044, %v704
      %v5065 = vmul.f32 %v5041, %v709
      %v5066 = vmul.f32 %v5042, %v709
      %v5067 = vmul.f32 %v5039, %v714
      %v5068 = vmul.f32 %v5040, %v714
      %v5069 = vmul.f32 %v5037, %v719
      %v5070 = vmul.f32 %v5038, %v719
      %v5071 = vmul.f32 %v5035, %v724
      %v5072 = vmul.f32 %v5036, %v724
      %v5073 = vmul.f32 %v5033, %v729
      %v5074 = vmul.f32 %v5034, %v729
      %v5075 = vmul.f32 %v5031, %v734
      %v5076 = vmul.f32 %v5032, %v734
      %v5077 = vmul.f32 %v5029, %v739
      %v5078 = vmul.f32 %v5030, %v739
      %v5079 = vmul.f32 %v5027, %v744
      %v5080 = vmul.f32 %v5028, %v744
      %v5081 = vmul.f32 %v5025, %v749
      %v5082 = vmul.f32 %v5026, %v749
      %v5083 = vmul.f32 %v5023, %v754
      %v5084 = vmul.f32 %v5024, %v754
      %v5085 = vmul.f32 %v5053, %v759
      %v5086 = vmul.f32 %v5054, %v759
      %5119 = vrot.lane.b32.xlu0 %v4863, 16
      %v5120 = vpop.permute.xlu0 %5119
      %5121 = vrot.lane.b32.xlu0 %v4864, 16
      %v5122 = vpop.permute.xlu0 %5121
      %5123 = vrot.lane.b32.xlu0 %v4865, 16
      %v5124 = vpop.permute.xlu0 %5123
      %5125 = vrot.lane.b32.xlu0 %v4866, 16
      %v5126 = vpop.permute.xlu0 %5125
      %5127 = vrot.lane.b32.xlu0 %v4867, 16
      %v5128 = vpop.permute.xlu0 %5127
      %5129 = vrot.lane.b32.xlu0 %v4868, 16
      %v5130 = vpop.permute.xlu0 %5129
      %5131 = vrot.lane.b32.xlu0 %v4869, 16
      %v5132 = vpop.permute.xlu0 %5131
      %5133 = vrot.lane.b32.xlu0 %v4870, 16
      %v5134 = vpop.permute.xlu0 %5133
      %5135 = vrot.lane.b32.xlu0 %v4871, 16
      %v5136 = vpop.permute.xlu0 %5135
      %5137 = vrot.lane.b32.xlu0 %v4872, 16
      %v5138 = vpop.permute.xlu0 %5137
      %5139 = vrot.lane.b32.xlu0 %v4873, 16
      %v5140 = vpop.permute.xlu0 %5139
      %5141 = vrot.lane.b32.xlu0 %v4874, 16
      %v5142 = vpop.permute.xlu0 %5141
      %5143 = vrot.lane.b32.xlu0 %v4875, 16
      %v5144 = vpop.permute.xlu0 %5143
      %5145 = vrot.lane.b32.xlu0 %v4876, 16
      %v5146 = vpop.permute.xlu0 %5145
      %5147 = vrot.lane.b32.xlu0 %v4877, 16
      %v5148 = vpop.permute.xlu0 %5147
      %5149 = vrot.lane.b32.xlu0 %v4878, 16
      %v5150 = vpop.permute.xlu0 %5149
      %5151 = vrot.lane.b32.xlu0 %v4879, 16
      %v5152 = vpop.permute.xlu0 %5151
      %5153 = vrot.lane.b32.xlu0 %v4880, 16
      %v5154 = vpop.permute.xlu0 %5153
      %5155 = vrot.lane.b32.xlu0 %v4881, 16
      %v5156 = vpop.permute.xlu0 %5155
      %5157 = vrot.lane.b32.xlu0 %v4882, 16
      %v5158 = vpop.permute.xlu0 %5157
      %5159 = vrot.lane.b32.xlu0 %v4883, 16
      %v5160 = vpop.permute.xlu0 %5159
      %5161 = vrot.lane.b32.xlu0 %v4884, 16
      %v5162 = vpop.permute.xlu0 %5161
      %5163 = vrot.lane.b32.xlu0 %v4885, 16
      %v5164 = vpop.permute.xlu0 %5163
      %5165 = vrot.lane.b32.xlu0 %v4886, 16
      %v5166 = vpop.permute.xlu0 %5165
      %5167 = vrot.lane.b32.xlu0 %v4887, 16
      %v5168 = vpop.permute.xlu0 %5167
      %5169 = vrot.lane.b32.xlu0 %v4888, 16
      %v5170 = vpop.permute.xlu0 %5169
      %5171 = vrot.lane.b32.xlu0 %v4889, 16
      %v5172 = vpop.permute.xlu0 %5171
      %5173 = vrot.lane.b32.xlu0 %v4890, 16
      %v5174 = vpop.permute.xlu0 %5173
      %5175 = vrot.lane.b32.xlu0 %v4891, 16
      %v5176 = vpop.permute.xlu0 %5175
      %5177 = vrot.lane.b32.xlu0 %v4892, 16
      %v5178 = vpop.permute.xlu0 %5177
      %5179 = vrot.lane.b32.xlu0 %v4893, 16
      %v5180 = vpop.permute.xlu0 %5179
      %5181 = vrot.lane.b32.xlu0 %v4894, 16
      %v5182 = vpop.permute.xlu0 %5181
      %v5183 = vsel %vm922, %v5120, %v5122
      %v5184 = vsel %vm922, %v5124, %v5126
      %v5185 = vsel %vm922, %v5128, %v5130
      %v5186 = vsel %vm922, %v5132, %v5134
      %v5187 = vsel %vm922, %v5136, %v5138
      %v5188 = vsel %vm922, %v5140, %v5142
      %v5189 = vsel %vm922, %v5144, %v5146
      %v5190 = vsel %vm922, %v5148, %v5150
      %v5191 = vsel %vm922, %v5152, %v5154
      %v5192 = vsel %vm922, %v5156, %v5158
      %v5193 = vsel %vm922, %v5160, %v5162
      %v5194 = vsel %vm922, %v5164, %v5166
      %v5195 = vsel %vm922, %v5168, %v5170
      %v5196 = vsel %vm922, %v5172, %v5174
      %v5197 = vsel %vm922, %v5176, %v5178
      %v5198 = vsel %vm922, %v5180, %v5182
      %5263 = vrot.lane.b32.xlu0 %v5055, 32
      %v5264 = vpop.permute.xlu0 %5263
      %5265 = vrot.lane.b32.xlu0 %v5056, 32
      %v5266 = vpop.permute.xlu0 %5265
      %5267 = vrot.lane.b32.xlu0 %v5057, 32
      %v5268 = vpop.permute.xlu0 %5267
      %5269 = vrot.lane.b32.xlu0 %v5058, 32
      %v5270 = vpop.permute.xlu0 %5269
      %5271 = vrot.lane.b32.xlu0 %v5059, 32
      %v5272 = vpop.permute.xlu0 %5271
      %5273 = vrot.lane.b32.xlu0 %v5060, 32
      %v5274 = vpop.permute.xlu0 %5273
      %5275 = vrot.lane.b32.xlu0 %v5061, 32
      %v5276 = vpop.permute.xlu0 %5275
      %5277 = vrot.lane.b32.xlu0 %v5062, 32
      %v5278 = vpop.permute.xlu0 %5277
      %5279 = vrot.lane.b32.xlu0 %v5063, 32
      %v5280 = vpop.permute.xlu0 %5279
      %5281 = vrot.lane.b32.xlu0 %v5064, 32
      %v5282 = vpop.permute.xlu0 %5281
      %5283 = vrot.lane.b32.xlu0 %v5065, 32
      %v5284 = vpop.permute.xlu0 %5283
      %5285 = vrot.lane.b32.xlu0 %v5066, 32
      %v5286 = vpop.permute.xlu0 %5285
      %5287 = vrot.lane.b32.xlu0 %v5067, 32
      %v5288 = vpop.permute.xlu0 %5287
      %5289 = vrot.lane.b32.xlu0 %v5068, 32
      %v5290 = vpop.permute.xlu0 %5289
      %5291 = vrot.lane.b32.xlu0 %v5069, 32
      %v5292 = vpop.permute.xlu0 %5291
      %5293 = vrot.lane.b32.xlu0 %v5070, 32
      %v5294 = vpop.permute.xlu0 %5293
      %5295 = vrot.lane.b32.xlu0 %v5071, 32
      %v5296 = vpop.permute.xlu0 %5295
      %5297 = vrot.lane.b32.xlu0 %v5072, 32
      %v5298 = vpop.permute.xlu0 %5297
      %5299 = vrot.lane.b32.xlu0 %v5073, 32
      %v5300 = vpop.permute.xlu0 %5299
      %5301 = vrot.lane.b32.xlu0 %v5074, 32
      %v5302 = vpop.permute.xlu0 %5301
      %5303 = vrot.lane.b32.xlu0 %v5075, 32
      %v5304 = vpop.permute.xlu0 %5303
      %5305 = vrot.lane.b32.xlu0 %v5076, 32
      %v5306 = vpop.permute.xlu0 %5305
      %5307 = vrot.lane.b32.xlu0 %v5077, 32
      %v5308 = vpop.permute.xlu0 %5307
      %5309 = vrot.lane.b32.xlu0 %v5078, 32
      %v5310 = vpop.permute.xlu0 %5309
      %5311 = vrot.lane.b32.xlu0 %v5079, 32
      %v5312 = vpop.permute.xlu0 %5311
      %5313 = vrot.lane.b32.xlu0 %v5080, 32
      %v5314 = vpop.permute.xlu0 %5313
      %5315 = vrot.lane.b32.xlu0 %v5081, 32
      %v5316 = vpop.permute.xlu0 %5315
      %5317 = vrot.lane.b32.xlu0 %v5082, 32
      %v5318 = vpop.permute.xlu0 %5317
      %5319 = vrot.lane.b32.xlu0 %v5083, 32
      %v5320 = vpop.permute.xlu0 %5319
      %5321 = vrot.lane.b32.xlu0 %v5084, 32
      %v5322 = vpop.permute.xlu0 %5321
      %5323 = vrot.lane.b32.xlu0 %v5085, 32
      %v5324 = vpop.permute.xlu0 %5323
      %5325 = vrot.lane.b32.xlu0 %v5086, 32
      %v5326 = vpop.permute.xlu0 %5325
      %v5327 = vsel %vm1738, %v5264, %v5266
      %v5328 = vsel %vm1738, %v5268, %v5270
      %v5329 = vsel %vm1738, %v5272, %v5274
      %v5330 = vsel %vm1738, %v5276, %v5278
      %v5331 = vsel %vm1738, %v5280, %v5282
      %v5332 = vsel %vm1738, %v5284, %v5286
      %v5333 = vsel %vm1738, %v5288, %v5290
      %v5334 = vsel %vm1738, %v5292, %v5294
      %v5335 = vsel %vm1738, %v5296, %v5298
      %v5336 = vsel %vm1738, %v5300, %v5302
      %v5337 = vsel %vm1738, %v5304, %v5306
      %v5338 = vsel %vm1738, %v5308, %v5310
      %v5339 = vsel %vm1738, %v5312, %v5314
      %v5340 = vsel %vm1738, %v5316, %v5318
      %v5341 = vsel %vm1738, %v5320, %v5322
      %v5342 = vsel %vm1738, %v5324, %v5326
      %v5375 = vsel %vm922, %v4960, %v5120
      %v5376 = vsel %vm922, %v4962, %v5124
      %v5377 = vsel %vm922, %v4964, %v5128
      %v5378 = vsel %vm922, %v4966, %v5132
      %v5379 = vsel %vm922, %v4968, %v5136
      %v5380 = vsel %vm922, %v4970, %v5140
      %v5381 = vsel %vm922, %v4972, %v5144
      %v5382 = vsel %vm922, %v4974, %v5148
      %v5383 = vsel %vm922, %v4976, %v5152
      %v5384 = vsel %vm922, %v4978, %v5156
      %v5385 = vsel %vm922, %v4980, %v5160
      %v5386 = vsel %vm922, %v4982, %v5164
      %v5387 = vsel %vm922, %v4984, %v5168
      %v5388 = vsel %vm922, %v4986, %v5172
      %v5389 = vsel %vm922, %v4988, %v5176
      %v5390 = vsel %vm922, %v4990, %v5180
      %v5391 = vsel %vm1738, %v5183, %v5264
      %v5392 = vsel %vm1738, %v5184, %v5268
      %v5393 = vsel %vm1738, %v5185, %v5272
      %v5394 = vsel %vm1738, %v5186, %v5276
      %v5395 = vsel %vm1738, %v5187, %v5280
      %v5396 = vsel %vm1738, %v5188, %v5284
      %v5397 = vsel %vm1738, %v5189, %v5288
      %v5398 = vsel %vm1738, %v5190, %v5292
      %v5399 = vsel %vm1738, %v5191, %v5296
      %v5400 = vsel %vm1738, %v5192, %v5300
      %v5401 = vsel %vm1738, %v5193, %v5304
      %v5402 = vsel %vm1738, %v5194, %v5308
      %v5403 = vsel %vm1738, %v5195, %v5312
      %v5404 = vsel %vm1738, %v5196, %v5316
      %v5405 = vsel %vm1738, %v5197, %v5320
      %v5406 = vsel %vm1738, %v5198, %v5324
      %v5407 = vpack.c.bf16 %v4961, %v4959
      %v5408 = vpack.c.bf16 %v5376, %v5375
      %v5409 = vpack.c.bf16 %v5392, %v5391
      %v5410 = vpack.c.bf16 %v5328, %v5327
      %v5411 = vpack.c.bf16 %v4965, %v4963
      %v5412 = vpack.c.bf16 %v5378, %v5377
      %v5413 = vpack.c.bf16 %v5394, %v5393
      %v5414 = vpack.c.bf16 %v5330, %v5329
      %v5415 = vpack.c.bf16 %v4969, %v4967
      %v5416 = vpack.c.bf16 %v5380, %v5379
      %v5417 = vpack.c.bf16 %v5396, %v5395
      %v5418 = vpack.c.bf16 %v5332, %v5331
      %v5419 = vpack.c.bf16 %v4973, %v4971
      %v5420 = vpack.c.bf16 %v5382, %v5381
      %v5421 = vpack.c.bf16 %v5398, %v5397
      %v5422 = vpack.c.bf16 %v5334, %v5333
      %v5423 = vpack.c.bf16 %v4977, %v4975
      %v5424 = vpack.c.bf16 %v5384, %v5383
      %v5425 = vpack.c.bf16 %v5400, %v5399
      %v5426 = vpack.c.bf16 %v5336, %v5335
      %v5427 = vpack.c.bf16 %v4981, %v4979
      %v5428 = vpack.c.bf16 %v5386, %v5385
      %v5429 = vpack.c.bf16 %v5402, %v5401
      %v5430 = vpack.c.bf16 %v5338, %v5337
      %v5431 = vpack.c.bf16 %v4985, %v4983
      %v5432 = vpack.c.bf16 %v5388, %v5387
      %v5433 = vpack.c.bf16 %v5404, %v5403
      %v5434 = vpack.c.bf16 %v5340, %v5339
      %v5435 = vpack.c.bf16 %v4989, %v4987
      %v5436 = vpack.c.bf16 %v5390, %v5389
      %v5437 = vpack.c.bf16 %v5406, %v5405
      %v5438 = vpack.c.bf16 %v5342, %v5341
      %v5439 = vld [vmem:[%s9] sm:$0xff]
      %v5440 = vld [vmem:[%s9 + $0x8] sm:$0xff]
      %v5441 = vld [vmem:[%s9 + $0x10] sm:$0xff]
      %v5442 = vld [vmem:[%s9 + $0x18] sm:$0xff]
      %v5443 = vld [vmem:[%s9 + $0x20] sm:$0xff]
      %v5444 = vld [vmem:[%s9 + $0x28] sm:$0xff]
      %v5445 = vld [vmem:[%s9 + $0x30] sm:$0xff]
      %v5446 = vld [vmem:[%s9 + $0x38] sm:$0xff]
      %v5447 = vld [vmem:[%s9 + $0x40] sm:$0xff]
      %v5448 = vld [vmem:[%s9 + $0x48] sm:$0xff]
      %v5449 = vld [vmem:[%s9 + $0x50] sm:$0xff]
      %v5450 = vld [vmem:[%s9 + $0x58] sm:$0xff]
      %v5451 = vld [vmem:[%s9 + $0x60] sm:$0xff]
      %v5452 = vld [vmem:[%s9 + $0x68] sm:$0xff]
      %v5453 = vld [vmem:[%s9 + $0x70] sm:$0xff]
      %v5454 = vld [vmem:[%s9 + $0x78] sm:$0xff]
      %v5455 = vld [vmem:[%s9 + $0x80] sm:$0xff]
      %v5456 = vld [vmem:[%s9 + $0x88] sm:$0xff]
      %v5457 = vld [vmem:[%s9 + $0x90] sm:$0xff]
      %v5458 = vld [vmem:[%s9 + $0x98] sm:$0xff]
      %v5459 = vld [vmem:[%s9 + $0xa0] sm:$0xff]
      %v5460 = vld [vmem:[%s9 + $0xa8] sm:$0xff]
      %v5461 = vld [vmem:[%s9 + $0xb0] sm:$0xff]
      %v5462 = vld [vmem:[%s9 + $0xb8] sm:$0xff]
      %v5463 = vld [vmem:[%s9 + $0xc0] sm:$0xff]
      %v5464 = vld [vmem:[%s9 + $0xc8] sm:$0xff]
      %v5465 = vld [vmem:[%s9 + $0xd0] sm:$0xff]
      %v5466 = vld [vmem:[%s9 + $0xd8] sm:$0xff]
      %v5467 = vld [vmem:[%s9 + $0xe0] sm:$0xff]
      %v5468 = vld [vmem:[%s9 + $0xe8] sm:$0xff]
      %v5469 = vld [vmem:[%s9 + $0xf0] sm:$0xff]
      %v5470 = vld [vmem:[%s9 + $0xf8] sm:$0xff]
      %v5471 = vld [vmem:[%s9 + $0x100] sm:$0xff]
      %v5472 = vld [vmem:[%s9 + $0x108] sm:$0xff]
      %v5473 = vld [vmem:[%s9 + $0x110] sm:$0xff]
      %v5474 = vld [vmem:[%s9 + $0x118] sm:$0xff]
      %v5475 = vld [vmem:[%s9 + $0x120] sm:$0xff]
      %v5476 = vld [vmem:[%s9 + $0x128] sm:$0xff]
      %v5477 = vld [vmem:[%s9 + $0x130] sm:$0xff]
      %v5478 = vld [vmem:[%s9 + $0x138] sm:$0xff]
      %v5479 = vld [vmem:[%s9 + $0x140] sm:$0xff]
      %v5480 = vld [vmem:[%s9 + $0x148] sm:$0xff]
      %v5481 = vld [vmem:[%s9 + $0x150] sm:$0xff]
      %v5482 = vld [vmem:[%s9 + $0x158] sm:$0xff]
      %v5483 = vld [vmem:[%s9 + $0x160] sm:$0xff]
      %v5484 = vld [vmem:[%s9 + $0x168] sm:$0xff]
      %v5485 = vld [vmem:[%s9 + $0x170] sm:$0xff]
      %v5486 = vld [vmem:[%s9 + $0x178] sm:$0xff]
      %v5487 = vld [vmem:[%s9 + $0x180] sm:$0xff]
      %v5488 = vld [vmem:[%s9 + $0x188] sm:$0xff]
      %v5489 = vld [vmem:[%s9 + $0x190] sm:$0xff]
      %v5490 = vld [vmem:[%s9 + $0x198] sm:$0xff]
      %v5491 = vld [vmem:[%s9 + $0x1a0] sm:$0xff]
      %v5492 = vld [vmem:[%s9 + $0x1a8] sm:$0xff]
      %v5493 = vld [vmem:[%s10] sm:$0x3]
      %v5495 = vlaneseq
      %v5496 = vshrl.u32 %v5495, 7
      %v5497 = vsub.s32 0, %v5496
      %v5498 = vrot.slane %v5493, %v5497
      %v5499 = vlaneseq
      %v5500 = vshrl.u32 %v5499, 7
      %v5501 = vsub.s32 1, %v5500
      %v5502 = vrot.slane %v5493, %v5501
      %v5559 = vunpack.c.l.b16 %v5439
      %v5560 = vunpack.c.h.b16 %v5439
      %v5561 = vunpack.c.l.b16 %v5440
      %v5562 = vunpack.c.h.b16 %v5440
      %v5563 = vunpack.c.l.b16 %v5441
      %v5564 = vunpack.c.h.b16 %v5441
      %v5565 = vunpack.c.l.b16 %v5442
      %v5566 = vunpack.c.h.b16 %v5442
      %v5567 = vunpack.c.l.b16 %v5443
      %v5568 = vunpack.c.h.b16 %v5443
      %v5569 = vunpack.c.l.b16 %v5444
      %v5570 = vunpack.c.h.b16 %v5444
      %v5571 = vunpack.c.l.b16 %v5445
      %v5572 = vunpack.c.h.b16 %v5445
      %v5573 = vunpack.c.l.b16 %v5446
      %v5574 = vunpack.c.h.b16 %v5446
      %v5575 = vunpack.c.l.b16 %v5447
      %v5576 = vunpack.c.h.b16 %v5447
      %v5577 = vunpack.c.l.b16 %v5448
      %v5578 = vunpack.c.h.b16 %v5448
      %v5579 = vunpack.c.l.b16 %v5449
      %v5580 = vunpack.c.h.b16 %v5449
      %v5581 = vunpack.c.l.b16 %v5450
      %v5582 = vunpack.c.h.b16 %v5450
      %v5583 = vunpack.c.l.b16 %v5451
      %v5584 = vunpack.c.h.b16 %v5451
      %v5585 = vunpack.c.l.b16 %v5452
      %v5586 = vunpack.c.h.b16 %v5452
      %v5587 = vunpack.c.l.b16 %v5453
      %v5588 = vunpack.c.h.b16 %v5453
      %v5589 = vunpack.c.l.b16 %v5454
      %v5590 = vunpack.c.h.b16 %v5454
      %v5591 = vunpack.c.l.b16 %v5455
      %v5592 = vunpack.c.h.b16 %v5455
      %v5593 = vunpack.c.l.b16 %v5456
      %v5594 = vunpack.c.h.b16 %v5456
      %v5595 = vunpack.c.l.b16 %v5457
      %v5596 = vunpack.c.h.b16 %v5457
      %v5597 = vunpack.c.l.b16 %v5458
      %v5598 = vunpack.c.h.b16 %v5458
      %v5599 = vunpack.c.l.b16 %v5459
      %v5600 = vunpack.c.h.b16 %v5459
      %v5601 = vunpack.c.l.b16 %v5460
      %v5602 = vunpack.c.h.b16 %v5460
      %v5603 = vunpack.c.l.b16 %v5461
      %v5604 = vunpack.c.h.b16 %v5461
      %v5605 = vunpack.c.l.b16 %v5462
      %v5606 = vunpack.c.h.b16 %v5462
      %v5607 = vunpack.c.l.b16 %v5463
      %v5608 = vunpack.c.h.b16 %v5463
      %v5609 = vunpack.c.l.b16 %v5464
      %v5610 = vunpack.c.h.b16 %v5464
      %v5611 = vunpack.c.l.b16 %v5465
      %v5612 = vunpack.c.h.b16 %v5465
      %v5613 = vunpack.c.l.b16 %v5466
      %v5614 = vunpack.c.h.b16 %v5466
      %v5615 = vunpack.c.l.b16 %v5467
      %v5616 = vunpack.c.h.b16 %v5467
      %v5617 = vunpack.c.l.b16 %v5468
      %v5618 = vunpack.c.h.b16 %v5468
      %v5619 = vunpack.c.l.b16 %v5469
      %v5620 = vunpack.c.h.b16 %v5469
      %v5621 = vunpack.c.l.b16 %v5470
      %v5622 = vunpack.c.h.b16 %v5470
      %v5623 = vunpack.c.l.b16 %v5471
      %v5624 = vunpack.c.h.b16 %v5471
      %v5625 = vunpack.c.l.b16 %v5472
      %v5626 = vunpack.c.h.b16 %v5472
      %v5627 = vunpack.c.l.b16 %v5473
      %v5628 = vunpack.c.h.b16 %v5473
      %v5629 = vunpack.c.l.b16 %v5474
      %v5630 = vunpack.c.h.b16 %v5474
      %v5631 = vunpack.c.l.b16 %v5475
      %v5632 = vunpack.c.h.b16 %v5475
      %v5633 = vunpack.c.l.b16 %v5476
      %v5634 = vunpack.c.h.b16 %v5476
      %v5635 = vunpack.c.l.b16 %v5477
      %v5636 = vunpack.c.h.b16 %v5477
      %v5637 = vunpack.c.l.b16 %v5478
      %v5638 = vunpack.c.h.b16 %v5478
      %v5639 = vunpack.c.l.b16 %v5479
      %v5640 = vunpack.c.h.b16 %v5479
      %v5641 = vunpack.c.l.b16 %v5480
      %v5642 = vunpack.c.h.b16 %v5480
      %v5643 = vunpack.c.l.b16 %v5481
      %v5644 = vunpack.c.h.b16 %v5481
      %v5645 = vunpack.c.l.b16 %v5482
      %v5646 = vunpack.c.h.b16 %v5482
      %v5647 = vunpack.c.l.b16 %v5483
      %v5648 = vunpack.c.h.b16 %v5483
      %v5649 = vunpack.c.l.b16 %v5484
      %v5650 = vunpack.c.h.b16 %v5484
      %v5651 = vunpack.c.l.b16 %v5485
      %v5652 = vunpack.c.h.b16 %v5485
      %v5653 = vunpack.c.l.b16 %v5486
      %v5654 = vunpack.c.h.b16 %v5486
      %v5655 = vunpack.c.l.b16 %v5487
      %v5656 = vunpack.c.h.b16 %v5487
      %v5657 = vunpack.c.l.b16 %v5488
      %v5658 = vunpack.c.h.b16 %v5488
      %v5659 = vunpack.c.l.b16 %v5489
      %v5660 = vunpack.c.h.b16 %v5489
      %v5661 = vunpack.c.l.b16 %v5490
      %v5662 = vunpack.c.h.b16 %v5490
      %v5663 = vunpack.c.l.b16 %v5491
      %v5664 = vunpack.c.h.b16 %v5491
      %v5665 = vunpack.c.l.b16 %v5492
      %v5666 = vunpack.c.h.b16 %v5492
      %v5667 = vpack.c.b16 %v5561, %v5559
      %v5668 = vpack.c.b16 %v5562, %v5560
      %v5669 = vpack.c.b16 %v5565, %v5563
      %v5670 = vpack.c.b16 %v5566, %v5564
      %v5671 = vpack.c.b16 %v5569, %v5567
      %v5672 = vpack.c.b16 %v5570, %v5568
      %v5673 = vpack.c.b16 %v5573, %v5571
      %v5674 = vpack.c.b16 %v5574, %v5572
      %v5675 = vpack.c.b16 %v5577, %v5575
      %v5676 = vpack.c.b16 %v5578, %v5576
      %v5677 = vpack.c.b16 %v5581, %v5579
      %v5678 = vpack.c.b16 %v5582, %v5580
      %v5679 = vpack.c.b16 %v5585, %v5583
      %v5680 = vpack.c.b16 %v5586, %v5584
      %v5681 = vpack.c.b16 %v5589, %v5587
      %v5682 = vpack.c.b16 %v5590, %v5588
      %v5683 = vpack.c.b16 %v5593, %v5591
      %v5684 = vpack.c.b16 %v5594, %v5592
      %v5685 = vpack.c.b16 %v5597, %v5595
      %v5686 = vpack.c.b16 %v5598, %v5596
      %v5687 = vpack.c.b16 %v5601, %v5599
      %v5688 = vpack.c.b16 %v5602, %v5600
      %v5689 = vpack.c.b16 %v5605, %v5603
      %v5690 = vpack.c.b16 %v5606, %v5604
      %v5691 = vpack.c.b16 %v5609, %v5607
      %v5692 = vpack.c.b16 %v5610, %v5608
      %v5693 = vpack.c.b16 %v5613, %v5611
      %v5694 = vpack.c.b16 %v5614, %v5612
      %v5695 = vpack.c.b16 %v5617, %v5615
      %v5696 = vpack.c.b16 %v5618, %v5616
      %v5697 = vpack.c.b16 %v5621, %v5619
      %v5698 = vpack.c.b16 %v5622, %v5620
      %v5699 = vpack.c.b16 %v5625, %v5623
      %v5700 = vpack.c.b16 %v5626, %v5624
      %v5701 = vpack.c.b16 %v5629, %v5627
      %v5702 = vpack.c.b16 %v5630, %v5628
      %v5703 = vpack.c.b16 %v5633, %v5631
      %v5704 = vpack.c.b16 %v5634, %v5632
      %v5705 = vpack.c.b16 %v5637, %v5635
      %v5706 = vpack.c.b16 %v5638, %v5636
      %v5707 = vpack.c.b16 %v5641, %v5639
      %v5708 = vpack.c.b16 %v5642, %v5640
      %v5709 = vpack.c.b16 %v5645, %v5643
      %v5710 = vpack.c.b16 %v5646, %v5644
      %v5711 = vpack.c.b16 %v5649, %v5647
      %v5712 = vpack.c.b16 %v5650, %v5648
      %v5713 = vpack.c.b16 %v5653, %v5651
      %v5714 = vpack.c.b16 %v5654, %v5652
      %v5715 = vpack.c.b16 %v5657, %v5655
      %v5716 = vpack.c.b16 %v5658, %v5656
      %v5717 = vpack.c.b16 %v5661, %v5659
      %v5718 = vpack.c.b16 %v5662, %v5660
      %v5719 = vpack.c.b16 %v5665, %v5663
      %v5720 = vpack.c.b16 %v5666, %v5664
      %v5776 = vsel %vm2408, %v5410, 0
      %v5779 = vsel %vm2408, %v5414, 0
      %v5782 = vsel %vm2408, %v5418, 0
      %v5785 = vsel %vm2408, %v5422, 0
      %v5788 = vsel %vm2408, %v5426, 0
      %v5791 = vsel %vm2408, %v5430, 0
      %v5794 = vsel %vm2408, %v5434, 0
      %v5797 = vsel %vm2408, %v5438, 0
      %5799 = vmatprep.subr.bf16.mxu0 %v5668
      %5800 = vmatpush1.bf16.msra.mxu0 %v5667
      %5801 = vmatprep.subr.bf16.mxu0 %v5670
      %5802 = vmatpush1.bf16.msra.mxu0 %v5669
      %5803 = vmatprep.subr.bf16.mxu0 %v5672
      %5804 = vmatpush1.bf16.msra.mxu0 %v5671
      %5805 = vmatprep.subr.bf16.mxu0 %v5674
      %5806 = vmatpush1.bf16.msra.mxu0 %v5673
      %5807 = vmatprep.subr.bf16.mxu0 %v5676
      %5808 = vmatpush1.bf16.msra.mxu0 %v5675
      %5809 = vmatprep.subr.bf16.mxu0 %v5678
      %5810 = vmatpush1.bf16.msra.mxu0 %v5677
      %5811 = vmatprep.subr.bf16.mxu0 %v5680
      %5812 = vmatpush1.bf16.msra.mxu0 %v5679
      %5813 = vmatprep.subr.bf16.mxu0 %v5682
      %5814 = vmatpush1.bf16.msra.mxu0 %v5681
      %5815 = vmatprep.subr.bf16.mxu0 %v5684
      %5816 = vmatpush1.bf16.msra.mxu0 %v5683
      %5817 = vmatprep.subr.bf16.mxu0 %v5686
      %5818 = vmatpush1.bf16.msra.mxu0 %v5685
      %5819 = vmatprep.subr.bf16.mxu0 %v5688
      %5820 = vmatpush1.bf16.msra.mxu0 %v5687
      %5821 = vmatprep.subr.bf16.mxu0 %v5690
      %5822 = vmatpush1.bf16.msra.mxu0 %v5689
      %5823 = vmatprep.subr.bf16.mxu0 %v5692
      %5824 = vmatpush1.bf16.msra.mxu0 %v5691
      %5825 = vmatprep.subr.bf16.mxu0 %v5694
      %5826 = vmatpush1.bf16.msra.mxu0 %v5693
      %5827 = vmatprep.subr.bf16.mxu0 %v5696
      %5828 = vmatpush1.bf16.msra.mxu0 %v5695
      %5829 = vmatprep.subr.bf16.mxu0 %v5698
      %5830 = vmatpush1.bf16.msra.mxu0 %v5697
      %5831 = vmatprep.mubr.bf16.mxu0 %v5408
      %5832 = vmatmul.mubr.bf16.gmra.mrb[0].mxu0 %v5407
      %v5833 = vpop.f32.mrb[0].mxu0
      %v5834 = vadd.f32 %v5498, %v5833
      %v5835 = vpop.f32.mrb[0].mxu0
      %v5836 = vadd.f32 %v5502, %v5835
      %v5837 = vpop.f32.mrb[0].mxu0
      %v5838 = vadd.f32 %v5498, %v5837
      %v5839 = vpop.f32.mrb[0].mxu0
      %v5840 = vadd.f32 %v5502, %v5839
      %5841 = vmatprep.mubr.bf16.mxu0 %v5412
      %5842 = vmatmul.mubr.bf16.gmra.mrb[0].mxu0 %v5411
      %v5843 = vpop.f32.mrb[0].mxu0
      %v5844 = vadd.f32 %v5498, %v5843
      %v5845 = vpop.f32.mrb[0].mxu0
      %v5846 = vadd.f32 %v5502, %v5845
      %v5847 = vpop.f32.mrb[0].mxu0
      %v5848 = vadd.f32 %v5498, %v5847
      %v5849 = vpop.f32.mrb[0].mxu0
      %v5850 = vadd.f32 %v5502, %v5849
      %5851 = vmatprep.mubr.bf16.mxu0 %v5416
      %5852 = vmatmul.mubr.bf16.gmra.mrb[0].mxu0 %v5415
      %v5853 = vpop.f32.mrb[0].mxu0
      %v5854 = vadd.f32 %v5498, %v5853
      %v5855 = vpop.f32.mrb[0].mxu0
      %v5856 = vadd.f32 %v5502, %v5855
      %v5857 = vpop.f32.mrb[0].mxu0
      %v5858 = vadd.f32 %v5498, %v5857
      %v5859 = vpop.f32.mrb[0].mxu0
      %v5860 = vadd.f32 %v5502, %v5859
      %5861 = vmatprep.mubr.bf16.mxu0 %v5420
      %5862 = vmatmul.mubr.bf16.gmra.mrb[0].mxu0 %v5419
      %v5863 = vpop.f32.mrb[0].mxu0
      %v5864 = vadd.f32 %v5498, %v5863
      %v5865 = vpop.f32.mrb[0].mxu0
      %v5866 = vadd.f32 %v5502, %v5865
      %v5867 = vpop.f32.mrb[0].mxu0
      %v5868 = vadd.f32 %v5498, %v5867
      %v5869 = vpop.f32.mrb[0].mxu0
      %v5870 = vadd.f32 %v5502, %v5869
      %5871 = vmatprep.mubr.bf16.mxu0 %v5424
      %5872 = vmatmul.mubr.bf16.gmra.mrb[0].mxu0 %v5423
      %v5873 = vpop.f32.mrb[0].mxu0
      %v5874 = vadd.f32 %v5498, %v5873
      %v5875 = vpop.f32.mrb[0].mxu0
      %v5876 = vadd.f32 %v5502, %v5875
      %v5877 = vpop.f32.mrb[0].mxu0
      %v5878 = vadd.f32 %v5498, %v5877
      %v5879 = vpop.f32.mrb[0].mxu0
      %v5880 = vadd.f32 %v5502, %v5879
      %5881 = vmatprep.mubr.bf16.mxu0 %v5428
      %5882 = vmatmul.mubr.bf16.gmra.mrb[0].mxu0 %v5427
      %v5883 = vpop.f32.mrb[0].mxu0
      %v5884 = vadd.f32 %v5498, %v5883
      %v5885 = vpop.f32.mrb[0].mxu0
      %v5886 = vadd.f32 %v5502, %v5885
      %v5887 = vpop.f32.mrb[0].mxu0
      %v5888 = vadd.f32 %v5498, %v5887
      %v5889 = vpop.f32.mrb[0].mxu0
      %v5890 = vadd.f32 %v5502, %v5889
      %5891 = vmatprep.mubr.bf16.mxu0 %v5432
      %5892 = vmatmul.mubr.bf16.gmra.mrb[0].mxu0 %v5431
      %v5893 = vpop.f32.mrb[0].mxu0
      %v5894 = vadd.f32 %v5498, %v5893
      %v5895 = vpop.f32.mrb[0].mxu0
      %v5896 = vadd.f32 %v5502, %v5895
      %v5897 = vpop.f32.mrb[0].mxu0
      %v5898 = vadd.f32 %v5498, %v5897
      %v5899 = vpop.f32.mrb[0].mxu0
      %v5900 = vadd.f32 %v5502, %v5899
      %5901 = vmatprep.mubr.bf16.mxu0 %v5436
      %5902 = vmatmul.mubr.bf16.gmra.mrb[0].mxu0 %v5435
      %v5903 = vpop.f32.mrb[0].mxu0
      %v5904 = vadd.f32 %v5498, %v5903
      %v5905 = vpop.f32.mrb[0].mxu0
      %v5906 = vadd.f32 %v5502, %v5905
      %v5907 = vpop.f32.mrb[0].mxu0
      %v5908 = vadd.f32 %v5498, %v5907
      %v5909 = vpop.f32.mrb[0].mxu0
      %v5910 = vadd.f32 %v5502, %v5909
      %5911 = vdwg.mxu0
      %5912 = vmatprep.subr.bf16.mxu0 %v5700
      %5913 = vmatpush1.bf16.msra.mxu0 %v5699
      %5914 = vmatprep.subr.bf16.mxu0 %v5702
      %5915 = vmatpush1.bf16.msra.mxu0 %v5701
      %5916 = vmatprep.subr.bf16.mxu0 %v5704
      %5917 = vmatpush1.bf16.msra.mxu0 %v5703
      %5918 = vmatprep.subr.bf16.mxu0 %v5706
      %5919 = vmatpush1.bf16.msra.mxu0 %v5705
      %5920 = vmatprep.subr.bf16.mxu0 %v5708
      %5921 = vmatpush1.bf16.msra.mxu0 %v5707
      %5922 = vmatprep.subr.bf16.mxu0 %v5710
      %5923 = vmatpush1.bf16.msra.mxu0 %v5709
      %5924 = vmatprep.subr.bf16.mxu0 %v5712
      %5925 = vmatpush1.bf16.msra.mxu0 %v5711
      %5926 = vmatprep.subr.bf16.mxu0 %v5714
      %5927 = vmatpush1.bf16.msra.mxu0 %v5713
      %5928 = vmatprep.subr.bf16.mxu0 %v5716
      %5929 = vmatpush1.bf16.msra.mxu0 %v5715
      %5930 = vmatprep.subr.bf16.mxu0 %v5718
      %5931 = vmatpush1.bf16.msra.mxu0 %v5717
      %5932 = vmatprep.subr.bf16.mxu0 %v5720
      %5933 = vmatpush1.bf16.msra.mxu0 %v5719
      %5934 = vmatprep.subr.bf16.mxu0 0
      %5935 = vmatpush1.bf16.msra.mxu0 0
      %5936 = vmatprep.subr.bf16.mxu0 0
      %5937 = vmatpush1.bf16.msra.mxu0 0
      %5938 = vmatprep.subr.bf16.mxu0 0
      %5939 = vmatpush1.bf16.msra.mxu0 0
      %5940 = vmatprep.subr.bf16.mxu0 0
      %5941 = vmatpush1.bf16.msra.mxu0 0
      %5942 = vmatprep.subr.bf16.mxu0 0
      %5943 = vmatpush1.bf16.msra.mxu0 0
      %5944 = vmatprep.mubr.bf16.mxu0 %v5776
      %5945 = vmatmul.mubr.bf16.gmra.mrb[0].mxu0 %v5409
      %v5946 = vpop.f32.mrb[0].mxu0
      %v5947 = vadd.f32 %v5834, %v5946
      %v5948 = vpop.f32.mrb[0].mxu0
      %v5949 = vadd.f32 %v5836, %v5948
      %v5950 = vpop.f32.mrb[0].mxu0
      %v5951 = vadd.f32 %v5838, %v5950
      %v5952 = vpop.f32.mrb[0].mxu0
      %v5953 = vadd.f32 %v5840, %v5952
      %5954 = vmatprep.mubr.bf16.mxu0 %v5779
      %5955 = vmatmul.mubr.bf16.gmra.mrb[0].mxu0 %v5413
      %v5956 = vpop.f32.mrb[0].mxu0
      %v5957 = vadd.f32 %v5844, %v5956
      %v5958 = vpop.f32.mrb[0].mxu0
      %v5959 = vadd.f32 %v5846, %v5958
      %v5960 = vpop.f32.mrb[0].mxu0
      %v5961 = vadd.f32 %v5848, %v5960
      %v5962 = vpop.f32.mrb[0].mxu0
      %v5963 = vadd.f32 %v5850, %v5962
      %5964 = vmatprep.mubr.bf16.mxu0 %v5782
      %5965 = vmatmul.mubr.bf16.gmra.mrb[0].mxu0 %v5417
      %v5966 = vpop.f32.mrb[0].mxu0
      %v5967 = vadd.f32 %v5854, %v5966
      %v5968 = vpop.f32.mrb[0].mxu0
      %v5969 = vadd.f32 %v5856, %v5968
      %v5970 = vpop.f32.mrb[0].mxu0
      %v5971 = vadd.f32 %v5858, %v5970
      %v5972 = vpop.f32.mrb[0].mxu0
      %v5973 = vadd.f32 %v5860, %v5972
      %5974 = vmatprep.mubr.bf16.mxu0 %v5785
      %5975 = vmatmul.mubr.bf16.gmra.mrb[0].mxu0 %v5421
      %v5976 = vpop.f32.mrb[0].mxu0
      %v5977 = vadd.f32 %v5864, %v5976
      %v5978 = vpop.f32.mrb[0].mxu0
      %v5979 = vadd.f32 %v5866, %v5978
      %v5980 = vpop.f32.mrb[0].mxu0
      %v5981 = vadd.f32 %v5868, %v5980
      %v5982 = vpop.f32.mrb[0].mxu0
      %v5983 = vadd.f32 %v5870, %v5982
      %5984 = vmatprep.mubr.bf16.mxu0 %v5788
      %5985 = vmatmul.mubr.bf16.gmra.mrb[0].mxu0 %v5425
      %v5986 = vpop.f32.mrb[0].mxu0
      %v5987 = vadd.f32 %v5874, %v5986
      %v5988 = vpop.f32.mrb[0].mxu0
      %v5989 = vadd.f32 %v5876, %v5988
      %v5990 = vpop.f32.mrb[0].mxu0
      %v5991 = vadd.f32 %v5878, %v5990
      %v5992 = vpop.f32.mrb[0].mxu0
      %v5993 = vadd.f32 %v5880, %v5992
      %5994 = vmatprep.mubr.bf16.mxu0 %v5791
      %5995 = vmatmul.mubr.bf16.gmra.mrb[0].mxu0 %v5429
      %v5996 = vpop.f32.mrb[0].mxu0
      %v5997 = vadd.f32 %v5884, %v5996
      %v5998 = vpop.f32.mrb[0].mxu0
      %v5999 = vadd.f32 %v5886, %v5998
      %v6000 = vpop.f32.mrb[0].mxu0
      %v6001 = vadd.f32 %v5888, %v6000
      %v6002 = vpop.f32.mrb[0].mxu0
      %v6003 = vadd.f32 %v5890, %v6002
      %6004 = vmatprep.mubr.bf16.mxu0 %v5794
      %6005 = vmatmul.mubr.bf16.gmra.mrb[0].mxu0 %v5433
      %v6006 = vpop.f32.mrb[0].mxu0
      %v6007 = vadd.f32 %v5894, %v6006
      %v6008 = vpop.f32.mrb[0].mxu0
      %v6009 = vadd.f32 %v5896, %v6008
      %v6010 = vpop.f32.mrb[0].mxu0
      %v6011 = vadd.f32 %v5898, %v6010
      %v6012 = vpop.f32.mrb[0].mxu0
      %v6013 = vadd.f32 %v5900, %v6012
      %6014 = vmatprep.mubr.bf16.mxu0 %v5797
      %6015 = vmatmul.mubr.bf16.gmra.mrb[0].mxu0 %v5437
      %v6016 = vpop.f32.mrb[0].mxu0
      %v6017 = vadd.f32 %v5904, %v6016
      %v6018 = vpop.f32.mrb[0].mxu0
      %v6019 = vadd.f32 %v5906, %v6018
      %v6020 = vpop.f32.mrb[0].mxu0
      %v6021 = vadd.f32 %v5908, %v6020
      %v6022 = vpop.f32.mrb[0].mxu0
      %v6023 = vadd.f32 %v5910, %v6022
      %6024 = vdwg.mxu0
      %v6025 = vmax.f32 %v5947, 0.0
      %v6026 = vmax.f32 %v5949, 0.0
      %v6027 = vmax.f32 %v5951, 0.0
      %v6028 = vmax.f32 %v5953, 0.0
      %v6029 = vmax.f32 %v5957, 0.0
      %v6030 = vmax.f32 %v5959, 0.0
      %v6031 = vmax.f32 %v5961, 0.0
      %v6032 = vmax.f32 %v5963, 0.0
      %v6033 = vmax.f32 %v5967, 0.0
      %v6034 = vmax.f32 %v5969, 0.0
      %v6035 = vmax.f32 %v5971, 0.0
      %v6036 = vmax.f32 %v5973, 0.0
      %v6037 = vmax.f32 %v5977, 0.0
      %v6038 = vmax.f32 %v5979, 0.0
      %v6039 = vmax.f32 %v5981, 0.0
      %v6040 = vmax.f32 %v5983, 0.0
      %v6041 = vmax.f32 %v5987, 0.0
      %v6042 = vmax.f32 %v5989, 0.0
      %v6043 = vmax.f32 %v5991, 0.0
      %v6044 = vmax.f32 %v5993, 0.0
      %v6045 = vmax.f32 %v5997, 0.0
      %v6046 = vmax.f32 %v5999, 0.0
      %v6047 = vmax.f32 %v6001, 0.0
      %v6048 = vmax.f32 %v6003, 0.0
      %v6049 = vmax.f32 %v6007, 0.0
      %v6050 = vmax.f32 %v6009, 0.0
      %v6051 = vmax.f32 %v6011, 0.0
      %v6052 = vmax.f32 %v6013, 0.0
      %v6053 = vmax.f32 %v6017, 0.0
      %v6054 = vmax.f32 %v6019, 0.0
      %v6055 = vmax.f32 %v6021, 0.0
      %v6056 = vmax.f32 %v6023, 0.0
      %v6057 = vpack.c.bf16 %v6027, %v6025
      %v6058 = vpack.c.bf16 %v6028, %v6026
      %v6059 = vpack.c.bf16 %v6031, %v6029
      %v6060 = vpack.c.bf16 %v6032, %v6030
      %v6061 = vpack.c.bf16 %v6035, %v6033
      %v6062 = vpack.c.bf16 %v6036, %v6034
      %v6063 = vpack.c.bf16 %v6039, %v6037
      %v6064 = vpack.c.bf16 %v6040, %v6038
      %v6065 = vpack.c.bf16 %v6043, %v6041
      %v6066 = vpack.c.bf16 %v6044, %v6042
      %v6067 = vpack.c.bf16 %v6047, %v6045
      %v6068 = vpack.c.bf16 %v6048, %v6046
      %v6069 = vpack.c.bf16 %v6051, %v6049
      %v6070 = vpack.c.bf16 %v6052, %v6050
      %v6071 = vpack.c.bf16 %v6055, %v6053
      %v6072 = vpack.c.bf16 %v6056, %v6054
      %v6073 = vld [vmem:[%s11] sm:$0xf]
      %v6074 = vld [vmem:[%s11 + $0x4] sm:$0xf]
      %v6075 = vld [vmem:[%s11 + $0x8] sm:$0xf]
      %v6076 = vld [vmem:[%s11 + $0xc] sm:$0xf]
      %v6077 = vld [vmem:[%s11 + $0x10] sm:$0xf]
      %v6078 = vld [vmem:[%s11 + $0x14] sm:$0xf]
      %v6079 = vld [vmem:[%s11 + $0x18] sm:$0xf]
      %v6080 = vld [vmem:[%s11 + $0x1c] sm:$0xf]
      %v6081 = vld [vmem:[%s11 + $0x20] sm:$0xf]
      %v6082 = vld [vmem:[%s11 + $0x24] sm:$0xf]
      %v6083 = vld [vmem:[%s11 + $0x28] sm:$0xf]
      %v6084 = vld [vmem:[%s11 + $0x2c] sm:$0xf]
      %v6085 = vld [vmem:[%s11 + $0x30] sm:$0xf]
      %v6086 = vld [vmem:[%s11 + $0x34] sm:$0xf]
      %v6087 = vld [vmem:[%s11 + $0x38] sm:$0xf]
      %v6088 = vld [vmem:[%s11 + $0x3c] sm:$0xf]
      %v6089 = vld [vmem:[%s11 + $0x40] sm:$0xf]
      %v6090 = vld [vmem:[%s11 + $0x44] sm:$0xf]
      %v6109 = vunpack.c.l.b16 %v6073
      %v6110 = vunpack.c.l.b16 %v6074
      %v6111 = vunpack.c.l.b16 %v6075
      %v6112 = vunpack.c.l.b16 %v6076
      %v6113 = vunpack.c.l.b16 %v6077
      %v6114 = vunpack.c.l.b16 %v6078
      %v6115 = vunpack.c.l.b16 %v6079
      %v6116 = vunpack.c.l.b16 %v6080
      %v6117 = vunpack.c.l.b16 %v6081
      %v6118 = vunpack.c.l.b16 %v6082
      %v6119 = vunpack.c.l.b16 %v6083
      %v6120 = vunpack.c.l.b16 %v6084
      %v6121 = vunpack.c.l.b16 %v6085
      %v6122 = vunpack.c.l.b16 %v6086
      %v6123 = vunpack.c.l.b16 %v6087
      %v6124 = vunpack.c.l.b16 %v6088
      %v6125 = vunpack.c.l.b16 %v6089
      %v6126 = vunpack.c.l.b16 %v6090
      %v6127 = vpack.c.b16 %v6110, %v6109
      %v6128 = vpack.c.b16 %v6112, %v6111
      %v6129 = vpack.c.b16 %v6114, %v6113
      %v6130 = vpack.c.b16 %v6116, %v6115
      %v6131 = vpack.c.b16 %v6118, %v6117
      %v6132 = vpack.c.b16 %v6120, %v6119
      %v6133 = vpack.c.b16 %v6122, %v6121
      %v6134 = vpack.c.b16 %v6124, %v6123
      %v6135 = vpack.c.b16 %v6126, %v6125
      %v6146 = vsel %vm922, %v6058, 0
      %v6149 = vsel %vm922, %v6060, 0
      %v6152 = vsel %vm922, %v6062, 0
      %v6155 = vsel %vm922, %v6064, 0
      %v6158 = vsel %vm922, %v6066, 0
      %v6161 = vsel %vm922, %v6068, 0
      %v6164 = vsel %vm922, %v6070, 0
      %v6167 = vsel %vm922, %v6072, 0
      %6169 = vmatprep.subr.bf16.mxu0 0
      %6170 = vmatpush1.bf16.msra.mxu0 %v6127
      %6171 = vmatprep.subr.bf16.mxu0 0
      %6172 = vmatpush1.bf16.msra.mxu0 %v6128
      %6173 = vmatprep.subr.bf16.mxu0 0
      %6174 = vmatpush1.bf16.msra.mxu0 %v6129
      %6175 = vmatprep.subr.bf16.mxu0 0
      %6176 = vmatpush1.bf16.msra.mxu0 %v6130
      %6177 = vmatprep.subr.bf16.mxu0 0
      %6178 = vmatpush1.bf16.msra.mxu0 %v6131
      %6179 = vmatprep.subr.bf16.mxu0 0
      %6180 = vmatpush1.bf16.msra.mxu0 %v6132
      %6181 = vmatprep.subr.bf16.mxu0 0
      %6182 = vmatpush1.bf16.msra.mxu0 %v6133
      %6183 = vmatprep.subr.bf16.mxu0 0
      %6184 = vmatpush1.bf16.msra.mxu0 %v6134
      %6185 = vmatprep.subr.bf16.mxu0 0
      %6186 = vmatpush1.bf16.msra.mxu0 %v6135
      %6187 = vmatprep.subr.bf16.mxu0 0
      %6188 = vmatpush1.bf16.msra.mxu0 0
      %6189 = vmatprep.subr.bf16.mxu0 0
      %6190 = vmatpush1.bf16.msra.mxu0 0
      %6191 = vmatprep.subr.bf16.mxu0 0
      %6192 = vmatpush1.bf16.msra.mxu0 0
      %6193 = vmatprep.subr.bf16.mxu0 0
      %6194 = vmatpush1.bf16.msra.mxu0 0
      %6195 = vmatprep.subr.bf16.mxu0 0
      %6196 = vmatpush1.bf16.msra.mxu0 0
      %6197 = vmatprep.subr.bf16.mxu0 0
      %6198 = vmatpush1.bf16.msra.mxu0 0
      %6199 = vmatprep.subr.bf16.mxu0 0
      %6200 = vmatpush1.bf16.msra.mxu0 0
      %6201 = vmatprep.mubr.bf16.mxu0 %v6146
      %6202 = vmatmul.mubr.bf16.gmra.mrb[0].mxu0 %v6057
      %v6203 = vpop.f32.mrb[0].mxu0
      %v6204 = vadd.f32 0.0, %v6203
      %v6205 = vpop.f32.mrb[0].mxu0
      %v6206 = vpop.f32.mrb[0].mxu0
      %v6207 = vadd.f32 0.0, %v6206
      %v6208 = vpop.f32.mrb[0].mxu0
      %6209 = vmatprep.mubr.bf16.mxu0 %v6149
      %6210 = vmatmul.mubr.bf16.gmra.mrb[0].mxu0 %v6059
      %v6211 = vpop.f32.mrb[0].mxu0
      %v6212 = vadd.f32 0.0, %v6211
      %v6213 = vpop.f32.mrb[0].mxu0
      %v6214 = vpop.f32.mrb[0].mxu0
      %v6215 = vadd.f32 0.0, %v6214
      %v6216 = vpop.f32.mrb[0].mxu0
      %6217 = vmatprep.mubr.bf16.mxu0 %v6152
      %6218 = vmatmul.mubr.bf16.gmra.mrb[0].mxu0 %v6061
      %v6219 = vpop.f32.mrb[0].mxu0
      %v6220 = vadd.f32 0.0, %v6219
      %v6221 = vpop.f32.mrb[0].mxu0
      %v6222 = vpop.f32.mrb[0].mxu0
      %v6223 = vadd.f32 0.0, %v6222
      %v6224 = vpop.f32.mrb[0].mxu0
      %6225 = vmatprep.mubr.bf16.mxu0 %v6155
      %6226 = vmatmul.mubr.bf16.gmra.mrb[0].mxu0 %v6063
      %v6227 = vpop.f32.mrb[0].mxu0
      %v6228 = vadd.f32 0.0, %v6227
      %v6229 = vpop.f32.mrb[0].mxu0
      %v6230 = vpop.f32.mrb[0].mxu0
      %v6231 = vadd.f32 0.0, %v6230
      %v6232 = vpop.f32.mrb[0].mxu0
      %6233 = vmatprep.mubr.bf16.mxu0 %v6158
      %6234 = vmatmul.mubr.bf16.gmra.mrb[0].mxu0 %v6065
      %v6235 = vpop.f32.mrb[0].mxu0
      %v6236 = vadd.f32 0.0, %v6235
      %v6237 = vpop.f32.mrb[0].mxu0
      %v6238 = vpop.f32.mrb[0].mxu0
      %v6239 = vadd.f32 0.0, %v6238
      %v6240 = vpop.f32.mrb[0].mxu0
      %6241 = vmatprep.mubr.bf16.mxu0 %v6161
      %6242 = vmatmul.mubr.bf16.gmra.mrb[0].mxu0 %v6067
      %v6243 = vpop.f32.mrb[0].mxu0
      %v6244 = vadd.f32 0.0, %v6243
      %v6245 = vpop.f32.mrb[0].mxu0
      %v6246 = vpop.f32.mrb[0].mxu0
      %v6247 = vadd.f32 0.0, %v6246
      %v6248 = vpop.f32.mrb[0].mxu0
      %6249 = vmatprep.mubr.bf16.mxu0 %v6164
      %6250 = vmatmul.mubr.bf16.gmra.mrb[0].mxu0 %v6069
      %v6251 = vpop.f32.mrb[0].mxu0
      %v6252 = vadd.f32 0.0, %v6251
      %v6253 = vpop.f32.mrb[0].mxu0
      %v6254 = vpop.f32.mrb[0].mxu0
      %v6255 = vadd.f32 0.0, %v6254
      %v6256 = vpop.f32.mrb[0].mxu0
      %6257 = vmatprep.mubr.bf16.mxu0 %v6167
      %6258 = vmatmul.mubr.bf16.gmra.mrb[0].mxu0 %v6071
      %v6259 = vpop.f32.mrb[0].mxu0
      %v6260 = vadd.f32 0.0, %v6259
      %v6261 = vpop.f32.mrb[0].mxu0
      %v6262 = vpop.f32.mrb[0].mxu0
      %v6263 = vadd.f32 0.0, %v6262
      %v6264 = vpop.f32.mrb[0].mxu0
      %6265 = vdwg.mxu0
      %v6266 = vld [vmem:[%s13] sm:$0xff]
      %v6267 = vld [vmem:[%s12] sm:$0x1]
      %v6269 = vlaneseq
      %v6270 = vshrl.u32 %v6269, 7
      %v6271 = vsub.s32 0, %v6270
      %v6272 = vrot.slane %v6267, %v6271
      %6274 = vmatprep.subr.mxu0 0.0
      %6275 = vmatpush1.msra.mxu0 %v6204
      %6276 = vmatprep.subr.mxu0 0.0
      %6277 = vmatpush1.msra.mxu0 %v6207
      %6278 = vmatprep.subr.mxu0 0.0
      %6279 = vmatpush1.msra.mxu0 %v6212
      %6280 = vmatprep.subr.mxu0 0.0
      %6281 = vmatpush1.msra.mxu0 %v6215
      %6282 = vmatprep.subr.mxu0 0.0
      %6283 = vmatpush1.msra.mxu0 %v6220
      %6284 = vmatprep.subr.mxu0 0.0
      %6285 = vmatpush1.msra.mxu0 %v6223
      %6286 = vmatprep.subr.mxu0 0.0
      %6287 = vmatpush1.msra.mxu0 %v6228
      %6288 = vmatprep.subr.mxu0 0.0
      %6289 = vmatpush1.msra.mxu0 %v6231
      %6290 = vmatprep.subr.mxu0 0.0
      %6291 = vmatpush1.msra.mxu0 %v6236
      %6292 = vmatprep.subr.mxu0 0.0
      %6293 = vmatpush1.msra.mxu0 %v6239
      %6294 = vmatprep.subr.mxu0 0.0
      %6295 = vmatpush1.msra.mxu0 %v6244
      %6296 = vmatprep.subr.mxu0 0.0
      %6297 = vmatpush1.msra.mxu0 %v6247
      %6298 = vmatprep.subr.mxu0 0.0
      %6299 = vmatpush1.msra.mxu0 %v6252
      %6300 = vmatprep.subr.mxu0 0.0
      %6301 = vmatpush1.msra.mxu0 %v6255
      %6302 = vmatprep.subr.mxu0 0.0
      %6303 = vmatpush1.msra.mxu0 %v6260
      %6304 = vmatprep.subr.mxu0 0.0
      %6305 = vmatpush1.msra.mxu0 %v6263
      %6306 = vmatprep.subr.mxu0 0.0
      %6307 = vmatpush1.msra.mxu0 0.0
      %6308 = vmatprep.subr.mxu0 0.0
      %6309 = vmatpush1.msra.mxu0 0.0
      %6310 = vmatprep.subr.mxu0 0.0
      %6311 = vmatpush1.msra.mxu0 0.0
      %6312 = vmatprep.subr.mxu0 0.0
      %6313 = vmatpush1.msra.mxu0 0.0
      %6314 = vmatprep.subr.mxu0 0.0
      %6315 = vmatpush1.msra.mxu0 0.0
      %6316 = vmatprep.subr.mxu0 0.0
      %6317 = vmatpush1.msra.mxu0 0.0
      %6318 = vmatprep.subr.mxu0 0.0
      %6319 = vmatpush1.msra.mxu0 0.0
      %6320 = vmatprep.subr.mxu0 0.0
      %6321 = vmatpush1.msra.mxu0 0.0
      %6322 = vmatprep.subr.mxu0 0.0
      %6323 = vmatpush1.msra.mxu0 0.0
      %6324 = vmatprep.subr.mxu0 0.0
      %6325 = vmatpush1.msra.mxu0 0.0
      %6326 = vmatprep.subr.mxu0 0.0
      %6327 = vmatpush1.msra.mxu0 0.0
      %6328 = vmatprep.subr.mxu0 0.0
      %6329 = vmatpush1.msra.mxu0 0.0
      %6330 = vmatprep.subr.mxu0 0.0
      %6331 = vmatpush1.msra.mxu0 0.0
      %6332 = vmatprep.subr.mxu0 0.0
      %6333 = vmatpush1.msra.mxu0 0.0
      %6334 = vmatprep.subr.mxu0 0.0
      %6335 = vmatpush1.msra.mxu0 0.0
      %6336 = vmatprep.subr.mxu0 0.0
      %6337 = vmatpush1.msra.mxu0 0.0
      %6338 = vmatprep.mubr.f32.mxu0 0.0
      %6339 = vmatmul.mubr.f32.gmra.mrb[0].mxu0 %v6266
      %v6340 = vpop.f32.mrb[0].mxu0
      %v6341 = vadd.f32 %v6272, %v6340
      %v6342 = vpop.f32.mrb[0].mxu0
      %6343 = vdwg.mxu0
      %v6344 = vsub.f32 0.0, %v6341
      %v6345 = vmul.f32 %v6344, 1.442695
      %v6346 = vpow.pop %v6345
      %v6347 = vadd.f32 %v6346, 1.0
      %v6348 = vrcp.pop %v6347
      %v6349 = vmul.f32 1.0, %v6348
      %vm6350 = vcmask 31744
      %6351 = vst.msk [vmem:[%s467] sm:$0xff] %vm6350, %v6349
      %p6352 = scmp.lt.s32.totalorder %s25, 1
      %s6353 = scalar_select %p6352, %s25, 1
      %s6354 = smul.addr %s6353, 8
      %s6355 = scalar_lea.vmem %s14, %s6354
      // Predicated region
      $region77: #{odr_forward_pallas.1} parent=75 // pred_check
        %p6356 = pneg %p342
      $region78: #{odr_forward_pallas.1} parent=75 // pred_check_branch
        %6358 = sbr.rel (%p6356) target = $region80
      $region79: #{odr_forward_pallas.1} parent=75 // pred_region
        _
      $region80: #{odr_forward_pallas.1} parent=75 // pred_fallthru
        _
    $region76: #{odr_forward_pallas.1} parent=5 // pred_fallthru
      _
    %p6359 = scmp.le.s32.totalorder 2, %s20
    // Predicated region
    $region81: #{odr_forward_pallas.1} parent=5 // pred_check
      %p6360 = pneg %p6359
    $region82: #{odr_forward_pallas.1} parent=5 // pred_check_branch
      %6362 = sbr.rel (%p6360) target = $region84
    $region83: #{odr_forward_pallas.1} parent=5 // pred_region
      %s6363 = ssub.s32 %s20, 2
      // Predicated region
      $region85: #{odr_forward_pallas.1} parent=83 // pred_check
        %p6364 = pneg %p348
      $region86: #{odr_forward_pallas.1} parent=83 // pred_check_branch
        %6366 = sbr.rel (%p6364) target = $region88
      $region87: #{odr_forward_pallas.1} parent=83 // pred_region
        %p6367 = scmp.lt.s32.totalorder %s26, 1
        %s6368 = scalar_select %p6367, %s26, 1
        %s6369 = smul.addr %s6368, 8
        %s6370 = scalar_lea.vmem %s14, %s6369
      $region88: #{odr_forward_pallas.1} parent=83 // pred_fallthru
        _
    $region84: #{odr_forward_pallas.1} parent=5 // pred_fallthru
      _
  $region6: #{odr_forward_pallas.1} parent=0 // loop_footer
    %s24 = sadd.s32 1, %s20
  $region7: #{odr_forward_pallas.1} parent=0 // loop_footer_branch
    %19 = sbr.rel target = $region3
  $region8: #{odr_forward_pallas.1} parent=0 // loop_exit
    _

</llo_original>
